<compile_context>
chip_gen: v6e
topology: v6e:2x2x1
jax: 0.10.0
libtpu: 0.0.40
codegen_flags: <defaults>
</compile_context>

<pallas_src>
import functools

import jax
import jax.numpy as jnp
from jax import lax
from jax.experimental import pallas as pl
from jax.experimental.pallas import tpu as pltpu

EPS = 1e-5
LANE = 128


def _round_up(x, m):
    return (x + m - 1) // m * m


def _fold_bn(gamma, beta, mean, var):
    scale = gamma / jnp.sqrt(var + EPS)
    return scale, beta - mean * scale


def _const_block_spec(block_shape, index_map):
    """Grid-invariant operand (weights / folded BN vectors): request single
    buffering so large weights are not double-buffered in VMEM.  Falls back to
    the default double-buffering if this Pallas build lacks pipeline_mode."""
    try:
        return pl.BlockSpec(block_shape, index_map, pipeline_mode=pl.Buffered(1))
    except TypeError:
        return pl.BlockSpec(block_shape, index_map)


def _pick_vmem_limit(need_bytes):
    """Generation-aware VMEM budget: at most ~3/4 of physical VMEM (64 MiB on
    v7x, 128 MiB on v5e/v6e), at least 32 MiB, and no more than the kernel's
    estimated footprint with head-room for compiler temporaries."""
    cap = 64 * 1024 * 1024  # conservative default = v7x physical VMEM per core
    try:
        cap = int(pltpu.get_tpu_info().vmem_capacity_bytes)
    except Exception:
        pass
    ceiling = (cap * 3) // 4
    want = int(need_bytes) * 3 // 2          # 1.5x head-room for relayout temps
    return int(max(32 * 1024 * 1024, min(want, ceiling)))


# ------------------------------ fused kernel ---------------------------------

def _make_fused_kernel(H, W, Ho, Wo, s, Hq, Wq, Cpi, Cpo, mode):
    """relu(bn1(x)) -> conv1(3x3, stride s) -> relu(bn2(.)) -> conv2(3x3, 1)
    -> + shortcut, all in one kernel invocation per image.

    mode: "identity" (add x), "pool" (add AvgPool2d(2,2)(x) built from the
    parity planes), "conv" (1x1 shortcut conv accumulated on the MXU).
    """
    taps = [(di, dj) for di in range(3) for dj in range(3)]
    Hpo, Wpo = Ho + 2, Wo + 2
    p0, off = 1 % s, 1 // s          # parity-plane coords of original pixel (0,0)
    rb = (H + 1) % s                 # plane holding the bottom spatial-pad row
    cb = (W + 1) % s                 # plane holding the right  spatial-pad col

    def body(xs_ref, s1_ref, b1_ref, w1_ref, s2_ref, b2_ref, w2_ref,
             wsc_ref, o_ref, a_ref, y1_ref):
        # ---- stage 1: BN1 + ReLU (f32 VPU) -> bf16 parity planes in VMEM.
        # Channel padding stays zero because s1/b1 are zero-padded.
        s1 = s1_ref[...]                       # (1, Cpi) f32
        b1 = b1_ref[...]
        for p in range(s):
            for q in range(s):
                act = jnp.maximum(xs_ref[0, p, q] * s1 + b1, 0.0)
                a_ref[p, q] = act.astype(jnp.bfloat16)
        # Re-zero ONLY the 1-pixel spatial-padding halo strips (relu(b1) may be
        # non-zero there); replaces the old full-plane iota mask.
        zrow = jnp.zeros((1, Wq, Cpi), jnp.bfloat16)
        zcol = jnp.zeros((Hq, 1, Cpi), jnp.bfloat16)
        for q in range(s):
            a_ref[0, q, pl.ds(0, 1), :, :] = zrow            # padded row 0
            a_ref[rb, q, pl.ds(Hq - 1, 1), :, :] = zrow      # padded row H+1
        for p in range(s):
            a_ref[p, 0, :, pl.ds(0, 1), :] = zcol            # padded col 0
            a_ref[p, cb, :, pl.ds(Wq - 1, 1), :] = zcol      # padded col W+1

        # ---- stage 2: conv1 as 9 chained MXU dots (bf16 in, f32 acc),
        #      then fused BN2 + ReLU.  Dropout2d(p=0) == identity (eval mode).
        # TODO(synk): the strided tap window reshape may cost a VMEM relayout;
        # verify in the Mosaic dump and restructure if it shows up hot.
        acc = None
        for t, (di, dj) in enumerate(taps):
            win = a_ref[di % s, dj % s,
                        pl.ds(di // s, Ho), pl.ds(dj // s, Wo), :]
            d = jnp.dot(win.reshape(Ho * Wo, Cpi), w1_ref[t],
                        preferred_element_type=jnp.float32)
            acc = d if acc is None else acc + d
        y = jnp.maximum(acc * s2_ref[...] + b2_ref[...], 0.0)

        # Keep y1 (spatially padded by 1) in VMEM as bf16: zero only the 4
        # border strips, then store the interior.
        zr2 = jnp.zeros((1, Wpo, Cpo), jnp.bfloat16)
        zc2 = jnp.zeros((Hpo, 1, Cpo), jnp.bfloat16)
        y1_ref[pl.ds(0, 1), :, :] = zr2
        y1_ref[pl.ds(Hpo - 1, 1), :, :] = zr2
        y1_ref[:, pl.ds(0, 1), :] = zc2
        y1_ref[:, pl.ds(Wpo - 1, 1), :] = zc2
        y1_ref[pl.ds(1, Ho), pl.ds(1, Wo), :] = (
            y.reshape(Ho, Wo, Cpo).astype(jnp.bfloat16))

        # ---- stage 3: conv2 (3x3, stride 1) + fused shortcut.
        acc2 = None
        for t, (di, dj) in enumerate(taps):
            win = y1_ref[pl.ds(di, Ho), pl.ds(dj, Wo), :]
            d = jnp.dot(win.reshape(Ho * Wo, Cpo), w2_ref[t],
                        preferred_element_type=jnp.float32)
            acc2 = d if acc2 is None else acc2 + d
        if mode == "conv":
            # x[::s, ::s] from the single parity plane that holds it.
            xsel = xs_ref[0, p0, p0, pl.ds(off, Ho), pl.ds(off, Wo), :]
            acc2 = acc2 + jnp.dot(
                xsel.reshape(Ho * Wo, Cpi).astype(jnp.bfloat16), wsc_ref[...],
                preferred_element_type=jnp.float32)
            res = acc2
        elif mode == "identity":
            xint = xs_ref[0, 0, 0, pl.ds(1, Ho), pl.ds(1, Wo), :]   # f32 residual
            res = acc2 + xint.reshape(Ho * Wo, Cpo)
        else:  # "pool": AvgPool2d(2, 2)(x) assembled from the parity planes (f32).
            pool = (xs_ref[0, 1, 1, pl.ds(0, Ho), pl.ds(0, Wo), :]
                    + xs_ref[0, 1, 0, pl.ds(0, Ho), pl.ds(1, Wo), :]
                    + xs_ref[0, 0, 1, pl.ds(1, Ho), pl.ds(0, Wo), :]
                    + xs_ref[0, 0, 0, pl.ds(1, Ho), pl.ds(1, Wo), :]) * 0.25
            res = acc2 + pool.reshape(Ho * Wo, Cpo)
        o_ref[0] = res.reshape(Ho, Wo, Cpo)

    if mode == "conv":
        return body

    def body_no_sc(xs_ref, s1_ref, b1_ref, w1_ref, s2_ref, b2_ref, w2_ref,
                   o_ref, a_ref, y1_ref):
        return body(xs_ref, s1_ref, b1_ref, w1_ref, s2_ref, b2_ref, w2_ref,
                    None, o_ref, a_ref, y1_ref)
    return body_no_sc


# ------------------------------- forward ------------------------------------

@functools.partial(jax.jit, static_argnums=(2, 3, 4))
def basic_block_forward(x_nchw, kp, cin, cout, stride):
    s = stride
    N, _, H, W = x_nchw.shape
    # TODO(synk): only stride in {1, 2} with even H/W (as used by WideResNet)
    # is supported by the parity-plane decomposition.
    assert s in (1, 2) and H % s == 0 and W % s == 0
    Ho, Wo = H // s, W // s
    Hq, Wq = (H + 2) // s, (W + 2) // s
    Hpo, Wpo = Ho + 2, Wo + 2
    Cpi, Cpo = _round_up(cin, LANE), _round_up(cout, LANE)
    mode = ("identity" if (cin == cout and s == 1)
            else "pool" if (cin == cout and s == 2) else "conv")

    # Input marshalling: NCHW -> NHWC, pad channels to a lane-dense multiple of
    # 128, zero-pad spatially by 1, split into s*s parity planes (free for s=1).
    # Kept f32 so the identity / avg-pool residual path stays exact.
    x = jnp.transpose(x_nchw, (0, 2, 3, 1)).astype(jnp.float32)
    x = jnp.pad(x, ((0, 0), (1, 1), (1, 1), (0, Cpi - cin)))
    xs = x.reshape(N, Hq, s, Wq, s, Cpi).transpose(0, 2, 4, 1, 3, 5)

    # ---- one fused pallas_call: bn1+relu -> conv1 -> bn2+relu -> conv2 (+sc)
    in_specs = [
        pl.BlockSpec((1, s, s, Hq, Wq, Cpi), lambda n: (n, 0, 0, 0, 0, 0)),
        _const_block_spec((1, Cpi), lambda n: (0, 0)),
        _const_block_spec((1, Cpi), lambda n: (0, 0)),
        _const_block_spec((9, Cpi, Cpo), lambda n: (0, 0, 0)),
        _const_block_spec((1, Cpo), lambda n: (0, 0)),
        _const_block_spec((1, Cpo), lambda n: (0, 0)),
        _const_block_spec((9, Cpo, Cpo), lambda n: (0, 0, 0)),
    ]
    args = [xs, kp["s1"], kp["b1"], kp["w1"], kp["s2"], kp["b2"], kp["w2"]]
    sc_flops = 0
    w_bytes = (kp["w1"].size + kp["w2"].size) * 2
    if mode == "conv":
        in_specs.append(_const_block_spec((Cpi, Cpo), lambda n: (0, 0)))
        args.append(kp["wsc"])
        sc_flops = 2 * N * Ho * Wo * Cpi * Cpo
        w_bytes += kp["wsc"].size * 2

    vmem_need = (
        2 * s * s * Hq * Wq * Cpi * 4            # xs block, double-buffered, f32
        + (9 * Cpi * Cpo + 9 * Cpo * Cpo
           + (Cpi * Cpo if mode == "conv" else 0)) * 2   # weights, single-buffered
        + 2 * Ho * Wo * Cpo * 4                  # output block, double-buffered
        + s * s * Hq * Wq * Cpi * 2              # a scratch (bf16)
        + Hpo * Wpo * Cpo * 2                    # y1 scratch (bf16)
        + 2 * Ho * Wo * Cpo * 4)                 # live f32 accumulator / temps
    cp = pltpu.CompilerParams(
        dimension_semantics=("parallel",),       # v7x: 2 TCs split the batch grid
        vmem_limit_bytes=_pick_vmem_limit(vmem_need))

    # TODO(synk): for the deep 8x8 stages (Ho*Wo = 64) batch several images per
    # grid step so the MXU M dimension reaches >= 256 on v6e/v7x.
    out = pl.pallas_call(
        _make_fused_kernel(H, W, Ho, Wo, s, Hq, Wq, Cpi, Cpo, mode),
        out_shape=jax.ShapeDtypeStruct((N, Ho, Wo, Cpo), jnp.float32),
        grid=(N,),
        in_specs=in_specs,
        out_specs=pl.BlockSpec((1, Ho, Wo, Cpo), lambda n: (n, 0, 0, 0)),
        scratch_shapes=[pltpu.VMEM((s, s, Hq, Wq, Cpi), jnp.bfloat16),
                        pltpu.VMEM((Hpo, Wpo, Cpo), jnp.bfloat16)],
        compiler_params=cp,
        cost_estimate=pl.CostEstimate(
            flops=2 * N * Ho * Wo * 9 * (Cpi * Cpo + Cpo * Cpo) + sc_flops,
            transcendentals=0,
            bytes_accessed=(xs.size * 4 + w_bytes + N * Ho * Wo * Cpo * 4)),
    )(*args)

    # TODO(synk): in a full WRN, keep the lane-dense NHWC (channel-padded)
    # bf16 layout between blocks instead of this per-block slice + transpose.
    out = out[:, :, :, :cout]
    return jnp.transpose(out, (0, 3, 1, 2))                 # back to NCHW


# --------------------------- parameter preparation ---------------------------

def init_params(key, cin, cout, stride):
    ks = jax.random.split(key, 12)
    p = {}
    p["bn1_gamma"] = jax.random.uniform(ks[0], (cin,), jnp.float32, 0.5, 1.5)
    p["bn1_beta"] = 0.1 * jax.random.normal(ks[1], (cin,), jnp.float32)
    p["bn1_mean"] = 0.1 * jax.random.normal(ks[2], (cin,), jnp.float32)
    p["bn1_var"] = jax.random.uniform(ks[3], (cin,), jnp.float32, 0.5, 1.5)
    p["conv1_w"] = jax.random.normal(ks[4], (cout, cin, 3, 3), jnp.float32) \
        * (1.0 / (3.0 * jnp.sqrt(float(cin))))
    p["bn2_gamma"] = jax.random.uniform(ks[5], (cout,), jnp.float32, 0.5, 1.5)
    p["bn2_beta"] = 0.1 * jax.random.normal(ks[6], (cout,), jnp.float32)
    p["bn2_mean"] = 0.1 * jax.random.normal(ks[7], (cout,), jnp.float32)
    p["bn2_var"] = jax.random.uniform(ks[8], (cout,), jnp.float32, 0.5, 1.5)
    p["conv2_w"] = jax.random.normal(ks[9], (cout, cout, 3, 3), jnp.float32) \
        * (1.0 / (3.0 * jnp.sqrt(float(cout))))
    if cin != cout:
        p["shortcut_w"] = jax.random.normal(
            ks[10], (cout, cin, 1, 1), jnp.float32) * (1.0 / jnp.sqrt(float(cin)))
    return p


def prepare_params(params, cin, cout):
    """Fold BN stats, pad channels to lane width, pack conv weights as
    [tap, Cin_p, Cout_p] bf16 matrices.  Done ONCE, outside the forward jit."""
    Cpi, Cpo = _round_up(cin, LANE), _round_up(cout, LANE)

    def pad_vec(v, cp):
        return jnp.pad(v, (0, cp - v.shape[0])).reshape(1, cp).astype(jnp.float32)

    def pack3x3(w, cp_in, cp_out):
        co, ci, kh, kw = w.shape
        m = jnp.transpose(w, (2, 3, 1, 0)).reshape(kh * kw, ci, co)
        return jnp.pad(m, ((0, 0), (0, cp_in - ci),
                           (0, cp_out - co))).astype(jnp.bfloat16)

    s1, b1 = _fold_bn(params["bn1_gamma"], params["bn1_beta"],
                      params["bn1_mean"], params["bn1_var"])
    s2, b2 = _fold_bn(params["bn2_gamma"], params["bn2_beta"],
                      params["bn2_mean"], params["bn2_var"])
    kp = {"s1": pad_vec(s1, Cpi), "b1": pad_vec(b1, Cpi),
          "s2": pad_vec(s2, Cpo), "b2": pad_vec(b2, Cpo),
          "w1": pack3x3(params["conv1_w"], Cpi, Cpo),
          "w2": pack3x3(params["conv2_w"], Cpo, Cpo)}
    if "shortcut_w" in params:
        w = jnp.transpose(params["shortcut_w"][:, :, 0, 0], (1, 0))  # (ci, co)
        kp["wsc"] = jnp.pad(w, ((0, Cpi - cin),
                                (0, Cpo - cout))).astype(jnp.bfloat16)
    return kp


# ------------------------- pure-JAX reference (check) ------------------------

def reference_forward(x, params, cin, cout, stride):
    """Same math as the kernel (bf16 conv inputs, f32 accumulation)."""
    s1, b1 = _fold_bn(params["bn1_gamma"], params["bn1_beta"],
                      params["bn1_mean"], params["bn1_var"])
    s2, b2 = _fold_bn(params["bn2_gamma"], params["bn2_beta"],
                      params["bn2_mean"], params["bn2_var"])

    def conv(z, w, s, pad):
        return lax.conv_general_dilated(
            z.astype(jnp.bfloat16), w.astype(jnp.bfloat16), (s, s),
            [(pad, pad), (pad, pad)],
            dimension_numbers=("NCHW", "OIHW", "NCHW"),
            preferred_element_type=jnp.float32)

    def affine(z, sc, bi):
        return z * sc[None, :, None, None] + bi[None, :, None, None]

    y = jnp.maximum(affine(x, s1, b1), 0.0)
    y = conv(y, params["conv1_w"], stride, 1)
    y = jnp.maximum(affine(y, s2, b2), 0.0)
    y = conv(y, params["conv2_w"], 1, 1)
    if cin == cout and stride == 1:
        sc = x
    elif cin == cout and stride == 2:
        N, C, H, W = x.shape
        sc = x.reshape(N, C, H // 2, 2, W // 2, 2).mean(axis=(3, 5))
    else:
        sc = conv(x, params["shortcut_w"], stride, 0)
    return y + sc


# ----------------------------------- main ------------------------------------

if __name__ == "__main__":
    key = jax.random.PRNGKey(0)
    # Exercise every shortcut branch of BasicBlock.
    configs = [(4, 8, 2),   # channel change, stride 2 -> 1x1 shortcut conv
               (4, 8, 1),   # channel change, stride 1 -> 1x1 shortcut conv
               (4, 4, 1),   # identity shortcut
               (4, 4, 2)]   # avg-pool shortcut
    for (cin, cout, stride) in configs:
        key, k_param, k_x = jax.random.split(key, 3)
        params = init_params(k_param, cin, cout, stride)
        x = jax.random.normal(k_x, (2, cin, 16, 16), jnp.float32)

        kparams = prepare_params(params, cin, cout)
        out = basic_block_forward(x, kparams, cin, cout, stride)
        out = jax.block_until_ready(out)

        ref = reference_forward(x, params, cin, cout, stride)
        assert out.shape == ref.shape, (out.shape, ref.shape)
        assert bool(jnp.allclose(out, ref, atol=1e-2, rtol=1e-2)), (
            f"mismatch for config {(cin, cout, stride)}: "
            f"max abs err {float(jnp.max(jnp.abs(out - ref)))}")

    print("KERNEL_OK")
</pallas_src>

<mosaic_0001>
module attributes {stable_mosaic.version = 11 : i64} {
  func.func @body(%arg0: i32, %arg1: memref<1x2x2x9x9x128xf32, #tpu.memory_space<vmem>>, %arg2: memref<1x128xf32, #tpu.memory_space<vmem>>, %arg3: memref<1x128xf32, #tpu.memory_space<vmem>>, %arg4: memref<9x128x128xbf16, #tpu.memory_space<vmem>>, %arg5: memref<1x128xf32, #tpu.memory_space<vmem>>, %arg6: memref<1x128xf32, #tpu.memory_space<vmem>>, %arg7: memref<9x128x128xbf16, #tpu.memory_space<vmem>>, %arg8: memref<128x128xbf16, #tpu.memory_space<vmem>>, %arg9: memref<1x8x8x128xf32, #tpu.memory_space<vmem>>, %arg10: memref<2x2x9x9x128xbf16, #tpu.memory_space<vmem>>, %arg11: memref<10x10x128xbf16, #tpu.memory_space<vmem>>) attributes {dimension_semantics = [#tpu.dimension_semantics<parallel>], iteration_bounds = array<i64: 2>, scalar_prefetch = 0 : i64, scratch_operands = 2 : i64, tpu.core_type = #tpu.core_type<tc>, window_params = [{transform_indices = @transform_0, window_bounds = array<i64: 1, 2, 2, 9, 9, 128>}, {pipeline_mode = #tpu.pipeline_mode<synchronous>, transform_indices = @transform_1, window_bounds = array<i64: 1, 128>}, {pipeline_mode = #tpu.pipeline_mode<synchronous>, transform_indices = @transform_2, window_bounds = array<i64: 1, 128>}, {pipeline_mode = #tpu.pipeline_mode<synchronous>, transform_indices = @transform_3, window_bounds = array<i64: 9, 128, 128>}, {pipeline_mode = #tpu.pipeline_mode<synchronous>, transform_indices = @transform_4, window_bounds = array<i64: 1, 128>}, {pipeline_mode = #tpu.pipeline_mode<synchronous>, transform_indices = @transform_5, window_bounds = array<i64: 1, 128>}, {pipeline_mode = #tpu.pipeline_mode<synchronous>, transform_indices = @transform_6, window_bounds = array<i64: 9, 128, 128>}, {pipeline_mode = #tpu.pipeline_mode<synchronous>, transform_indices = @transform_7, window_bounds = array<i64: 128, 128>}, {transform_indices = @transform_8, window_bounds = array<i64: 1, 8, 8, 128>}]} {
    %c0 = arith.constant 0 : index
    %c0_0 = arith.constant 0 : index
    %0 = vector.load %arg2[%c0, %c0_0] : memref<1x128xf32, #tpu.memory_space<vmem>>, vector<1x128xf32>
    %c0_1 = arith.constant 0 : index
    %c0_2 = arith.constant 0 : index
    %1 = vector.load %arg3[%c0_1, %c0_2] : memref<1x128xf32, #tpu.memory_space<vmem>>, vector<1x128xf32>
    %c0_3 = arith.constant 0 : index
    %c0_4 = arith.constant 0 : index
    %c0_5 = arith.constant 0 : index
    %c0_6 = arith.constant 0 : index
    %c0_7 = arith.constant 0 : index
    %c0_8 = arith.constant 0 : index
    %2 = vector.load %arg1[%c0_3, %c0_4, %c0_5, %c0_6, %c0_7, %c0_8] : memref<1x2x2x9x9x128xf32, #tpu.memory_space<vmem>>, vector<1x1x1x9x9x128xf32>
    %3 = vector.shape_cast %2 : vector<1x1x1x9x9x128xf32> to vector<9x9x128xf32>
    %4 = vector.shape_cast %0 : vector<1x128xf32> to vector<1x1x128xf32>
    %5 = vector.broadcast %4 : vector<1x1x128xf32> to vector<9x9x128xf32>
    %6 = arith.mulf %3, %5 : vector<9x9x128xf32>
    %7 = vector.shape_cast %1 : vector<1x128xf32> to vector<1x1x128xf32>
    %8 = vector.broadcast %7 : vector<1x1x128xf32> to vector<9x9x128xf32>
    %9 = arith.addf %6, %8 : vector<9x9x128xf32>
    %cst = arith.constant 0.000000e+00 : f32
    %10 = vector.broadcast %cst : f32 to vector<9x9x128xf32>
    %11 = arith.maximumf %9, %10 : vector<9x9x128xf32>
    %12 = arith.truncf %11 : vector<9x9x128xf32> to vector<9x9x128xbf16>
    %c0_9 = arith.constant 0 : index
    %c0_10 = arith.constant 0 : index
    %c0_11 = arith.constant 0 : index
    %c0_12 = arith.constant 0 : index
    %c0_13 = arith.constant 0 : index
    %13 = vector.load %arg10[%c0_9, %c0_10, %c0_11, %c0_12, %c0_13] : memref<2x2x9x9x128xbf16, #tpu.memory_space<vmem>>, vector<1x1x9x9x128xbf16>
    %14 = vector.shape_cast %13 : vector<1x1x9x9x128xbf16> to vector<9x9x128xbf16>
    %15 = vector.shape_cast %12 : vector<9x9x128xbf16> to vector<1x1x9x9x128xbf16>
    tpu.vector_store %arg10[%c0_9, %c0_10, %c0_11, %c0_12, %c0_13], %15 {strides = array<i32>} : memref<2x2x9x9x128xbf16, #tpu.memory_space<vmem>>, vector<1x1x9x9x128xbf16>,
    %c0_14 = arith.constant 0 : index
    %c0_15 = arith.constant 0 : index
    %c1 = arith.constant 1 : index
    %c0_16 = arith.constant 0 : index
    %c0_17 = arith.constant 0 : index
    %c0_18 = arith.constant 0 : index
    %16 = vector.load %arg1[%c0_14, %c0_15, %c1, %c0_16, %c0_17, %c0_18] : memref<1x2x2x9x9x128xf32, #tpu.memory_space<vmem>>, vector<1x1x1x9x9x128xf32>
    %17 = vector.shape_cast %16 : vector<1x1x1x9x9x128xf32> to vector<9x9x128xf32>
    %18 = vector.shape_cast %0 : vector<1x128xf32> to vector<1x1x128xf32>
    %19 = vector.broadcast %18 : vector<1x1x128xf32> to vector<9x9x128xf32>
    %20 = arith.mulf %17, %19 : vector<9x9x128xf32>
    %21 = vector.shape_cast %1 : vector<1x128xf32> to vector<1x1x128xf32>
    %22 = vector.broadcast %21 : vector<1x1x128xf32> to vector<9x9x128xf32>
    %23 = arith.addf %20, %22 : vector<9x9x128xf32>
    %cst_19 = arith.constant 0.000000e+00 : f32
    %24 = vector.broadcast %cst_19 : f32 to vector<9x9x128xf32>
    %25 = arith.maximumf %23, %24 : vector<9x9x128xf32>
    %26 = arith.truncf %25 : vector<9x9x128xf32> to vector<9x9x128xbf16>
    %c0_20 = arith.constant 0 : index
    %c1_21 = arith.constant 1 : index
    %c0_22 = arith.constant 0 : index
    %c0_23 = arith.constant 0 : index
    %c0_24 = arith.constant 0 : index
    %27 = vector.load %arg10[%c0_20, %c1_21, %c0_22, %c0_23, %c0_24] : memref<2x2x9x9x128xbf16, #tpu.memory_space<vmem>>, vector<1x1x9x9x128xbf16>
    %28 = vector.shape_cast %27 : vector<1x1x9x9x128xbf16> to vector<9x9x128xbf16>
    %29 = vector.shape_cast %26 : vector<9x9x128xbf16> to vector<1x1x9x9x128xbf16>
    tpu.vector_store %arg10[%c0_20, %c1_21, %c0_22, %c0_23, %c0_24], %29 {strides = array<i32>} : memref<2x2x9x9x128xbf16, #tpu.memory_space<vmem>>, vector<1x1x9x9x128xbf16>,
    %c0_25 = arith.constant 0 : index
    %c1_26 = arith.constant 1 : index
    %c0_27 = arith.constant 0 : index
    %c0_28 = arith.constant 0 : index
    %c0_29 = arith.constant 0 : index
    %c0_30 = arith.constant 0 : index
    %30 = vector.load %arg1[%c0_25, %c1_26, %c0_27, %c0_28, %c0_29, %c0_30] : memref<1x2x2x9x9x128xf32, #tpu.memory_space<vmem>>, vector<1x1x1x9x9x128xf32>
    %31 = vector.shape_cast %30 : vector<1x1x1x9x9x128xf32> to vector<9x9x128xf32>
    %32 = vector.shape_cast %0 : vector<1x128xf32> to vector<1x1x128xf32>
    %33 = vector.broadcast %32 : vector<1x1x128xf32> to vector<9x9x128xf32>
    %34 = arith.mulf %31, %33 : vector<9x9x128xf32>
    %35 = vector.shape_cast %1 : vector<1x128xf32> to vector<1x1x128xf32>
    %36 = vector.broadcast %35 : vector<1x1x128xf32> to vector<9x9x128xf32>
    %37 = arith.addf %34, %36 : vector<9x9x128xf32>
    %cst_31 = arith.constant 0.000000e+00 : f32
    %38 = vector.broadcast %cst_31 : f32 to vector<9x9x128xf32>
    %39 = arith.maximumf %37, %38 : vector<9x9x128xf32>
    %40 = arith.truncf %39 : vector<9x9x128xf32> to vector<9x9x128xbf16>
    %c1_32 = arith.constant 1 : index
    %c0_33 = arith.constant 0 : index
    %c0_34 = arith.constant 0 : index
    %c0_35 = arith.constant 0 : index
    %c0_36 = arith.constant 0 : index
    %41 = vector.load %arg10[%c1_32, %c0_33, %c0_34, %c0_35, %c0_36] : memref<2x2x9x9x128xbf16, #tpu.memory_space<vmem>>, vector<1x1x9x9x128xbf16>
    %42 = vector.shape_cast %41 : vector<1x1x9x9x128xbf16> to vector<9x9x128xbf16>
    %43 = vector.shape_cast %40 : vector<9x9x128xbf16> to vector<1x1x9x9x128xbf16>
    tpu.vector_store %arg10[%c1_32, %c0_33, %c0_34, %c0_35, %c0_36], %43 {strides = array<i32>} : memref<2x2x9x9x128xbf16, #tpu.memory_space<vmem>>, vector<1x1x9x9x128xbf16>,
    %c0_37 = arith.constant 0 : index
    %c1_38 = arith.constant 1 : index
    %c1_39 = arith.constant 1 : index
    %c0_40 = arith.constant 0 : index
    %c0_41 = arith.constant 0 : index
    %c0_42 = arith.constant 0 : index
    %44 = vector.load %arg1[%c0_37, %c1_38, %c1_39, %c0_40, %c0_41, %c0_42] : memref<1x2x2x9x9x128xf32, #tpu.memory_space<vmem>>, vector<1x1x1x9x9x128xf32>
    %45 = vector.shape_cast %44 : vector<1x1x1x9x9x128xf32> to vector<9x9x128xf32>
    %46 = vector.shape_cast %0 : vector<1x128xf32> to vector<1x1x128xf32>
    %47 = vector.broadcast %46 : vector<1x1x128xf32> to vector<9x9x128xf32>
    %48 = arith.mulf %45, %47 : vector<9x9x128xf32>
    %49 = vector.shape_cast %1 : vector<1x128xf32> to vector<1x1x128xf32>
    %50 = vector.broadcast %49 : vector<1x1x128xf32> to vector<9x9x128xf32>
    %51 = arith.addf %48, %50 : vector<9x9x128xf32>
    %cst_43 = arith.constant 0.000000e+00 : f32
    %52 = vector.broadcast %cst_43 : f32 to vector<9x9x128xf32>
    %53 = arith.maximumf %51, %52 : vector<9x9x128xf32>
    %54 = arith.truncf %53 : vector<9x9x128xf32> to vector<9x9x128xbf16>
    %c1_44 = arith.constant 1 : index
    %c1_45 = arith.constant 1 : index
    %c0_46 = arith.constant 0 : index
    %c0_47 = arith.constant 0 : index
    %c0_48 = arith.constant 0 : index
    %55 = vector.load %arg10[%c1_44, %c1_45, %c0_46, %c0_47, %c0_48] : memref<2x2x9x9x128xbf16, #tpu.memory_space<vmem>>, vector<1x1x9x9x128xbf16>
    %56 = vector.shape_cast %55 : vector<1x1x9x9x128xbf16> to vector<9x9x128xbf16>
    %57 = vector.shape_cast %54 : vector<9x9x128xbf16> to vector<1x1x9x9x128xbf16>
    tpu.vector_store %arg10[%c1_44, %c1_45, %c0_46, %c0_47, %c0_48], %57 {strides = array<i32>} : memref<2x2x9x9x128xbf16, #tpu.memory_space<vmem>>, vector<1x1x9x9x128xbf16>,
    %cst_49 = arith.constant 0.000000e+00 : bf16
    %58 = vector.broadcast %cst_49 : bf16 to vector<1x9x128xbf16>
    %cst_50 = arith.constant 0.000000e+00 : bf16
    %59 = vector.broadcast %cst_50 : bf16 to vector<9x1x128xbf16>
    %c0_51 = arith.constant 0 : index
    %c0_52 = arith.constant 0 : index
    %c0_53 = arith.constant 0 : index
    %c0_54 = arith.constant 0 : index
    %c0_55 = arith.constant 0 : index
    %60 = vector.load %arg10[%c0_51, %c0_52, %c0_53, %c0_54, %c0_55] : memref<2x2x9x9x128xbf16, #tpu.memory_space<vmem>>, vector<1x1x1x9x128xbf16>
    %61 = vector.shape_cast %60 : vector<1x1x1x9x128xbf16> to vector<1x9x128xbf16>
    %62 = vector.shape_cast %58 : vector<1x9x128xbf16> to vector<1x1x1x9x128xbf16>
    tpu.vector_store %arg10[%c0_51, %c0_52, %c0_53, %c0_54, %c0_55], %62 {strides = array<i32>} : memref<2x2x9x9x128xbf16, #tpu.memory_space<vmem>>, vector<1x1x1x9x128xbf16>,
    %c1_56 = arith.constant 1 : index
    %c0_57 = arith.constant 0 : index
    %c8 = arith.constant 8 : index
    %c0_58 = arith.constant 0 : index
    %c0_59 = arith.constant 0 : index
    %63 = vector.load %arg10[%c1_56, %c0_57, %c8, %c0_58, %c0_59] : memref<2x2x9x9x128xbf16, #tpu.memory_space<vmem>>, vector<1x1x1x9x128xbf16>
    %64 = vector.shape_cast %63 : vector<1x1x1x9x128xbf16> to vector<1x9x128xbf16>
    %65 = vector.shape_cast %58 : vector<1x9x128xbf16> to vector<1x1x1x9x128xbf16>
    tpu.vector_store %arg10[%c1_56, %c0_57, %c8, %c0_58, %c0_59], %65 {strides = array<i32>} : memref<2x2x9x9x128xbf16, #tpu.memory_space<vmem>>, vector<1x1x1x9x128xbf16>,
    %c0_60 = arith.constant 0 : index
    %c1_61 = arith.constant 1 : index
    %c0_62 = arith.constant 0 : index
    %c0_63 = arith.constant 0 : index
    %c0_64 = arith.constant 0 : index
    %66 = vector.load %arg10[%c0_60, %c1_61, %c0_62, %c0_63, %c0_64] : memref<2x2x9x9x128xbf16, #tpu.memory_space<vmem>>, vector<1x1x1x9x128xbf16>
    %67 = vector.shape_cast %66 : vector<1x1x1x9x128xbf16> to vector<1x9x128xbf16>
    %68 = vector.shape_cast %58 : vector<1x9x128xbf16> to vector<1x1x1x9x128xbf16>
    tpu.vector_store %arg10[%c0_60, %c1_61, %c0_62, %c0_63, %c0_64], %68 {strides = array<i32>} : memref<2x2x9x9x128xbf16, #tpu.memory_space<vmem>>, vector<1x1x1x9x128xbf16>,
    %c1_65 = arith.constant 1 : index
    %c1_66 = arith.constant 1 : index
    %c8_67 = arith.constant 8 : index
    %c0_68 = arith.constant 0 : index
    %c0_69 = arith.constant 0 : index
    %69 = vector.load %arg10[%c1_65, %c1_66, %c8_67, %c0_68, %c0_69] : memref<2x2x9x9x128xbf16, #tpu.memory_space<vmem>>, vector<1x1x1x9x128xbf16>
    %70 = vector.shape_cast %69 : vector<1x1x1x9x128xbf16> to vector<1x9x128xbf16>
    %71 = vector.shape_cast %58 : vector<1x9x128xbf16> to vector<1x1x1x9x128xbf16>
    tpu.vector_store %arg10[%c1_65, %c1_66, %c8_67, %c0_68, %c0_69], %71 {strides = array<i32>} : memref<2x2x9x9x128xbf16, #tpu.memory_space<vmem>>, vector<1x1x1x9x128xbf16>,
    %c0_70 = arith.constant 0 : index
    %c0_71 = arith.constant 0 : index
    %c0_72 = arith.constant 0 : index
    %c0_73 = arith.constant 0 : index
    %c0_74 = arith.constant 0 : index
    %72 = vector.load %arg10[%c0_70, %c0_71, %c0_72, %c0_73, %c0_74] : memref<2x2x9x9x128xbf16, #tpu.memory_space<vmem>>, vector<1x1x9x1x128xbf16>
    %73 = vector.shape_cast %72 : vector<1x1x9x1x128xbf16> to vector<9x1x128xbf16>
    %74 = vector.shape_cast %59 : vector<9x1x128xbf16> to vector<1x1x9x1x128xbf16>
    tpu.vector_store %arg10[%c0_70, %c0_71, %c0_72, %c0_73, %c0_74], %74 {strides = array<i32>} : memref<2x2x9x9x128xbf16, #tpu.memory_space<vmem>>, vector<1x1x9x1x128xbf16>,
    %c0_75 = arith.constant 0 : index
    %c1_76 = arith.constant 1 : index
    %c0_77 = arith.constant 0 : index
    %c8_78 = arith.constant 8 : index
    %c0_79 = arith.constant 0 : index
    %75 = vector.load %arg10[%c0_75, %c1_76, %c0_77, %c8_78, %c0_79] : memref<2x2x9x9x128xbf16, #tpu.memory_space<vmem>>, vector<1x1x9x1x128xbf16>
    %76 = vector.shape_cast %75 : vector<1x1x9x1x128xbf16> to vector<9x1x128xbf16>
    %77 = vector.shape_cast %59 : vector<9x1x128xbf16> to vector<1x1x9x1x128xbf16>
    tpu.vector_store %arg10[%c0_75, %c1_76, %c0_77, %c8_78, %c0_79], %77 {strides = array<i32>} : memref<2x2x9x9x128xbf16, #tpu.memory_space<vmem>>, vector<1x1x9x1x128xbf16>,
    %c1_80 = arith.constant 1 : index
    %c0_81 = arith.constant 0 : index
    %c0_82 = arith.constant 0 : index
    %c0_83 = arith.constant 0 : index
    %c0_84 = arith.constant 0 : index
    %78 = vector.load %arg10[%c1_80, %c0_81, %c0_82, %c0_83, %c0_84] : memref<2x2x9x9x128xbf16, #tpu.memory_space<vmem>>, vector<1x1x9x1x128xbf16>
    %79 = vector.shape_cast %78 : vector<1x1x9x1x128xbf16> to vector<9x1x128xbf16>
    %80 = vector.shape_cast %59 : vector<9x1x128xbf16> to vector<1x1x9x1x128xbf16>
    tpu.vector_store %arg10[%c1_80, %c0_81, %c0_82, %c0_83, %c0_84], %80 {strides = array<i32>} : memref<2x2x9x9x128xbf16, #tpu.memory_space<vmem>>, vector<1x1x9x1x128xbf16>,
    %c1_85 = arith.constant 1 : index
    %c1_86 = arith.constant 1 : index
    %c0_87 = arith.constant 0 : index
    %c8_88 = arith.constant 8 : index
    %c0_89 = arith.constant 0 : index
    %81 = vector.load %arg10[%c1_85, %c1_86, %c0_87, %c8_88, %c0_89] : memref<2x2x9x9x128xbf16, #tpu.memory_space<vmem>>, vector<1x1x9x1x128xbf16>
    %82 = vector.shape_cast %81 : vector<1x1x9x1x128xbf16> to vector<9x1x128xbf16>
    %83 = vector.shape_cast %59 : vector<9x1x128xbf16> to vector<1x1x9x1x128xbf16>
    tpu.vector_store %arg10[%c1_85, %c1_86, %c0_87, %c8_88, %c0_89], %83 {strides = array<i32>} : memref<2x2x9x9x128xbf16, #tpu.memory_space<vmem>>, vector<1x1x9x1x128xbf16>,
    %c0_90 = arith.constant 0 : index
    %c0_91 = arith.constant 0 : index
    %c0_92 = arith.constant 0 : index
    %c0_93 = arith.constant 0 : index
    %c0_94 = arith.constant 0 : index
    %84 = vector.load %arg10[%c0_90, %c0_91, %c0_92, %c0_93, %c0_94] : memref<2x2x9x9x128xbf16, #tpu.memory_space<vmem>>, vector<1x1x8x8x128xbf16>
    %85 = vector.shape_cast %84 : vector<1x1x8x8x128xbf16> to vector<8x8x128xbf16>
    %86 = vector.shape_cast %85 : vector<8x8x128xbf16> to vector<64x128xbf16>
    %c0_95 = arith.constant 0 : index
    %c0_96 = arith.constant 0 : index
    %c0_97 = arith.constant 0 : index
    %87 = vector.load %arg4[%c0_95, %c0_96, %c0_97] : memref<9x128x128xbf16, #tpu.memory_space<vmem>>, vector<1x128x128xbf16>
    %88 = vector.shape_cast %87 : vector<1x128x128xbf16> to vector<128x128xbf16>
    %cst_98 = arith.constant dense<0.000000e+00> : vector<64x128xf32>
    %89 = tpu.matmul %86, %88, %cst_98 {dimension_numbers = #tpu.dot_dimension_numbers<[1], [0], [0], [1], [0, 0, 1, 1], [], []>} : vector<64x128xbf16>, vector<128x128xbf16>, vector<64x128xf32> -> vector<64x128xf32>
    %c0_99 = arith.constant 0 : index
    %c1_100 = arith.constant 1 : index
    %c0_101 = arith.constant 0 : index
    %c0_102 = arith.constant 0 : index
    %c0_103 = arith.constant 0 : index
    %90 = vector.load %arg10[%c0_99, %c1_100, %c0_101, %c0_102, %c0_103] : memref<2x2x9x9x128xbf16, #tpu.memory_space<vmem>>, vector<1x1x8x8x128xbf16>
    %91 = vector.shape_cast %90 : vector<1x1x8x8x128xbf16> to vector<8x8x128xbf16>
    %92 = vector.shape_cast %91 : vector<8x8x128xbf16> to vector<64x128xbf16>
    %c1_104 = arith.constant 1 : index
    %c0_105 = arith.constant 0 : index
    %c0_106 = arith.constant 0 : index
    %93 = vector.load %arg4[%c1_104, %c0_105, %c0_106] : memref<9x128x128xbf16, #tpu.memory_space<vmem>>, vector<1x128x128xbf16>
    %94 = vector.shape_cast %93 : vector<1x128x128xbf16> to vector<128x128xbf16>
    %cst_107 = arith.constant dense<0.000000e+00> : vector<64x128xf32>
    %95 = tpu.matmul %92, %94, %cst_107 {dimension_numbers = #tpu.dot_dimension_numbers<[1], [0], [0], [1], [0, 0, 1, 1], [], []>} : vector<64x128xbf16>, vector<128x128xbf16>, vector<64x128xf32> -> vector<64x128xf32>
    %96 = arith.addf %89, %95 : vector<64x128xf32>
    %c0_108 = arith.constant 0 : index
    %c0_109 = arith.constant 0 : index
    %c0_110 = arith.constant 0 : index
    %c1_111 = arith.constant 1 : index
    %c0_112 = arith.constant 0 : index
    %97 = vector.load %arg10[%c0_108, %c0_109, %c0_110, %c1_111, %c0_112] : memref<2x2x9x9x128xbf16, #tpu.memory_space<vmem>>, vector<1x1x8x8x128xbf16>
    %98 = vector.shape_cast %97 : vector<1x1x8x8x128xbf16> to vector<8x8x128xbf16>
    %99 = vector.shape_cast %98 : vector<8x8x128xbf16> to vector<64x128xbf16>
    %c2 = arith.constant 2 : index
    %c0_113 = arith.constant 0 : index
    %c0_114 = arith.constant 0 : index
    %100 = vector.load %arg4[%c2, %c0_113, %c0_114] : memref<9x128x128xbf16, #tpu.memory_space<vmem>>, vector<1x128x128xbf16>
    %101 = vector.shape_cast %100 : vector<1x128x128xbf16> to vector<128x128xbf16>
    %cst_115 = arith.constant dense<0.000000e+00> : vector<64x128xf32>
    %102 = tpu.matmul %99, %101, %cst_115 {dimension_numbers = #tpu.dot_dimension_numbers<[1], [0], [0], [1], [0, 0, 1, 1], [], []>} : vector<64x128xbf16>, vector<128x128xbf16>, vector<64x128xf32> -> vector<64x128xf32>
    %103 = arith.addf %96, %102 : vector<64x128xf32>
    %c1_116 = arith.constant 1 : index
    %c0_117 = arith.constant 0 : index
    %c0_118 = arith.constant 0 : index
    %c0_119 = arith.constant 0 : index
    %c0_120 = arith.constant 0 : index
    %104 = vector.load %arg10[%c1_116, %c0_117, %c0_118, %c0_119, %c0_120] : memref<2x2x9x9x128xbf16, #tpu.memory_space<vmem>>, vector<1x1x8x8x128xbf16>
    %105 = vector.shape_cast %104 : vector<1x1x8x8x128xbf16> to vector<8x8x128xbf16>
    %106 = vector.shape_cast %105 : vector<8x8x128xbf16> to vector<64x128xbf16>
    %c3 = arith.constant 3 : index
    %c0_121 = arith.constant 0 : index
    %c0_122 = arith.constant 0 : index
    %107 = vector.load %arg4[%c3, %c0_121, %c0_122] : memref<9x128x128xbf16, #tpu.memory_space<vmem>>, vector<1x128x128xbf16>
    %108 = vector.shape_cast %107 : vector<1x128x128xbf16> to vector<128x128xbf16>
    %cst_123 = arith.constant dense<0.000000e+00> : vector<64x128xf32>
    %109 = tpu.matmul %106, %108, %cst_123 {dimension_numbers = #tpu.dot_dimension_numbers<[1], [0], [0], [1], [0, 0, 1, 1], [], []>} : vector<64x128xbf16>, vector<128x128xbf16>, vector<64x128xf32> -> vector<64x128xf32>
    %110 = arith.addf %103, %109 : vector<64x128xf32>
    %c1_124 = arith.constant 1 : index
    %c1_125 = arith.constant 1 : index
    %c0_126 = arith.constant 0 : index
    %c0_127 = arith.constant 0 : index
    %c0_128 = arith.constant 0 : index
    %111 = vector.load %arg10[%c1_124, %c1_125, %c0_126, %c0_127, %c0_128] : memref<2x2x9x9x128xbf16, #tpu.memory_space<vmem>>, vector<1x1x8x8x128xbf16>
    %112 = vector.shape_cast %111 : vector<1x1x8x8x128xbf16> to vector<8x8x128xbf16>
    %113 = vector.shape_cast %112 : vector<8x8x128xbf16> to vector<64x128xbf16>
    %c4 = arith.constant 4 : index
    %c0_129 = arith.constant 0 : index
    %c0_130 = arith.constant 0 : index
    %114 = vector.load %arg4[%c4, %c0_129, %c0_130] : memref<9x128x128xbf16, #tpu.memory_space<vmem>>, vector<1x128x128xbf16>
    %115 = vector.shape_cast %114 : vector<1x128x128xbf16> to vector<128x128xbf16>
    %cst_131 = arith.constant dense<0.000000e+00> : vector<64x128xf32>
    %116 = tpu.matmul %113, %115, %cst_131 {dimension_numbers = #tpu.dot_dimension_numbers<[1], [0], [0], [1], [0, 0, 1, 1], [], []>} : vector<64x128xbf16>, vector<128x128xbf16>, vector<64x128xf32> -> vector<64x128xf32>
    %117 = arith.addf %110, %116 : vector<64x128xf32>
    %c1_132 = arith.constant 1 : index
    %c0_133 = arith.constant 0 : index
    %c0_134 = arith.constant 0 : index
    %c1_135 = arith.constant 1 : index
    %c0_136 = arith.constant 0 : index
    %118 = vector.load %arg10[%c1_132, %c0_133, %c0_134, %c1_135, %c0_136] : memref<2x2x9x9x128xbf16, #tpu.memory_space<vmem>>, vector<1x1x8x8x128xbf16>
    %119 = vector.shape_cast %118 : vector<1x1x8x8x128xbf16> to vector<8x8x128xbf16>
    %120 = vector.shape_cast %119 : vector<8x8x128xbf16> to vector<64x128xbf16>
    %c5 = arith.constant 5 : index
    %c0_137 = arith.constant 0 : index
    %c0_138 = arith.constant 0 : index
    %121 = vector.load %arg4[%c5, %c0_137, %c0_138] : memref<9x128x128xbf16, #tpu.memory_space<vmem>>, vector<1x128x128xbf16>
    %122 = vector.shape_cast %121 : vector<1x128x128xbf16> to vector<128x128xbf16>
    %cst_139 = arith.constant dense<0.000000e+00> : vector<64x128xf32>
    %123 = tpu.matmul %120, %122, %cst_139 {dimension_numbers = #tpu.dot_dimension_numbers<[1], [0], [0], [1], [0, 0, 1, 1], [], []>} : vector<64x128xbf16>, vector<128x128xbf16>, vector<64x128xf32> -> vector<64x128xf32>
    %124 = arith.addf %117, %123 : vector<64x128xf32>
    %c0_140 = arith.constant 0 : index
    %c0_141 = arith.constant 0 : index
    %c1_142 = arith.constant 1 : index
    %c0_143 = arith.constant 0 : index
    %c0_144 = arith.constant 0 : index
    %125 = vector.load %arg10[%c0_140, %c0_141, %c1_142, %c0_143, %c0_144] : memref<2x2x9x9x128xbf16, #tpu.memory_space<vmem>>, vector<1x1x8x8x128xbf16>
    %126 = vector.shape_cast %125 : vector<1x1x8x8x128xbf16> to vector<8x8x128xbf16>
    %127 = vector.shape_cast %126 : vector<8x8x128xbf16> to vector<64x128xbf16>
    %c6 = arith.constant 6 : index
    %c0_145 = arith.constant 0 : index
    %c0_146 = arith.constant 0 : index
    %128 = vector.load %arg4[%c6, %c0_145, %c0_146] : memref<9x128x128xbf16, #tpu.memory_space<vmem>>, vector<1x128x128xbf16>
    %129 = vector.shape_cast %128 : vector<1x128x128xbf16> to vector<128x128xbf16>
    %cst_147 = arith.constant dense<0.000000e+00> : vector<64x128xf32>
    %130 = tpu.matmul %127, %129, %cst_147 {dimension_numbers = #tpu.dot_dimension_numbers<[1], [0], [0], [1], [0, 0, 1, 1], [], []>} : vector<64x128xbf16>, vector<128x128xbf16>, vector<64x128xf32> -> vector<64x128xf32>
    %131 = arith.addf %124, %130 : vector<64x128xf32>
    %c0_148 = arith.constant 0 : index
    %c1_149 = arith.constant 1 : index
    %c1_150 = arith.constant 1 : index
    %c0_151 = arith.constant 0 : index
    %c0_152 = arith.constant 0 : index
    %132 = vector.load %arg10[%c0_148, %c1_149, %c1_150, %c0_151, %c0_152] : memref<2x2x9x9x128xbf16, #tpu.memory_space<vmem>>, vector<1x1x8x8x128xbf16>
    %133 = vector.shape_cast %132 : vector<1x1x8x8x128xbf16> to vector<8x8x128xbf16>
    %134 = vector.shape_cast %133 : vector<8x8x128xbf16> to vector<64x128xbf16>
    %c7 = arith.constant 7 : index
    %c0_153 = arith.constant 0 : index
    %c0_154 = arith.constant 0 : index
    %135 = vector.load %arg4[%c7, %c0_153, %c0_154] : memref<9x128x128xbf16, #tpu.memory_space<vmem>>, vector<1x128x128xbf16>
    %136 = vector.shape_cast %135 : vector<1x128x128xbf16> to vector<128x128xbf16>
    %cst_155 = arith.constant dense<0.000000e+00> : vector<64x128xf32>
    %137 = tpu.matmul %134, %136, %cst_155 {dimension_numbers = #tpu.dot_dimension_numbers<[1], [0], [0], [1], [0, 0, 1, 1], [], []>} : vector<64x128xbf16>, vector<128x128xbf16>, vector<64x128xf32> -> vector<64x128xf32>
    %138 = arith.addf %131, %137 : vector<64x128xf32>
    %c0_156 = arith.constant 0 : index
    %c0_157 = arith.constant 0 : index
    %c1_158 = arith.constant 1 : index
    %c1_159 = arith.constant 1 : index
    %c0_160 = arith.constant 0 : index
    %139 = vector.load %arg10[%c0_156, %c0_157, %c1_158, %c1_159, %c0_160] : memref<2x2x9x9x128xbf16, #tpu.memory_space<vmem>>, vector<1x1x8x8x128xbf16>
    %140 = vector.shape_cast %139 : vector<1x1x8x8x128xbf16> to vector<8x8x128xbf16>
    %141 = vector.shape_cast %140 : vector<8x8x128xbf16> to vector<64x128xbf16>
    %c8_161 = arith.constant 8 : index
    %c0_162 = arith.constant 0 : index
    %c0_163 = arith.constant 0 : index
    %142 = vector.load %arg4[%c8_161, %c0_162, %c0_163] : memref<9x128x128xbf16, #tpu.memory_space<vmem>>, vector<1x128x128xbf16>
    %143 = vector.shape_cast %142 : vector<1x128x128xbf16> to vector<128x128xbf16>
    %cst_164 = arith.constant dense<0.000000e+00> : vector<64x128xf32>
    %144 = tpu.matmul %141, %143, %cst_164 {dimension_numbers = #tpu.dot_dimension_numbers<[1], [0], [0], [1], [0, 0, 1, 1], [], []>} : vector<64x128xbf16>, vector<128x128xbf16>, vector<64x128xf32> -> vector<64x128xf32>
    %145 = arith.addf %138, %144 : vector<64x128xf32>
    %c0_165 = arith.constant 0 : index
    %c0_166 = arith.constant 0 : index
    %146 = vector.load %arg5[%c0_165, %c0_166] : memref<1x128xf32, #tpu.memory_space<vmem>>, vector<1x128xf32>
    %147 = vector.broadcast %146 : vector<1x128xf32> to vector<64x128xf32>
    %148 = arith.mulf %145, %147 : vector<64x128xf32>
    %c0_167 = arith.constant 0 : index
    %c0_168 = arith.constant 0 : index
    %149 = vector.load %arg6[%c0_167, %c0_168] : memref<1x128xf32, #tpu.memory_space<vmem>>, vector<1x128xf32>
    %150 = vector.broadcast %149 : vector<1x128xf32> to vector<64x128xf32>
    %151 = arith.addf %148, %150 : vector<64x128xf32>
    %cst_169 = arith.constant 0.000000e+00 : f32
    %152 = vector.broadcast %cst_169 : f32 to vector<64x128xf32>
    %153 = arith.maximumf %151, %152 : vector<64x128xf32>
    %cst_170 = arith.constant 0.000000e+00 : bf16
    %154 = vector.broadcast %cst_170 : bf16 to vector<1x10x128xbf16>
    %cst_171 = arith.constant 0.000000e+00 : bf16
    %155 = vector.broadcast %cst_171 : bf16 to vector<10x1x128xbf16>
    %c0_172 = arith.constant 0 : index
    %c0_173 = arith.constant 0 : index
    %c0_174 = arith.constant 0 : index
    %156 = vector.load %arg11[%c0_172, %c0_173, %c0_174] : memref<10x10x128xbf16, #tpu.memory_space<vmem>>, vector<1x10x128xbf16>
    tpu.vector_store %arg11[%c0_172, %c0_173, %c0_174], %154 {strides = array<i32>} : memref<10x10x128xbf16, #tpu.memory_space<vmem>>, vector<1x10x128xbf16>,
    %c9 = arith.constant 9 : index
    %c0_175 = arith.constant 0 : index
    %c0_176 = arith.constant 0 : index
    %157 = vector.load %arg11[%c9, %c0_175, %c0_176] : memref<10x10x128xbf16, #tpu.memory_space<vmem>>, vector<1x10x128xbf16>
    tpu.vector_store %arg11[%c9, %c0_175, %c0_176], %154 {strides = array<i32>} : memref<10x10x128xbf16, #tpu.memory_space<vmem>>, vector<1x10x128xbf16>,
    %c0_177 = arith.constant 0 : index
    %c0_178 = arith.constant 0 : index
    %c0_179 = arith.constant 0 : index
    %158 = vector.load %arg11[%c0_177, %c0_178, %c0_179] : memref<10x10x128xbf16, #tpu.memory_space<vmem>>, vector<10x1x128xbf16>
    tpu.vector_store %arg11[%c0_177, %c0_178, %c0_179], %155 {strides = array<i32>} : memref<10x10x128xbf16, #tpu.memory_space<vmem>>, vector<10x1x128xbf16>,
    %c0_180 = arith.constant 0 : index
    %c9_181 = arith.constant 9 : index
    %c0_182 = arith.constant 0 : index
    %159 = vector.load %arg11[%c0_180, %c9_181, %c0_182] : memref<10x10x128xbf16, #tpu.memory_space<vmem>>, vector<10x1x128xbf16>
    tpu.vector_store %arg11[%c0_180, %c9_181, %c0_182], %155 {strides = array<i32>} : memref<10x10x128xbf16, #tpu.memory_space<vmem>>, vector<10x1x128xbf16>,
    %160 = vector.shape_cast %153 : vector<64x128xf32> to vector<8x8x128xf32>
    %161 = arith.truncf %160 : vector<8x8x128xf32> to vector<8x8x128xbf16>
    %c1_183 = arith.constant 1 : index
    %c1_184 = arith.constant 1 : index
    %c0_185 = arith.constant 0 : index
    %162 = vector.load %arg11[%c1_183, %c1_184, %c0_185] : memref<10x10x128xbf16, #tpu.memory_space<vmem>>, vector<8x8x128xbf16>
    tpu.vector_store %arg11[%c1_183, %c1_184, %c0_185], %161 {strides = array<i32>} : memref<10x10x128xbf16, #tpu.memory_space<vmem>>, vector<8x8x128xbf16>,
    %c0_186 = arith.constant 0 : index
    %c0_187 = arith.constant 0 : index
    %c0_188 = arith.constant 0 : index
    %163 = vector.load %arg11[%c0_186, %c0_187, %c0_188] : memref<10x10x128xbf16, #tpu.memory_space<vmem>>, vector<8x8x128xbf16>
    %164 = vector.shape_cast %163 : vector<8x8x128xbf16> to vector<64x128xbf16>
    %c0_189 = arith.constant 0 : index
    %c0_190 = arith.constant 0 : index
    %c0_191 = arith.constant 0 : index
    %165 = vector.load %arg7[%c0_189, %c0_190, %c0_191] : memref<9x128x128xbf16, #tpu.memory_space<vmem>>, vector<1x128x128xbf16>
    %166 = vector.shape_cast %165 : vector<1x128x128xbf16> to vector<128x128xbf16>
    %cst_192 = arith.constant dense<0.000000e+00> : vector<64x128xf32>
    %167 = tpu.matmul %164, %166, %cst_192 {dimension_numbers = #tpu.dot_dimension_numbers<[1], [0], [0], [1], [0, 0, 1, 1], [], []>} : vector<64x128xbf16>, vector<128x128xbf16>, vector<64x128xf32> -> vector<64x128xf32>
    %c0_193 = arith.constant 0 : index
    %c1_194 = arith.constant 1 : index
    %c0_195 = arith.constant 0 : index
    %168 = vector.load %arg11[%c0_193, %c1_194, %c0_195] : memref<10x10x128xbf16, #tpu.memory_space<vmem>>, vector<8x8x128xbf16>
    %169 = vector.shape_cast %168 : vector<8x8x128xbf16> to vector<64x128xbf16>
    %c1_196 = arith.constant 1 : index
    %c0_197 = arith.constant 0 : index
    %c0_198 = arith.constant 0 : index
    %170 = vector.load %arg7[%c1_196, %c0_197, %c0_198] : memref<9x128x128xbf16, #tpu.memory_space<vmem>>, vector<1x128x128xbf16>
    %171 = vector.shape_cast %170 : vector<1x128x128xbf16> to vector<128x128xbf16>
    %cst_199 = arith.constant dense<0.000000e+00> : vector<64x128xf32>
    %172 = tpu.matmul %169, %171, %cst_199 {dimension_numbers = #tpu.dot_dimension_numbers<[1], [0], [0], [1], [0, 0, 1, 1], [], []>} : vector<64x128xbf16>, vector<128x128xbf16>, vector<64x128xf32> -> vector<64x128xf32>
    %173 = arith.addf %167, %172 : vector<64x128xf32>
    %c0_200 = arith.constant 0 : index
    %c2_201 = arith.constant 2 : index
    %c0_202 = arith.constant 0 : index
    %174 = vector.load %arg11[%c0_200, %c2_201, %c0_202] : memref<10x10x128xbf16, #tpu.memory_space<vmem>>, vector<8x8x128xbf16>
    %175 = vector.shape_cast %174 : vector<8x8x128xbf16> to vector<64x128xbf16>
    %c2_203 = arith.constant 2 : index
    %c0_204 = arith.constant 0 : index
    %c0_205 = arith.constant 0 : index
    %176 = vector.load %arg7[%c2_203, %c0_204, %c0_205] : memref<9x128x128xbf16, #tpu.memory_space<vmem>>, vector<1x128x128xbf16>
    %177 = vector.shape_cast %176 : vector<1x128x128xbf16> to vector<128x128xbf16>
    %cst_206 = arith.constant dense<0.000000e+00> : vector<64x128xf32>
    %178 = tpu.matmul %175, %177, %cst_206 {dimension_numbers = #tpu.dot_dimension_numbers<[1], [0], [0], [1], [0, 0, 1, 1], [], []>} : vector<64x128xbf16>, vector<128x128xbf16>, vector<64x128xf32> -> vector<64x128xf32>
    %179 = arith.addf %173, %178 : vector<64x128xf32>
    %c1_207 = arith.constant 1 : index
    %c0_208 = arith.constant 0 : index
    %c0_209 = arith.constant 0 : index
    %180 = vector.load %arg11[%c1_207, %c0_208, %c0_209] : memref<10x10x128xbf16, #tpu.memory_space<vmem>>, vector<8x8x128xbf16>
    %181 = vector.shape_cast %180 : vector<8x8x128xbf16> to vector<64x128xbf16>
    %c3_210 = arith.constant 3 : index
    %c0_211 = arith.constant 0 : index
    %c0_212 = arith.constant 0 : index
    %182 = vector.load %arg7[%c3_210, %c0_211, %c0_212] : memref<9x128x128xbf16, #tpu.memory_space<vmem>>, vector<1x128x128xbf16>
    %183 = vector.shape_cast %182 : vector<1x128x128xbf16> to vector<128x128xbf16>
    %cst_213 = arith.constant dense<0.000000e+00> : vector<64x128xf32>
    %184 = tpu.matmul %181, %183, %cst_213 {dimension_numbers = #tpu.dot_dimension_numbers<[1], [0], [0], [1], [0, 0, 1, 1], [], []>} : vector<64x128xbf16>, vector<128x128xbf16>, vector<64x128xf32> -> vector<64x128xf32>
    %185 = arith.addf %179, %184 : vector<64x128xf32>
    %c1_214 = arith.constant 1 : index
    %c1_215 = arith.constant 1 : index
    %c0_216 = arith.constant 0 : index
    %186 = vector.load %arg11[%c1_214, %c1_215, %c0_216] : memref<10x10x128xbf16, #tpu.memory_space<vmem>>, vector<8x8x128xbf16>
    %187 = vector.shape_cast %186 : vector<8x8x128xbf16> to vector<64x128xbf16>
    %c4_217 = arith.constant 4 : index
    %c0_218 = arith.constant 0 : index
    %c0_219 = arith.constant 0 : index
    %188 = vector.load %arg7[%c4_217, %c0_218, %c0_219] : memref<9x128x128xbf16, #tpu.memory_space<vmem>>, vector<1x128x128xbf16>
    %189 = vector.shape_cast %188 : vector<1x128x128xbf16> to vector<128x128xbf16>
    %cst_220 = arith.constant dense<0.000000e+00> : vector<64x128xf32>
    %190 = tpu.matmul %187, %189, %cst_220 {dimension_numbers = #tpu.dot_dimension_numbers<[1], [0], [0], [1], [0, 0, 1, 1], [], []>} : vector<64x128xbf16>, vector<128x128xbf16>, vector<64x128xf32> -> vector<64x128xf32>
    %191 = arith.addf %185, %190 : vector<64x128xf32>
    %c1_221 = arith.constant 1 : index
    %c2_222 = arith.constant 2 : index
    %c0_223 = arith.constant 0 : index
    %192 = vector.load %arg11[%c1_221, %c2_222, %c0_223] : memref<10x10x128xbf16, #tpu.memory_space<vmem>>, vector<8x8x128xbf16>
    %193 = vector.shape_cast %192 : vector<8x8x128xbf16> to vector<64x128xbf16>
    %c5_224 = arith.constant 5 : index
    %c0_225 = arith.constant 0 : index
    %c0_226 = arith.constant 0 : index
    %194 = vector.load %arg7[%c5_224, %c0_225, %c0_226] : memref<9x128x128xbf16, #tpu.memory_space<vmem>>, vector<1x128x128xbf16>
    %195 = vector.shape_cast %194 : vector<1x128x128xbf16> to vector<128x128xbf16>
    %cst_227 = arith.constant dense<0.000000e+00> : vector<64x128xf32>
    %196 = tpu.matmul %193, %195, %cst_227 {dimension_numbers = #tpu.dot_dimension_numbers<[1], [0], [0], [1], [0, 0, 1, 1], [], []>} : vector<64x128xbf16>, vector<128x128xbf16>, vector<64x128xf32> -> vector<64x128xf32>
    %197 = arith.addf %191, %196 : vector<64x128xf32>
    %c2_228 = arith.constant 2 : index
    %c0_229 = arith.constant 0 : index
    %c0_230 = arith.constant 0 : index
    %198 = vector.load %arg11[%c2_228, %c0_229, %c0_230] : memref<10x10x128xbf16, #tpu.memory_space<vmem>>, vector<8x8x128xbf16>
    %199 = vector.shape_cast %198 : vector<8x8x128xbf16> to vector<64x128xbf16>
    %c6_231 = arith.constant 6 : index
    %c0_232 = arith.constant 0 : index
    %c0_233 = arith.constant 0 : index
    %200 = vector.load %arg7[%c6_231, %c0_232, %c0_233] : memref<9x128x128xbf16, #tpu.memory_space<vmem>>, vector<1x128x128xbf16>
    %201 = vector.shape_cast %200 : vector<1x128x128xbf16> to vector<128x128xbf16>
    %cst_234 = arith.constant dense<0.000000e+00> : vector<64x128xf32>
    %202 = tpu.matmul %199, %201, %cst_234 {dimension_numbers = #tpu.dot_dimension_numbers<[1], [0], [0], [1], [0, 0, 1, 1], [], []>} : vector<64x128xbf16>, vector<128x128xbf16>, vector<64x128xf32> -> vector<64x128xf32>
    %203 = arith.addf %197, %202 : vector<64x128xf32>
    %c2_235 = arith.constant 2 : index
    %c1_236 = arith.constant 1 : index
    %c0_237 = arith.constant 0 : index
    %204 = vector.load %arg11[%c2_235, %c1_236, %c0_237] : memref<10x10x128xbf16, #tpu.memory_space<vmem>>, vector<8x8x128xbf16>
    %205 = vector.shape_cast %204 : vector<8x8x128xbf16> to vector<64x128xbf16>
    %c7_238 = arith.constant 7 : index
    %c0_239 = arith.constant 0 : index
    %c0_240 = arith.constant 0 : index
    %206 = vector.load %arg7[%c7_238, %c0_239, %c0_240] : memref<9x128x128xbf16, #tpu.memory_space<vmem>>, vector<1x128x128xbf16>
    %207 = vector.shape_cast %206 : vector<1x128x128xbf16> to vector<128x128xbf16>
    %cst_241 = arith.constant dense<0.000000e+00> : vector<64x128xf32>
    %208 = tpu.matmul %205, %207, %cst_241 {dimension_numbers = #tpu.dot_dimension_numbers<[1], [0], [0], [1], [0, 0, 1, 1], [], []>} : vector<64x128xbf16>, vector<128x128xbf16>, vector<64x128xf32> -> vector<64x128xf32>
    %209 = arith.addf %203, %208 : vector<64x128xf32>
    %c2_242 = arith.constant 2 : index
    %c2_243 = arith.constant 2 : index
    %c0_244 = arith.constant 0 : index
    %210 = vector.load %arg11[%c2_242, %c2_243, %c0_244] : memref<10x10x128xbf16, #tpu.memory_space<vmem>>, vector<8x8x128xbf16>
    %211 = vector.shape_cast %210 : vector<8x8x128xbf16> to vector<64x128xbf16>
    %c8_245 = arith.constant 8 : index
    %c0_246 = arith.constant 0 : index
    %c0_247 = arith.constant 0 : index
    %212 = vector.load %arg7[%c8_245, %c0_246, %c0_247] : memref<9x128x128xbf16, #tpu.memory_space<vmem>>, vector<1x128x128xbf16>
    %213 = vector.shape_cast %212 : vector<1x128x128xbf16> to vector<128x128xbf16>
    %cst_248 = arith.constant dense<0.000000e+00> : vector<64x128xf32>
    %214 = tpu.matmul %211, %213, %cst_248 {dimension_numbers = #tpu.dot_dimension_numbers<[1], [0], [0], [1], [0, 0, 1, 1], [], []>} : vector<64x128xbf16>, vector<128x128xbf16>, vector<64x128xf32> -> vector<64x128xf32>
    %215 = arith.addf %209, %214 : vector<64x128xf32>
    %c0_249 = arith.constant 0 : index
    %c1_250 = arith.constant 1 : index
    %c1_251 = arith.constant 1 : index
    %c0_252 = arith.constant 0 : index
    %c0_253 = arith.constant 0 : index
    %c0_254 = arith.constant 0 : index
    %216 = vector.load %arg1[%c0_249, %c1_250, %c1_251, %c0_252, %c0_253, %c0_254] : memref<1x2x2x9x9x128xf32, #tpu.memory_space<vmem>>, vector<1x1x1x8x8x128xf32>
    %217 = vector.shape_cast %216 : vector<1x1x1x8x8x128xf32> to vector<8x8x128xf32>
    %218 = vector.shape_cast %217 : vector<8x8x128xf32> to vector<64x128xf32>
    %219 = arith.truncf %218 : vector<64x128xf32> to vector<64x128xbf16>
    %c0_255 = arith.constant 0 : index
    %c0_256 = arith.constant 0 : index
    %220 = vector.load %arg8[%c0_255, %c0_256] : memref<128x128xbf16, #tpu.memory_space<vmem>>, vector<128x128xbf16>
    %cst_257 = arith.constant dense<0.000000e+00> : vector<64x128xf32>
    %221 = tpu.matmul %219, %220, %cst_257 {dimension_numbers = #tpu.dot_dimension_numbers<[1], [0], [0], [1], [0, 0, 1, 1], [], []>} : vector<64x128xbf16>, vector<128x128xbf16>, vector<64x128xf32> -> vector<64x128xf32>
    %222 = arith.addf %215, %221 : vector<64x128xf32>
    %223 = vector.shape_cast %222 : vector<64x128xf32> to vector<8x8x128xf32>
    %c0_258 = arith.constant 0 : index
    %c0_259 = arith.constant 0 : index
    %c0_260 = arith.constant 0 : index
    %c0_261 = arith.constant 0 : index
    %224 = vector.load %arg9[%c0_258, %c0_259, %c0_260, %c0_261] : memref<1x8x8x128xf32, #tpu.memory_space<vmem>>, vector<1x8x8x128xf32>
    %225 = vector.shape_cast %224 : vector<1x8x8x128xf32> to vector<8x8x128xf32>
    %226 = vector.shape_cast %223 : vector<8x8x128xf32> to vector<1x8x8x128xf32>
    tpu.vector_store %arg9[%c0_258, %c0_259, %c0_260, %c0_261], %226 {strides = array<i32>} : memref<1x8x8x128xf32, #tpu.memory_space<vmem>>, vector<1x8x8x128xf32>,
    return
  }
  func.func @transform_0(%arg0: i32) -> (i32, i32, i32, i32, i32, i32) {
    %c0_i32 = arith.constant 0 : i32
    %c0_i32_0 = arith.constant 0 : i32
    %c0_i32_1 = arith.constant 0 : i32
    %c0_i32_2 = arith.constant 0 : i32
    %c0_i32_3 = arith.constant 0 : i32
    %c0_i32_4 = arith.constant 0 : i32
    return %arg0, %c0_i32, %c0_i32_0, %c0_i32_1, %c0_i32_2, %c0_i32_3 : i32, i32, i32, i32, i32, i32
  }
  func.func @transform_1(%arg0: i32) -> (i32, i32) {
    %c0_i32 = arith.constant 0 : i32
    %c0_i32_0 = arith.constant 0 : i32
    %c0_i32_1 = arith.constant 0 : i32
    return %c0_i32, %c0_i32_0 : i32, i32
  }
  func.func @transform_2(%arg0: i32) -> (i32, i32) {
    %c0_i32 = arith.constant 0 : i32
    %c0_i32_0 = arith.constant 0 : i32
    %c0_i32_1 = arith.constant 0 : i32
    return %c0_i32, %c0_i32_0 : i32, i32
  }
  func.func @transform_3(%arg0: i32) -> (i32, i32, i32) {
    %c0_i32 = arith.constant 0 : i32
    %c0_i32_0 = arith.constant 0 : i32
    %c0_i32_1 = arith.constant 0 : i32
    %c0_i32_2 = arith.constant 0 : i32
    return %c0_i32, %c0_i32_0, %c0_i32_1 : i32, i32, i32
  }
  func.func @transform_4(%arg0: i32) -> (i32, i32) {
    %c0_i32 = arith.constant 0 : i32
    %c0_i32_0 = arith.constant 0 : i32
    %c0_i32_1 = arith.constant 0 : i32
    return %c0_i32, %c0_i32_0 : i32, i32
  }
  func.func @transform_5(%arg0: i32) -> (i32, i32) {
    %c0_i32 = arith.constant 0 : i32
    %c0_i32_0 = arith.constant 0 : i32
    %c0_i32_1 = arith.constant 0 : i32
    return %c0_i32, %c0_i32_0 : i32, i32
  }
  func.func @transform_6(%arg0: i32) -> (i32, i32, i32) {
    %c0_i32 = arith.constant 0 : i32
    %c0_i32_0 = arith.constant 0 : i32
    %c0_i32_1 = arith.constant 0 : i32
    %c0_i32_2 = arith.constant 0 : i32
    return %c0_i32, %c0_i32_0, %c0_i32_1 : i32, i32, i32
  }
  func.func @transform_7(%arg0: i32) -> (i32, i32) {
    %c0_i32 = arith.constant 0 : i32
    %c0_i32_0 = arith.constant 0 : i32
    %c0_i32_1 = arith.constant 0 : i32
    return %c0_i32, %c0_i32_0 : i32, i32
  }
  func.func @transform_8(%arg0: i32) -> (i32, i32, i32, i32) {
    %c0_i32 = arith.constant 0 : i32
    %c0_i32_0 = arith.constant 0 : i32
    %c0_i32_1 = arith.constant 0 : i32
    %c0_i32_2 = arith.constant 0 : i32
    return %arg0, %c0_i32, %c0_i32_0, %c0_i32_1 : i32, i32, i32, i32
  }
}

</mosaic_0001>

<llo_original>
// kernel: basic_block_forward.1
$region0: #{basic_block_forward.1}
  #allocation0 [shape = 'u32[]', space=smem, size = 0x4, offset = 0x4, fixed_abs, tag = 'smem constant byte address 0x4 - core index']
  #allocation1 [shape = 'u32[144,128]{1,0:T(1,128)}', space=vmem, size = 0x12000, scoped, tag = 'internal scratch']
  #allocation2 [shape = 'bf16[2,2,9,9,128]{4,3,2,1,0:T(8,128)(2,1)}', space=vmem, size = 0x24000, scoped, tag = 'scratch operand']
  #allocation3 [shape = 'bf16[10,10,128]{2,1,0:T(8,128)(2,1)}', space=vmem, size = 0xa000, scoped, tag = 'scratch operand']
  %s0 = inlined_call_operand.vmem [shape: f32[2,2,2,9,9,128], index: 0, kind: input, shape index: {}]
  %s1 = inlined_call_operand.vmem [shape: f32[1,128], index: 1, kind: input, shape index: {}]
  %s2 = inlined_call_operand.vmem [shape: f32[1,128], index: 2, kind: input, shape index: {}]
  %s3 = inlined_call_operand.vmem [shape: bf16[9,128,128], index: 3, kind: input, shape index: {}]
  %s4 = inlined_call_operand.vmem [shape: f32[1,128], index: 4, kind: input, shape index: {}]
  %s5 = inlined_call_operand.vmem [shape: f32[1,128], index: 5, kind: input, shape index: {}]
  %s6 = inlined_call_operand.vmem [shape: bf16[9,128,128], index: 6, kind: input, shape index: {}]
  %s7 = inlined_call_operand.vmem [shape: bf16[128,128], index: 7, kind: input, shape index: {}]
  %s8 = inlined_call_operand.vmem [shape: f32[2,8,8,128], index: 8, kind: output, shape index: {}]
  %s9 = sld [smem:[#allocation0]]
  $region65: #{basic_block_forward.1} parent=0
    _
  %s11 = ssub.s32 1, %s9
  %s12 = scalar_select 0, %s11, %s9
  loop: start=0, step=1, limit=4
  $region2: #{basic_block_forward.1} parent=0 // loop_pre_header
    _
  $region3: #{basic_block_forward.1} parent=0 // loop_header
    %s14 = sphi 0, %s18
    %p15 = scmp.ge.s32.totalorder %s14, 4
    %s24 = sphi 0, %s26
    %s27 = sphi 0, %s24
    %s28 = sphi 0, %s27
    %s44 = sphi 0, %s28
    %s48 = sphi 0, %s48
    %s50 = sphi 0, %s48
    %s51 = sphi 0, %s50
    %s65 = sphi 0, %s51
    %s69 = sphi 0, %s69
    %s71 = sphi 0, %s69
    %s72 = sphi 0, %s71
    %s86 = sphi 0, %s72
    %s90 = sphi 0, %s90
    %s92 = sphi 0, %s90
    %s93 = sphi 0, %s92
    %s107 = sphi 0, %s93
    %s111 = sphi 0, %s111
    %s113 = sphi 0, %s111
    %s114 = sphi 0, %s113
    %s128 = sphi 0, %s114
    %s132 = sphi 0, %s132
    %s134 = sphi 0, %s132
    %s135 = sphi 0, %s134
    %s149 = sphi 0, %s135
    %s153 = sphi 0, %s153
    %s155 = sphi 0, %s153
    %s156 = sphi 0, %s155
    %s170 = sphi 0, %s156
    %s174 = sphi 0, %s174
    %s176 = sphi 0, %s174
    %s177 = sphi 0, %s176
    %s191 = sphi 0, %s177
    %s197 = sphi 0, %s199
    %s200 = sphi 0, %s197
    %s201 = sphi 0, %s200
    %s217 = sphi 0, %s201
  $region4: #{basic_block_forward.1} parent=0 // loop_header_branch
    %17 = sbr.rel (%p15) target = $region8
  $region5: #{basic_block_forward.1} parent=0 // loop_body
    %s19 = ssub.s32 %s14, 1
    %s20 = ssub.s32 %s14, 2
    %s21 = sadd.s32 %s14, 1
    %s22 = ssub.s32 %s14, %s21
    %p23 = scmp.eq.s32.totalorder %s22, 0
    %s25 = sadd.s32 %s24, 1
    %s26 = scalar_select %p23, %s24, %s25
    %p29 = pneg %p23
    %p30 = scmp.eq.s32.totalorder %s14, 1
    %p31 = por %p29, %p30
    %p32 = scmp.ne.s32.totalorder %s24, %s27
    %p33 = scmp.eq.s32.totalorder %s14, 0
    %p34 = por %p32, %p33
    %p35 = scmp.ne.s32.totalorder %s24, %s27
    %p36 = scmp.eq.s32.totalorder %s19, 1
    %p37 = por %p35, %p36
    %p38 = scmp.ne.s32.totalorder %s27, %s28
    %p39 = scmp.eq.s32.totalorder %s19, 0
    %p40 = por %p38, %p39
    %p41 = scmp.ne.s32.totalorder %s27, %s28
    %p42 = scmp.eq.s32.totalorder %s20, 1
    %p43 = por %p41, %p42
    %p45 = scmp.ne.s32.totalorder %s28, %s44
    %p46 = scmp.eq.s32.totalorder %s20, 0
    %p47 = por %p45, %p46
    %s49 = sadd.s32 %s48, 1
    %p52 = scmp.eq.s32.totalorder %s14, 1
    %p53 = scmp.ne.s32.totalorder %s48, %s50
    %p54 = scmp.eq.s32.totalorder %s14, 0
    %p55 = por %p53, %p54
    %p56 = scmp.ne.s32.totalorder %s48, %s50
    %p57 = scmp.eq.s32.totalorder %s19, 1
    %p58 = por %p56, %p57
    %p59 = scmp.ne.s32.totalorder %s50, %s51
    %p60 = scmp.eq.s32.totalorder %s19, 0
    %p61 = por %p59, %p60
    %p62 = scmp.ne.s32.totalorder %s50, %s51
    %p63 = scmp.eq.s32.totalorder %s20, 1
    %p64 = por %p62, %p63
    %p66 = scmp.ne.s32.totalorder %s51, %s65
    %p67 = scmp.eq.s32.totalorder %s20, 0
    %p68 = por %p66, %p67
    %s70 = sadd.s32 %s69, 1
    %p73 = scmp.eq.s32.totalorder %s14, 1
    %p74 = scmp.ne.s32.totalorder %s69, %s71
    %p75 = scmp.eq.s32.totalorder %s14, 0
    %p76 = por %p74, %p75
    %p77 = scmp.ne.s32.totalorder %s69, %s71
    %p78 = scmp.eq.s32.totalorder %s19, 1
    %p79 = por %p77, %p78
    %p80 = scmp.ne.s32.totalorder %s71, %s72
    %p81 = scmp.eq.s32.totalorder %s19, 0
    %p82 = por %p80, %p81
    %p83 = scmp.ne.s32.totalorder %s71, %s72
    %p84 = scmp.eq.s32.totalorder %s20, 1
    %p85 = por %p83, %p84
    %p87 = scmp.ne.s32.totalorder %s72, %s86
    %p88 = scmp.eq.s32.totalorder %s20, 0
    %p89 = por %p87, %p88
    %s91 = sadd.s32 %s90, 1
    %p94 = scmp.eq.s32.totalorder %s14, 1
    %p95 = scmp.ne.s32.totalorder %s90, %s92
    %p96 = scmp.eq.s32.totalorder %s14, 0
    %p97 = por %p95, %p96
    %p98 = scmp.ne.s32.totalorder %s90, %s92
    %p99 = scmp.eq.s32.totalorder %s19, 1
    %p100 = por %p98, %p99
    %p101 = scmp.ne.s32.totalorder %s92, %s93
    %p102 = scmp.eq.s32.totalorder %s19, 0
    %p103 = por %p101, %p102
    %p104 = scmp.ne.s32.totalorder %s92, %s93
    %p105 = scmp.eq.s32.totalorder %s20, 1
    %p106 = por %p104, %p105
    %p108 = scmp.ne.s32.totalorder %s93, %s107
    %p109 = scmp.eq.s32.totalorder %s20, 0
    %p110 = por %p108, %p109
    %s112 = sadd.s32 %s111, 1
    %p115 = scmp.eq.s32.totalorder %s14, 1
    %p116 = scmp.ne.s32.totalorder %s111, %s113
    %p117 = scmp.eq.s32.totalorder %s14, 0
    %p118 = por %p116, %p117
    %p119 = scmp.ne.s32.totalorder %s111, %s113
    %p120 = scmp.eq.s32.totalorder %s19, 1
    %p121 = por %p119, %p120
    %p122 = scmp.ne.s32.totalorder %s113, %s114
    %p123 = scmp.eq.s32.totalorder %s19, 0
    %p124 = por %p122, %p123
    %p125 = scmp.ne.s32.totalorder %s113, %s114
    %p126 = scmp.eq.s32.totalorder %s20, 1
    %p127 = por %p125, %p126
    %p129 = scmp.ne.s32.totalorder %s114, %s128
    %p130 = scmp.eq.s32.totalorder %s20, 0
    %p131 = por %p129, %p130
    %s133 = sadd.s32 %s132, 1
    %p136 = scmp.eq.s32.totalorder %s14, 1
    %p137 = scmp.ne.s32.totalorder %s132, %s134
    %p138 = scmp.eq.s32.totalorder %s14, 0
    %p139 = por %p137, %p138
    %p140 = scmp.ne.s32.totalorder %s132, %s134
    %p141 = scmp.eq.s32.totalorder %s19, 1
    %p142 = por %p140, %p141
    %p143 = scmp.ne.s32.totalorder %s134, %s135
    %p144 = scmp.eq.s32.totalorder %s19, 0
    %p145 = por %p143, %p144
    %p146 = scmp.ne.s32.totalorder %s134, %s135
    %p147 = scmp.eq.s32.totalorder %s20, 1
    %p148 = por %p146, %p147
    %p150 = scmp.ne.s32.totalorder %s135, %s149
    %p151 = scmp.eq.s32.totalorder %s20, 0
    %p152 = por %p150, %p151
    %s154 = sadd.s32 %s153, 1
    %p157 = scmp.eq.s32.totalorder %s14, 1
    %p158 = scmp.ne.s32.totalorder %s153, %s155
    %p159 = scmp.eq.s32.totalorder %s14, 0
    %p160 = por %p158, %p159
    %p161 = scmp.ne.s32.totalorder %s153, %s155
    %p162 = scmp.eq.s32.totalorder %s19, 1
    %p163 = por %p161, %p162
    %p164 = scmp.ne.s32.totalorder %s155, %s156
    %p165 = scmp.eq.s32.totalorder %s19, 0
    %p166 = por %p164, %p165
    %p167 = scmp.ne.s32.totalorder %s155, %s156
    %p168 = scmp.eq.s32.totalorder %s20, 1
    %p169 = por %p167, %p168
    %p171 = scmp.ne.s32.totalorder %s156, %s170
    %p172 = scmp.eq.s32.totalorder %s20, 0
    %p173 = por %p171, %p172
    %s175 = sadd.s32 %s174, 1
    %p178 = scmp.eq.s32.totalorder %s14, 1
    %p179 = scmp.ne.s32.totalorder %s174, %s176
    %p180 = scmp.eq.s32.totalorder %s14, 0
    %p181 = por %p179, %p180
    %p182 = scmp.ne.s32.totalorder %s174, %s176
    %p183 = scmp.eq.s32.totalorder %s19, 1
    %p184 = por %p182, %p183
    %p185 = scmp.ne.s32.totalorder %s176, %s177
    %p186 = scmp.eq.s32.totalorder %s19, 0
    %p187 = por %p185, %p186
    %p188 = scmp.ne.s32.totalorder %s176, %s177
    %p189 = scmp.eq.s32.totalorder %s20, 1
    %p190 = por %p188, %p189
    %p192 = scmp.ne.s32.totalorder %s177, %s191
    %p193 = scmp.eq.s32.totalorder %s20, 0
    %p194 = por %p192, %p193
    %s195 = ssub.s32 %s14, %s21
    %p196 = scmp.eq.s32.totalorder %s195, 0
    %s198 = sadd.s32 %s197, 1
    %s199 = scalar_select %p196, %s197, %s198
    %p202 = pneg %p196
    %p203 = scmp.eq.s32.totalorder %s14, 1
    %p204 = por %p202, %p203
    %p205 = scmp.ne.s32.totalorder %s197, %s200
    %p206 = scmp.eq.s32.totalorder %s14, 0
    %p207 = por %p205, %p206
    %p208 = scmp.ne.s32.totalorder %s197, %s200
    %p209 = scmp.eq.s32.totalorder %s19, 1
    %p210 = por %p208, %p209
    %p211 = scmp.ne.s32.totalorder %s200, %s201
    %p212 = scmp.eq.s32.totalorder %s19, 0
    %p213 = por %p211, %p212
    %p214 = scmp.ne.s32.totalorder %s200, %s201
    %p215 = scmp.eq.s32.totalorder %s20, 1
    %p216 = por %p214, %p215
    %p218 = scmp.ne.s32.totalorder %s201, %s217
    %p219 = scmp.eq.s32.totalorder %s20, 0
    %p220 = por %p218, %p219
    %p221 = scmp.le.s32.totalorder 1, %s14
    %p222 = scmp.lt.s32.totalorder %s14, 3
    %p223 = pnand %p221, %p222
    %p224 = pneg %p223
    // Predicated region
    $region9: #{basic_block_forward.1} parent=5 // pred_check
      _
    $region10: #{basic_block_forward.1} parent=5 // pred_check_branch
      %226 = sbr.rel (%p223) target = $region12
    $region11: #{basic_block_forward.1} parent=5 // pred_region
      %s227 = ssub.s32 %s14, 1
      // Predicated region
      $region13: #{basic_block_forward.1} parent=11 // pred_check
        %p228 = pneg %p61
      $region14: #{basic_block_forward.1} parent=11 // pred_check_branch
        %230 = sbr.rel (%p228) target = $region16
      $region15: #{basic_block_forward.1} parent=11 // pred_region
        _
      $region16: #{basic_block_forward.1} parent=11 // pred_fallthru
        _
      // Predicated region
      $region17: #{basic_block_forward.1} parent=11 // pred_check
        %p231 = pneg %p82
      $region18: #{basic_block_forward.1} parent=11 // pred_check_branch
        %233 = sbr.rel (%p231) target = $region20
      $region19: #{basic_block_forward.1} parent=11 // pred_region
        _
      $region20: #{basic_block_forward.1} parent=11 // pred_fallthru
        _
      // Predicated region
      $region21: #{basic_block_forward.1} parent=11 // pred_check
        %p234 = pneg %p103
      $region22: #{basic_block_forward.1} parent=11 // pred_check_branch
        %236 = sbr.rel (%p234) target = $region24
      $region23: #{basic_block_forward.1} parent=11 // pred_region
        _
      $region24: #{basic_block_forward.1} parent=11 // pred_fallthru
        _
      // Predicated region
      $region25: #{basic_block_forward.1} parent=11 // pred_check
        %p237 = pneg %p124
      $region26: #{basic_block_forward.1} parent=11 // pred_check_branch
        %239 = sbr.rel (%p237) target = $region28
      $region27: #{basic_block_forward.1} parent=11 // pred_region
        _
      $region28: #{basic_block_forward.1} parent=11 // pred_fallthru
        _
      // Predicated region
      $region29: #{basic_block_forward.1} parent=11 // pred_check
        %p240 = pneg %p145
      $region30: #{basic_block_forward.1} parent=11 // pred_check_branch
        %242 = sbr.rel (%p240) target = $region32
      $region31: #{basic_block_forward.1} parent=11 // pred_region
        _
      $region32: #{basic_block_forward.1} parent=11 // pred_fallthru
        _
      // Predicated region
      $region33: #{basic_block_forward.1} parent=11 // pred_check
        %p243 = pneg %p166
      $region34: #{basic_block_forward.1} parent=11 // pred_check_branch
        %245 = sbr.rel (%p243) target = $region36
      $region35: #{basic_block_forward.1} parent=11 // pred_region
        _
      $region36: #{basic_block_forward.1} parent=11 // pred_fallthru
        _
      // Predicated region
      $region37: #{basic_block_forward.1} parent=11 // pred_check
        %p246 = pneg %p187
      $region38: #{basic_block_forward.1} parent=11 // pred_check_branch
        %248 = sbr.rel (%p246) target = $region40
      $region39: #{basic_block_forward.1} parent=11 // pred_region
        _
      $region40: #{basic_block_forward.1} parent=11 // pred_fallthru
        _
    $region12: #{basic_block_forward.1} parent=5 // pred_fallthru
      _
    %p249 = scmp.lt.s32.totalorder %s14, 2
    // Predicated region
    $region41: #{basic_block_forward.1} parent=5 // pred_check
      %p250 = pneg %p249
    $region42: #{basic_block_forward.1} parent=5 // pred_check_branch
      %252 = sbr.rel (%p250) target = $region44
    $region43: #{basic_block_forward.1} parent=5 // pred_region
      // Predicated region
      $region45: #{basic_block_forward.1} parent=43 // pred_check
        %p253 = pneg %p34
      $region46: #{basic_block_forward.1} parent=43 // pred_check_branch
        %255 = sbr.rel (%p253) target = $region48
      $region47: #{basic_block_forward.1} parent=43 // pred_region
        %p256 = scmp.lt.s32.totalorder %s14, 1
        %s257 = scalar_select %p256, %s14, 1
        %s258 = smul.addr %s257, 72
        %s259 = smul.addr %s258, 8
        %s260 = scalar_lea.vmem %s0, %s259
      $region48: #{basic_block_forward.1} parent=43 // pred_fallthru
        _
    $region44: #{basic_block_forward.1} parent=5 // pred_fallthru
      _
    %p261 = scmp.le.s32.totalorder 1, %s14
    %p262 = scmp.lt.s32.totalorder %s14, 3
    %p263 = pnand %p261, %p262
    %p264 = pneg %p263
    // Predicated region
    $region49: #{basic_block_forward.1} parent=5 // pred_check
      _
    $region50: #{basic_block_forward.1} parent=5 // pred_check_branch
      %266 = sbr.rel (%p263) target = $region52
    $region51: #{basic_block_forward.1} parent=5 // pred_region
      %s267 = ssub.s32 %s14, 1
      %p268 = scmp.lt.s32.totalorder %s19, 1
      %s269 = scalar_select %p268, %s19, 1
      %s270 = smul.addr %s269, 72
      %s271 = smul.addr %s270, 8
      %s272 = scalar_lea.vmem %s0, %s271
      %p273 = pneg %p40
      %p274 = pneg %p37
      %p275 = pneg %p61
      %p276 = pneg %p58
      %p277 = pneg %p82
      %p278 = pneg %p79
      %p279 = pneg %p103
      %p280 = pneg %p100
      %p281 = pneg %p124
      %p282 = pneg %p121
      %p283 = pneg %p145
      %p284 = pneg %p142
      %p285 = pneg %p166
      %p286 = pneg %p163
      %p287 = pneg %p187
      %p288 = pneg %p184
      %p289 = pneg %p213
      %p290 = pneg %p210
      %p291 = scmp.lt.s32.totalorder %s19, 1
      %s292 = scalar_select %p291, %s19, 1
      %s293 = smul.addr %s292, 8
      %s294 = smul.addr %s293, 8
      %s295 = scalar_lea.vmem %s8, %s294
      %p296 = scmp.lt.s32.totalorder %s19, 1
      %s297 = scalar_select %p296, %s19, 1
      %s298 = smul.addr %s297, 72
      %s299 = smul.addr %s298, 8
      %s300 = scalar_lea.vmem %s0, %s299
      %p301 = scmp.lt.s32.totalorder %s19, 1
      %s302 = scalar_select %p301, %s19, 1
      %s303 = smul.addr %s302, 8
      %s304 = smul.addr %s303, 8
      %s305 = scalar_lea.vmem %s8, %s304
      %v307 = vld [vmem:[%s1] sm:$0x1]
      %v308 = vld [vmem:[%s2] sm:$0x1]
      %v309 = vld [vmem:[%s300] sm:$0xff]
      %v310 = vld [vmem:[%s300 + $0x8] sm:$0x1]
      %v311 = vld [vmem:[%s300 + $0x10] sm:$0xff]
      %v312 = vld [vmem:[%s300 + $0x18] sm:$0x1]
      %v313 = vld [vmem:[%s300 + $0x20] sm:$0xff]
      %v314 = vld [vmem:[%s300 + $0x28] sm:$0x1]
      %v315 = vld [vmem:[%s300 + $0x30] sm:$0xff]
      %v316 = vld [vmem:[%s300 + $0x38] sm:$0x1]
      %v317 = vld [vmem:[%s300 + $0x40] sm:$0xff]
      %v318 = vld [vmem:[%s300 + $0x48] sm:$0x1]
      %v319 = vld [vmem:[%s300 + $0x50] sm:$0xff]
      %v320 = vld [vmem:[%s300 + $0x58] sm:$0x1]
      %v321 = vld [vmem:[%s300 + $0x60] sm:$0xff]
      %v322 = vld [vmem:[%s300 + $0x68] sm:$0x1]
      %v323 = vld [vmem:[%s300 + $0x70] sm:$0xff]
      %v324 = vld [vmem:[%s300 + $0x78] sm:$0x1]
      %v325 = vld [vmem:[%s300 + $0x80] sm:$0xff]
      %v326 = vld [vmem:[%s300 + $0x88] sm:$0x1]
      %v328 = vlaneseq
      %v329 = vshrl.u32 %v328, 7
      %v330 = vsub.s32 0, %v329
      %v331 = vrot.slane %v307, %v330
      %v333 = vmul.f32 %v309, %v331
      %v334 = vmul.f32 %v310, %v331
      %v335 = vmul.f32 %v311, %v331
      %v336 = vmul.f32 %v312, %v331
      %v337 = vmul.f32 %v313, %v331
      %v338 = vmul.f32 %v314, %v331
      %v339 = vmul.f32 %v315, %v331
      %v340 = vmul.f32 %v316, %v331
      %v341 = vmul.f32 %v317, %v331
      %v342 = vmul.f32 %v318, %v331
      %v343 = vmul.f32 %v319, %v331
      %v344 = vmul.f32 %v320, %v331
      %v345 = vmul.f32 %v321, %v331
      %v346 = vmul.f32 %v322, %v331
      %v347 = vmul.f32 %v323, %v331
      %v348 = vmul.f32 %v324, %v331
      %v349 = vmul.f32 %v325, %v331
      %v350 = vmul.f32 %v326, %v331
      %v352 = vlaneseq
      %v353 = vshrl.u32 %v352, 7
      %v354 = vsub.s32 0, %v353
      %v355 = vrot.slane %v308, %v354
      %v357 = vadd.f32 %v333, %v355
      %v358 = vadd.f32 %v334, %v355
      %v359 = vadd.f32 %v335, %v355
      %v360 = vadd.f32 %v336, %v355
      %v361 = vadd.f32 %v337, %v355
      %v362 = vadd.f32 %v338, %v355
      %v363 = vadd.f32 %v339, %v355
      %v364 = vadd.f32 %v340, %v355
      %v365 = vadd.f32 %v341, %v355
      %v366 = vadd.f32 %v342, %v355
      %v367 = vadd.f32 %v343, %v355
      %v368 = vadd.f32 %v344, %v355
      %v369 = vadd.f32 %v345, %v355
      %v370 = vadd.f32 %v346, %v355
      %v371 = vadd.f32 %v347, %v355
      %v372 = vadd.f32 %v348, %v355
      %v373 = vadd.f32 %v349, %v355
      %v374 = vadd.f32 %v350, %v355
      %v375 = vmax.f32 %v357, 0.0
      %v376 = vmax.f32 %v358, 0.0
      %v377 = vmax.f32 %v359, 0.0
      %v378 = vmax.f32 %v360, 0.0
      %v379 = vmax.f32 %v361, 0.0
      %v380 = vmax.f32 %v362, 0.0
      %v381 = vmax.f32 %v363, 0.0
      %v382 = vmax.f32 %v364, 0.0
      %v383 = vmax.f32 %v365, 0.0
      %v384 = vmax.f32 %v366, 0.0
      %v385 = vmax.f32 %v367, 0.0
      %v386 = vmax.f32 %v368, 0.0
      %v387 = vmax.f32 %v369, 0.0
      %v388 = vmax.f32 %v370, 0.0
      %v389 = vmax.f32 %v371, 0.0
      %v390 = vmax.f32 %v372, 0.0
      %v391 = vmax.f32 %v373, 0.0
      %v392 = vmax.f32 %v374, 0.0
      %v393 = vpack.c.bf16 %v376, %v375
      %v394 = vpack.c.bf16 %v378, %v377
      %v395 = vpack.c.bf16 %v380, %v379
      %v396 = vpack.c.bf16 %v382, %v381
      %v397 = vpack.c.bf16 %v384, %v383
      %v398 = vpack.c.bf16 %v386, %v385
      %v399 = vpack.c.bf16 %v388, %v387
      %v400 = vpack.c.bf16 %v390, %v389
      %v401 = vpack.c.bf16 %v392, %v391
      %v411 = vunpack.c.l.b16 %v393
      %v412 = vunpack.c.h.b16 %v393
      %v413 = vunpack.c.l.b16 %v394
      %v414 = vunpack.c.h.b16 %v394
      %v415 = vunpack.c.l.b16 %v395
      %v416 = vunpack.c.h.b16 %v395
      %v417 = vunpack.c.l.b16 %v396
      %v418 = vunpack.c.h.b16 %v396
      %v419 = vunpack.c.l.b16 %v397
      %v420 = vunpack.c.h.b16 %v397
      %v421 = vunpack.c.l.b16 %v398
      %v422 = vunpack.c.h.b16 %v398
      %v423 = vunpack.c.l.b16 %v399
      %v424 = vunpack.c.h.b16 %v399
      %v425 = vunpack.c.l.b16 %v400
      %v426 = vunpack.c.h.b16 %v400
      %v427 = vunpack.c.l.b16 %v401
      %v428 = vunpack.c.h.b16 %v401
      %v429 = vpack.c.b16 %v411, %v411
      %v430 = vpack.c.b16 %v412, %v412
      %v431 = vpack.c.b16 %v413, %v413
      %v432 = vpack.c.b16 %v414, %v414
      %v433 = vpack.c.b16 %v415, %v415
      %v434 = vpack.c.b16 %v416, %v416
      %v435 = vpack.c.b16 %v417, %v417
      %v436 = vpack.c.b16 %v418, %v418
      %v437 = vpack.c.b16 %v419, %v419
      %v438 = vpack.c.b16 %v420, %v420
      %v439 = vpack.c.b16 %v421, %v421
      %v440 = vpack.c.b16 %v422, %v422
      %v441 = vpack.c.b16 %v423, %v423
      %v442 = vpack.c.b16 %v424, %v424
      %v443 = vpack.c.b16 %v425, %v425
      %v444 = vpack.c.b16 %v426, %v426
      %v445 = vpack.c.b16 %v427, %v427
      %v446 = vpack.c.b16 %v428, %v428
      %465 = vst [vmem:[#allocation2] sm:$0xf] %v429
      %vm466 = vcmask 1040384
      %vm467 = vsmask.f32 256
      %vm468 = vmand %vm466, %vm467
      %v469 = vld [vmem:[#allocation2 + $0x4] sm:$0x1]
      %v470 = vsel %vm468, %v430, %v469
      %471 = vst [vmem:[#allocation2 + $0x4] sm:$0x1] %v470
      %472 = vst [vmem:[#allocation2 + $0x8] sm:$0xf] %v431
      %v473 = vld [vmem:[#allocation2 + $0xc] sm:$0x1]
      %v474 = vsel %vm468, %v432, %v473
      %475 = vst [vmem:[#allocation2 + $0xc] sm:$0x1] %v474
      %476 = vst [vmem:[#allocation2 + $0x10] sm:$0xf] %v433
      %v477 = vld [vmem:[#allocation2 + $0x14] sm:$0x1]
      %v478 = vsel %vm468, %v434, %v477
      %479 = vst [vmem:[#allocation2 + $0x14] sm:$0x1] %v478
      %480 = vst [vmem:[#allocation2 + $0x18] sm:$0xf] %v435
      %v481 = vld [vmem:[#allocation2 + $0x1c] sm:$0x1]
      %v482 = vsel %vm468, %v436, %v481
      %483 = vst [vmem:[#allocation2 + $0x1c] sm:$0x1] %v482
      %484 = vst [vmem:[#allocation2 + $0x20] sm:$0xf] %v437
      %v485 = vld [vmem:[#allocation2 + $0x24] sm:$0x1]
      %v486 = vsel %vm468, %v438, %v485
      %487 = vst [vmem:[#allocation2 + $0x24] sm:$0x1] %v486
      %488 = vst [vmem:[#allocation2 + $0x28] sm:$0xf] %v439
      %v489 = vld [vmem:[#allocation2 + $0x2c] sm:$0x1]
      %v490 = vsel %vm468, %v440, %v489
      %491 = vst [vmem:[#allocation2 + $0x2c] sm:$0x1] %v490
      %492 = vst [vmem:[#allocation2 + $0x30] sm:$0xf] %v441
      %v493 = vld [vmem:[#allocation2 + $0x34] sm:$0x1]
      %v494 = vsel %vm468, %v442, %v493
      %495 = vst [vmem:[#allocation2 + $0x34] sm:$0x1] %v494
      %496 = vst [vmem:[#allocation2 + $0x38] sm:$0xf] %v443
      %v497 = vld [vmem:[#allocation2 + $0x3c] sm:$0x1]
      %v498 = vsel %vm468, %v444, %v497
      %499 = vst [vmem:[#allocation2 + $0x3c] sm:$0x1] %v498
      %500 = vst [vmem:[#allocation2 + $0x40] sm:$0xf] %v445
      %v501 = vld [vmem:[#allocation2 + $0x44] sm:$0x1]
      %v502 = vsel %vm468, %v446, %v501
      %503 = vst [vmem:[#allocation2 + $0x44] sm:$0x1] %v502
      %s504 = scalar_lea.vmem %s300, 144
      %v505 = vld [vmem:[%s504] sm:$0xff]
      %v506 = vld [vmem:[%s504 + $0x8] sm:$0x1]
      %v507 = vld [vmem:[%s504 + $0x10] sm:$0xff]
      %v508 = vld [vmem:[%s504 + $0x18] sm:$0x1]
      %v509 = vld [vmem:[%s504 + $0x20] sm:$0xff]
      %v510 = vld [vmem:[%s504 + $0x28] sm:$0x1]
      %v511 = vld [vmem:[%s504 + $0x30] sm:$0xff]
      %v512 = vld [vmem:[%s504 + $0x38] sm:$0x1]
      %v513 = vld [vmem:[%s504 + $0x40] sm:$0xff]
      %v514 = vld [vmem:[%s504 + $0x48] sm:$0x1]
      %v515 = vld [vmem:[%s504 + $0x50] sm:$0xff]
      %v516 = vld [vmem:[%s504 + $0x58] sm:$0x1]
      %v517 = vld [vmem:[%s504 + $0x60] sm:$0xff]
      %v518 = vld [vmem:[%s504 + $0x68] sm:$0x1]
      %v519 = vld [vmem:[%s504 + $0x70] sm:$0xff]
      %v520 = vld [vmem:[%s504 + $0x78] sm:$0x1]
      %v521 = vld [vmem:[%s504 + $0x80] sm:$0xff]
      %v522 = vld [vmem:[%s504 + $0x88] sm:$0x1]
      %v523 = vmul.f32 %v505, %v331
      %v524 = vmul.f32 %v506, %v331
      %v525 = vmul.f32 %v507, %v331
      %v526 = vmul.f32 %v508, %v331
      %v527 = vmul.f32 %v509, %v331
      %v528 = vmul.f32 %v510, %v331
      %v529 = vmul.f32 %v511, %v331
      %v530 = vmul.f32 %v512, %v331
      %v531 = vmul.f32 %v513, %v331
      %v532 = vmul.f32 %v514, %v331
      %v533 = vmul.f32 %v515, %v331
      %v534 = vmul.f32 %v516, %v331
      %v535 = vmul.f32 %v517, %v331
      %v536 = vmul.f32 %v518, %v331
      %v537 = vmul.f32 %v519, %v331
      %v538 = vmul.f32 %v520, %v331
      %v539 = vmul.f32 %v521, %v331
      %v540 = vmul.f32 %v522, %v331
      %v541 = vadd.f32 %v523, %v355
      %v542 = vadd.f32 %v524, %v355
      %v543 = vadd.f32 %v525, %v355
      %v544 = vadd.f32 %v526, %v355
      %v545 = vadd.f32 %v527, %v355
      %v546 = vadd.f32 %v528, %v355
      %v547 = vadd.f32 %v529, %v355
      %v548 = vadd.f32 %v530, %v355
      %v549 = vadd.f32 %v531, %v355
      %v550 = vadd.f32 %v532, %v355
      %v551 = vadd.f32 %v533, %v355
      %v552 = vadd.f32 %v534, %v355
      %v553 = vadd.f32 %v535, %v355
      %v554 = vadd.f32 %v536, %v355
      %v555 = vadd.f32 %v537, %v355
      %v556 = vadd.f32 %v538, %v355
      %v557 = vadd.f32 %v539, %v355
      %v558 = vadd.f32 %v540, %v355
      %v559 = vmax.f32 %v541, 0.0
      %v560 = vmax.f32 %v542, 0.0
      %v561 = vmax.f32 %v543, 0.0
      %v562 = vmax.f32 %v544, 0.0
      %v563 = vmax.f32 %v545, 0.0
      %v564 = vmax.f32 %v546, 0.0
      %v565 = vmax.f32 %v547, 0.0
      %v566 = vmax.f32 %v548, 0.0
      %v567 = vmax.f32 %v549, 0.0
      %v568 = vmax.f32 %v550, 0.0
      %v569 = vmax.f32 %v551, 0.0
      %v570 = vmax.f32 %v552, 0.0
      %v571 = vmax.f32 %v553, 0.0
      %v572 = vmax.f32 %v554, 0.0
      %v573 = vmax.f32 %v555, 0.0
      %v574 = vmax.f32 %v556, 0.0
      %v575 = vmax.f32 %v557, 0.0
      %v576 = vmax.f32 %v558, 0.0
      %v577 = vpack.c.bf16 %v560, %v559
      %v578 = vpack.c.bf16 %v562, %v561
      %v579 = vpack.c.bf16 %v564, %v563
      %v580 = vpack.c.bf16 %v566, %v565
      %v581 = vpack.c.bf16 %v568, %v567
      %v582 = vpack.c.bf16 %v570, %v569
      %v583 = vpack.c.bf16 %v572, %v571
      %v584 = vpack.c.bf16 %v574, %v573
      %v585 = vpack.c.bf16 %v576, %v575
      %v595 = vunpack.c.l.b16 %v577
      %v596 = vunpack.c.h.b16 %v577
      %v597 = vunpack.c.l.b16 %v578
      %v598 = vunpack.c.h.b16 %v578
      %v599 = vunpack.c.l.b16 %v579
      %v600 = vunpack.c.h.b16 %v579
      %v601 = vunpack.c.l.b16 %v580
      %v602 = vunpack.c.h.b16 %v580
      %v603 = vunpack.c.l.b16 %v581
      %v604 = vunpack.c.h.b16 %v581
      %v605 = vunpack.c.l.b16 %v582
      %v606 = vunpack.c.h.b16 %v582
      %v607 = vunpack.c.l.b16 %v583
      %v608 = vunpack.c.h.b16 %v583
      %v609 = vunpack.c.l.b16 %v584
      %v610 = vunpack.c.h.b16 %v584
      %v611 = vunpack.c.l.b16 %v585
      %v612 = vunpack.c.h.b16 %v585
      %v613 = vpack.c.b16 %v595, %v595
      %v614 = vpack.c.b16 %v596, %v596
      %v615 = vpack.c.b16 %v597, %v597
      %v616 = vpack.c.b16 %v598, %v598
      %v617 = vpack.c.b16 %v599, %v599
      %v618 = vpack.c.b16 %v600, %v600
      %v619 = vpack.c.b16 %v601, %v601
      %v620 = vpack.c.b16 %v602, %v602
      %v621 = vpack.c.b16 %v603, %v603
      %v622 = vpack.c.b16 %v604, %v604
      %v623 = vpack.c.b16 %v605, %v605
      %v624 = vpack.c.b16 %v606, %v606
      %v625 = vpack.c.b16 %v607, %v607
      %v626 = vpack.c.b16 %v608, %v608
      %v627 = vpack.c.b16 %v609, %v609
      %v628 = vpack.c.b16 %v610, %v610
      %v629 = vpack.c.b16 %v611, %v611
      %v630 = vpack.c.b16 %v612, %v612
      %s649 = scalar_lea.vmem [#allocation2], 72
      %650 = vst [vmem:[%s649] sm:$0xf] %v613
      %v651 = vld [vmem:[%s649 + $0x4] sm:$0x1]
      %v652 = vsel %vm468, %v614, %v651
      %653 = vst [vmem:[%s649 + $0x4] sm:$0x1] %v652
      %654 = vst [vmem:[%s649 + $0x8] sm:$0xf] %v615
      %v655 = vld [vmem:[%s649 + $0xc] sm:$0x1]
      %v656 = vsel %vm468, %v616, %v655
      %657 = vst [vmem:[%s649 + $0xc] sm:$0x1] %v656
      %658 = vst [vmem:[%s649 + $0x10] sm:$0xf] %v617
      %v659 = vld [vmem:[%s649 + $0x14] sm:$0x1]
      %v660 = vsel %vm468, %v618, %v659
      %661 = vst [vmem:[%s649 + $0x14] sm:$0x1] %v660
      %662 = vst [vmem:[%s649 + $0x18] sm:$0xf] %v619
      %v663 = vld [vmem:[%s649 + $0x1c] sm:$0x1]
      %v664 = vsel %vm468, %v620, %v663
      %665 = vst [vmem:[%s649 + $0x1c] sm:$0x1] %v664
      %666 = vst [vmem:[%s649 + $0x20] sm:$0xf] %v621
      %v667 = vld [vmem:[%s649 + $0x24] sm:$0x1]
      %v668 = vsel %vm468, %v622, %v667
      %669 = vst [vmem:[%s649 + $0x24] sm:$0x1] %v668
      %670 = vst [vmem:[%s649 + $0x28] sm:$0xf] %v623
      %v671 = vld [vmem:[%s649 + $0x2c] sm:$0x1]
      %v672 = vsel %vm468, %v624, %v671
      %673 = vst [vmem:[%s649 + $0x2c] sm:$0x1] %v672
      %674 = vst [vmem:[%s649 + $0x30] sm:$0xf] %v625
      %v675 = vld [vmem:[%s649 + $0x34] sm:$0x1]
      %v676 = vsel %vm468, %v626, %v675
      %677 = vst [vmem:[%s649 + $0x34] sm:$0x1] %v676
      %678 = vst [vmem:[%s649 + $0x38] sm:$0xf] %v627
      %v679 = vld [vmem:[%s649 + $0x3c] sm:$0x1]
      %v680 = vsel %vm468, %v628, %v679
      %681 = vst [vmem:[%s649 + $0x3c] sm:$0x1] %v680
      %682 = vst [vmem:[%s649 + $0x40] sm:$0xf] %v629
      %v683 = vld [vmem:[%s649 + $0x44] sm:$0x1]
      %v684 = vsel %vm468, %v630, %v683
      %685 = vst [vmem:[%s649 + $0x44] sm:$0x1] %v684
      %s686 = scalar_lea.vmem %s300, 288
      %v687 = vld [vmem:[%s686] sm:$0xff]
      %v688 = vld [vmem:[%s686 + $0x8] sm:$0x1]
      %v689 = vld [vmem:[%s686 + $0x10] sm:$0xff]
      %v690 = vld [vmem:[%s686 + $0x18] sm:$0x1]
      %v691 = vld [vmem:[%s686 + $0x20] sm:$0xff]
      %v692 = vld [vmem:[%s686 + $0x28] sm:$0x1]
      %v693 = vld [vmem:[%s686 + $0x30] sm:$0xff]
      %v694 = vld [vmem:[%s686 + $0x38] sm:$0x1]
      %v695 = vld [vmem:[%s686 + $0x40] sm:$0xff]
      %v696 = vld [vmem:[%s686 + $0x48] sm:$0x1]
      %v697 = vld [vmem:[%s686 + $0x50] sm:$0xff]
      %v698 = vld [vmem:[%s686 + $0x58] sm:$0x1]
      %v699 = vld [vmem:[%s686 + $0x60] sm:$0xff]
      %v700 = vld [vmem:[%s686 + $0x68] sm:$0x1]
      %v701 = vld [vmem:[%s686 + $0x70] sm:$0xff]
      %v702 = vld [vmem:[%s686 + $0x78] sm:$0x1]
      %v703 = vld [vmem:[%s686 + $0x80] sm:$0xff]
      %v704 = vld [vmem:[%s686 + $0x88] sm:$0x1]
      %v705 = vmul.f32 %v687, %v331
      %v706 = vmul.f32 %v688, %v331
      %v707 = vmul.f32 %v689, %v331
      %v708 = vmul.f32 %v690, %v331
      %v709 = vmul.f32 %v691, %v331
      %v710 = vmul.f32 %v692, %v331
      %v711 = vmul.f32 %v693, %v331
      %v712 = vmul.f32 %v694, %v331
      %v713 = vmul.f32 %v695, %v331
      %v714 = vmul.f32 %v696, %v331
      %v715 = vmul.f32 %v697, %v331
      %v716 = vmul.f32 %v698, %v331
      %v717 = vmul.f32 %v699, %v331
      %v718 = vmul.f32 %v700, %v331
      %v719 = vmul.f32 %v701, %v331
      %v720 = vmul.f32 %v702, %v331
      %v721 = vmul.f32 %v703, %v331
      %v722 = vmul.f32 %v704, %v331
      %v723 = vadd.f32 %v705, %v355
      %v724 = vadd.f32 %v706, %v355
      %v725 = vadd.f32 %v707, %v355
      %v726 = vadd.f32 %v708, %v355
      %v727 = vadd.f32 %v709, %v355
      %v728 = vadd.f32 %v710, %v355
      %v729 = vadd.f32 %v711, %v355
      %v730 = vadd.f32 %v712, %v355
      %v731 = vadd.f32 %v713, %v355
      %v732 = vadd.f32 %v714, %v355
      %v733 = vadd.f32 %v715, %v355
      %v734 = vadd.f32 %v716, %v355
      %v735 = vadd.f32 %v717, %v355
      %v736 = vadd.f32 %v718, %v355
      %v737 = vadd.f32 %v719, %v355
      %v738 = vadd.f32 %v720, %v355
      %v739 = vadd.f32 %v721, %v355
      %v740 = vadd.f32 %v722, %v355
      %v741 = vmax.f32 %v723, 0.0
      %v742 = vmax.f32 %v724, 0.0
      %v743 = vmax.f32 %v725, 0.0
      %v744 = vmax.f32 %v726, 0.0
      %v745 = vmax.f32 %v727, 0.0
      %v746 = vmax.f32 %v728, 0.0
      %v747 = vmax.f32 %v729, 0.0
      %v748 = vmax.f32 %v730, 0.0
      %v749 = vmax.f32 %v731, 0.0
      %v750 = vmax.f32 %v732, 0.0
      %v751 = vmax.f32 %v733, 0.0
      %v752 = vmax.f32 %v734, 0.0
      %v753 = vmax.f32 %v735, 0.0
      %v754 = vmax.f32 %v736, 0.0
      %v755 = vmax.f32 %v737, 0.0
      %v756 = vmax.f32 %v738, 0.0
      %v757 = vmax.f32 %v739, 0.0
      %v758 = vmax.f32 %v740, 0.0
      %v759 = vpack.c.bf16 %v742, %v741
      %v760 = vpack.c.bf16 %v744, %v743
      %v761 = vpack.c.bf16 %v746, %v745
      %v762 = vpack.c.bf16 %v748, %v747
      %v763 = vpack.c.bf16 %v750, %v749
      %v764 = vpack.c.bf16 %v752, %v751
      %v765 = vpack.c.bf16 %v754, %v753
      %v766 = vpack.c.bf16 %v756, %v755
      %v767 = vpack.c.bf16 %v758, %v757
      %v777 = vunpack.c.l.b16 %v759
      %v778 = vunpack.c.h.b16 %v759
      %v779 = vunpack.c.l.b16 %v760
      %v780 = vunpack.c.h.b16 %v760
      %v781 = vunpack.c.l.b16 %v761
      %v782 = vunpack.c.h.b16 %v761
      %v783 = vunpack.c.l.b16 %v762
      %v784 = vunpack.c.h.b16 %v762
      %v785 = vunpack.c.l.b16 %v763
      %v786 = vunpack.c.h.b16 %v763
      %v787 = vunpack.c.l.b16 %v764
      %v788 = vunpack.c.h.b16 %v764
      %v789 = vunpack.c.l.b16 %v765
      %v790 = vunpack.c.h.b16 %v765
      %v791 = vunpack.c.l.b16 %v766
      %v792 = vunpack.c.h.b16 %v766
      %v793 = vunpack.c.l.b16 %v767
      %v794 = vunpack.c.h.b16 %v767
      %v795 = vpack.c.b16 %v777, %v777
      %v796 = vpack.c.b16 %v778, %v778
      %v797 = vpack.c.b16 %v779, %v779
      %v798 = vpack.c.b16 %v780, %v780
      %v799 = vpack.c.b16 %v781, %v781
      %v800 = vpack.c.b16 %v782, %v782
      %v801 = vpack.c.b16 %v783, %v783
      %v802 = vpack.c.b16 %v784, %v784
      %v803 = vpack.c.b16 %v785, %v785
      %v804 = vpack.c.b16 %v786, %v786
      %v805 = vpack.c.b16 %v787, %v787
      %v806 = vpack.c.b16 %v788, %v788
      %v807 = vpack.c.b16 %v789, %v789
      %v808 = vpack.c.b16 %v790, %v790
      %v809 = vpack.c.b16 %v791, %v791
      %v810 = vpack.c.b16 %v792, %v792
      %v811 = vpack.c.b16 %v793, %v793
      %v812 = vpack.c.b16 %v794, %v794
      %s831 = scalar_lea.vmem [#allocation2], 144
      %832 = vst [vmem:[%s831] sm:$0xf] %v795
      %v833 = vld [vmem:[%s831 + $0x4] sm:$0x1]
      %v834 = vsel %vm468, %v796, %v833
      %835 = vst [vmem:[%s831 + $0x4] sm:$0x1] %v834
      %836 = vst [vmem:[%s831 + $0x8] sm:$0xf] %v797
      %v837 = vld [vmem:[%s831 + $0xc] sm:$0x1]
      %v838 = vsel %vm468, %v798, %v837
      %839 = vst [vmem:[%s831 + $0xc] sm:$0x1] %v838
      %840 = vst [vmem:[%s831 + $0x10] sm:$0xf] %v799
      %v841 = vld [vmem:[%s831 + $0x14] sm:$0x1]
      %v842 = vsel %vm468, %v800, %v841
      %843 = vst [vmem:[%s831 + $0x14] sm:$0x1] %v842
      %844 = vst [vmem:[%s831 + $0x18] sm:$0xf] %v801
      %v845 = vld [vmem:[%s831 + $0x1c] sm:$0x1]
      %v846 = vsel %vm468, %v802, %v845
      %847 = vst [vmem:[%s831 + $0x1c] sm:$0x1] %v846
      %848 = vst [vmem:[%s831 + $0x20] sm:$0xf] %v803
      %v849 = vld [vmem:[%s831 + $0x24] sm:$0x1]
      %v850 = vsel %vm468, %v804, %v849
      %851 = vst [vmem:[%s831 + $0x24] sm:$0x1] %v850
      %852 = vst [vmem:[%s831 + $0x28] sm:$0xf] %v805
      %v853 = vld [vmem:[%s831 + $0x2c] sm:$0x1]
      %v854 = vsel %vm468, %v806, %v853
      %855 = vst [vmem:[%s831 + $0x2c] sm:$0x1] %v854
      %856 = vst [vmem:[%s831 + $0x30] sm:$0xf] %v807
      %v857 = vld [vmem:[%s831 + $0x34] sm:$0x1]
      %v858 = vsel %vm468, %v808, %v857
      %859 = vst [vmem:[%s831 + $0x34] sm:$0x1] %v858
      %860 = vst [vmem:[%s831 + $0x38] sm:$0xf] %v809
      %v861 = vld [vmem:[%s831 + $0x3c] sm:$0x1]
      %v862 = vsel %vm468, %v810, %v861
      %863 = vst [vmem:[%s831 + $0x3c] sm:$0x1] %v862
      %864 = vst [vmem:[%s831 + $0x40] sm:$0xf] %v811
      %v865 = vld [vmem:[%s831 + $0x44] sm:$0x1]
      %v866 = vsel %vm468, %v812, %v865
      %867 = vst [vmem:[%s831 + $0x44] sm:$0x1] %v866
      %s868 = scalar_lea.vmem %s300, 432
      %v869 = vld [vmem:[%s868] sm:$0xff]
      %v870 = vld [vmem:[%s868 + $0x8] sm:$0x1]
      %v871 = vld [vmem:[%s868 + $0x10] sm:$0xff]
      %v872 = vld [vmem:[%s868 + $0x18] sm:$0x1]
      %v873 = vld [vmem:[%s868 + $0x20] sm:$0xff]
      %v874 = vld [vmem:[%s868 + $0x28] sm:$0x1]
      %v875 = vld [vmem:[%s868 + $0x30] sm:$0xff]
      %v876 = vld [vmem:[%s868 + $0x38] sm:$0x1]
      %v877 = vld [vmem:[%s868 + $0x40] sm:$0xff]
      %v878 = vld [vmem:[%s868 + $0x48] sm:$0x1]
      %v879 = vld [vmem:[%s868 + $0x50] sm:$0xff]
      %v880 = vld [vmem:[%s868 + $0x58] sm:$0x1]
      %v881 = vld [vmem:[%s868 + $0x60] sm:$0xff]
      %v882 = vld [vmem:[%s868 + $0x68] sm:$0x1]
      %v883 = vld [vmem:[%s868 + $0x70] sm:$0xff]
      %v884 = vld [vmem:[%s868 + $0x78] sm:$0x1]
      %v885 = vld [vmem:[%s868 + $0x80] sm:$0xff]
      %v886 = vld [vmem:[%s868 + $0x88] sm:$0x1]
      %v887 = vmul.f32 %v869, %v331
      %v888 = vmul.f32 %v870, %v331
      %v889 = vmul.f32 %v871, %v331
      %v890 = vmul.f32 %v872, %v331
      %v891 = vmul.f32 %v873, %v331
      %v892 = vmul.f32 %v874, %v331
      %v893 = vmul.f32 %v875, %v331
      %v894 = vmul.f32 %v876, %v331
      %v895 = vmul.f32 %v877, %v331
      %v896 = vmul.f32 %v878, %v331
      %v897 = vmul.f32 %v879, %v331
      %v898 = vmul.f32 %v880, %v331
      %v899 = vmul.f32 %v881, %v331
      %v900 = vmul.f32 %v882, %v331
      %v901 = vmul.f32 %v883, %v331
      %v902 = vmul.f32 %v884, %v331
      %v903 = vmul.f32 %v885, %v331
      %v904 = vmul.f32 %v886, %v331
      %v905 = vadd.f32 %v887, %v355
      %v906 = vadd.f32 %v888, %v355
      %v907 = vadd.f32 %v889, %v355
      %v908 = vadd.f32 %v890, %v355
      %v909 = vadd.f32 %v891, %v355
      %v910 = vadd.f32 %v892, %v355
      %v911 = vadd.f32 %v893, %v355
      %v912 = vadd.f32 %v894, %v355
      %v913 = vadd.f32 %v895, %v355
      %v914 = vadd.f32 %v896, %v355
      %v915 = vadd.f32 %v897, %v355
      %v916 = vadd.f32 %v898, %v355
      %v917 = vadd.f32 %v899, %v355
      %v918 = vadd.f32 %v900, %v355
      %v919 = vadd.f32 %v901, %v355
      %v920 = vadd.f32 %v902, %v355
      %v921 = vadd.f32 %v903, %v355
      %v922 = vadd.f32 %v904, %v355
      %v923 = vmax.f32 %v905, 0.0
      %v924 = vmax.f32 %v906, 0.0
      %v925 = vmax.f32 %v907, 0.0
      %v926 = vmax.f32 %v908, 0.0
      %v927 = vmax.f32 %v909, 0.0
      %v928 = vmax.f32 %v910, 0.0
      %v929 = vmax.f32 %v911, 0.0
      %v930 = vmax.f32 %v912, 0.0
      %v931 = vmax.f32 %v913, 0.0
      %v932 = vmax.f32 %v914, 0.0
      %v933 = vmax.f32 %v915, 0.0
      %v934 = vmax.f32 %v916, 0.0
      %v935 = vmax.f32 %v917, 0.0
      %v936 = vmax.f32 %v918, 0.0
      %v937 = vmax.f32 %v919, 0.0
      %v938 = vmax.f32 %v920, 0.0
      %v939 = vmax.f32 %v921, 0.0
      %v940 = vmax.f32 %v922, 0.0
      %v941 = vpack.c.bf16 %v924, %v923
      %v942 = vpack.c.bf16 %v926, %v925
      %v943 = vpack.c.bf16 %v928, %v927
      %v944 = vpack.c.bf16 %v930, %v929
      %v945 = vpack.c.bf16 %v932, %v931
      %v946 = vpack.c.bf16 %v934, %v933
      %v947 = vpack.c.bf16 %v936, %v935
      %v948 = vpack.c.bf16 %v938, %v937
      %v949 = vpack.c.bf16 %v940, %v939
      %v959 = vunpack.c.l.b16 %v941
      %v960 = vunpack.c.h.b16 %v941
      %v961 = vunpack.c.l.b16 %v942
      %v962 = vunpack.c.h.b16 %v942
      %v963 = vunpack.c.l.b16 %v943
      %v964 = vunpack.c.h.b16 %v943
      %v965 = vunpack.c.l.b16 %v944
      %v966 = vunpack.c.h.b16 %v944
      %v967 = vunpack.c.l.b16 %v945
      %v968 = vunpack.c.h.b16 %v945
      %v969 = vunpack.c.l.b16 %v946
      %v970 = vunpack.c.h.b16 %v946
      %v971 = vunpack.c.l.b16 %v947
      %v972 = vunpack.c.h.b16 %v947
      %v973 = vunpack.c.l.b16 %v948
      %v974 = vunpack.c.h.b16 %v948
      %v975 = vunpack.c.l.b16 %v949
      %v976 = vunpack.c.h.b16 %v949
      %v977 = vpack.c.b16 %v959, %v959
      %v978 = vpack.c.b16 %v960, %v960
      %v979 = vpack.c.b16 %v961, %v961
      %v980 = vpack.c.b16 %v962, %v962
      %v981 = vpack.c.b16 %v963, %v963
      %v982 = vpack.c.b16 %v964, %v964
      %v983 = vpack.c.b16 %v965, %v965
      %v984 = vpack.c.b16 %v966, %v966
      %v985 = vpack.c.b16 %v967, %v967
      %v986 = vpack.c.b16 %v968, %v968
      %v987 = vpack.c.b16 %v969, %v969
      %v988 = vpack.c.b16 %v970, %v970
      %v989 = vpack.c.b16 %v971, %v971
      %v990 = vpack.c.b16 %v972, %v972
      %v991 = vpack.c.b16 %v973, %v973
      %v992 = vpack.c.b16 %v974, %v974
      %v993 = vpack.c.b16 %v975, %v975
      %v994 = vpack.c.b16 %v976, %v976
      %s1013 = scalar_lea.vmem [#allocation2], 216
      %1014 = vst [vmem:[%s1013] sm:$0xf] %v977
      %v1015 = vld [vmem:[%s1013 + $0x4] sm:$0x1]
      %v1016 = vsel %vm468, %v978, %v1015
      %1017 = vst [vmem:[%s1013 + $0x4] sm:$0x1] %v1016
      %1018 = vst [vmem:[%s1013 + $0x8] sm:$0xf] %v979
      %v1019 = vld [vmem:[%s1013 + $0xc] sm:$0x1]
      %v1020 = vsel %vm468, %v980, %v1019
      %1021 = vst [vmem:[%s1013 + $0xc] sm:$0x1] %v1020
      %1022 = vst [vmem:[%s1013 + $0x10] sm:$0xf] %v981
      %v1023 = vld [vmem:[%s1013 + $0x14] sm:$0x1]
      %v1024 = vsel %vm468, %v982, %v1023
      %1025 = vst [vmem:[%s1013 + $0x14] sm:$0x1] %v1024
      %1026 = vst [vmem:[%s1013 + $0x18] sm:$0xf] %v983
      %v1027 = vld [vmem:[%s1013 + $0x1c] sm:$0x1]
      %v1028 = vsel %vm468, %v984, %v1027
      %1029 = vst [vmem:[%s1013 + $0x1c] sm:$0x1] %v1028
      %1030 = vst [vmem:[%s1013 + $0x20] sm:$0xf] %v985
      %v1031 = vld [vmem:[%s1013 + $0x24] sm:$0x1]
      %v1032 = vsel %vm468, %v986, %v1031
      %1033 = vst [vmem:[%s1013 + $0x24] sm:$0x1] %v1032
      %1034 = vst [vmem:[%s1013 + $0x28] sm:$0xf] %v987
      %v1035 = vld [vmem:[%s1013 + $0x2c] sm:$0x1]
      %v1036 = vsel %vm468, %v988, %v1035
      %1037 = vst [vmem:[%s1013 + $0x2c] sm:$0x1] %v1036
      %1038 = vst [vmem:[%s1013 + $0x30] sm:$0xf] %v989
      %v1039 = vld [vmem:[%s1013 + $0x34] sm:$0x1]
      %v1040 = vsel %vm468, %v990, %v1039
      %1041 = vst [vmem:[%s1013 + $0x34] sm:$0x1] %v1040
      %1042 = vst [vmem:[%s1013 + $0x38] sm:$0xf] %v991
      %v1043 = vld [vmem:[%s1013 + $0x3c] sm:$0x1]
      %v1044 = vsel %vm468, %v992, %v1043
      %1045 = vst [vmem:[%s1013 + $0x3c] sm:$0x1] %v1044
      %1046 = vst [vmem:[%s1013 + $0x40] sm:$0xf] %v993
      %v1047 = vld [vmem:[%s1013 + $0x44] sm:$0x1]
      %v1048 = vsel %vm468, %v994, %v1047
      %1049 = vst [vmem:[%s1013 + $0x44] sm:$0x1] %v1048
      %1050 = vst [vmem:[#allocation2] sm:$0xf] 0
      %v1051 = vld [vmem:[#allocation2 + $0x4] sm:$0x1]
      %v1052 = vsel %vm468, 0, %v1051
      %1053 = vst [vmem:[#allocation2 + $0x4] sm:$0x1] %v1052
      %s1054 = scalar_lea.vmem [#allocation2], 208
      %1055 = vst [vmem:[%s1054] sm:$0xf] 0
      %v1056 = vld [vmem:[%s1054 + $0x4] sm:$0x1]
      %v1057 = vsel %vm468, 0, %v1056
      %1058 = vst [vmem:[%s1054 + $0x4] sm:$0x1] %v1057
      %1059 = vst [vmem:[%s649] sm:$0xf] 0
      %v1060 = vld [vmem:[%s649 + $0x4] sm:$0x1]
      %v1061 = vsel %vm468, 0, %v1060
      %1062 = vst [vmem:[%s649 + $0x4] sm:$0x1] %v1061
      %s1063 = scalar_lea.vmem [#allocation2], 280
      %1064 = vst [vmem:[%s1063] sm:$0xf] 0
      %v1065 = vld [vmem:[%s1063 + $0x4] sm:$0x1]
      %v1066 = vsel %vm468, 0, %v1065
      %1067 = vst [vmem:[%s1063 + $0x4] sm:$0x1] %v1066
      %v1068 = vld [vmem:[#allocation2] sm:$0x1]
      %v1069 = vsel %vm468, 0, %v1068
      %1070 = vst [vmem:[#allocation2] sm:$0x1] %v1069
      %v1071 = vld [vmem:[#allocation2 + $0x8] sm:$0x1]
      %v1072 = vsel %vm468, 0, %v1071
      %1073 = vst [vmem:[#allocation2 + $0x8] sm:$0x1] %v1072
      %v1074 = vld [vmem:[#allocation2 + $0x10] sm:$0x1]
      %v1075 = vsel %vm468, 0, %v1074
      %1076 = vst [vmem:[#allocation2 + $0x10] sm:$0x1] %v1075
      %v1077 = vld [vmem:[#allocation2 + $0x18] sm:$0x1]
      %v1078 = vsel %vm468, 0, %v1077
      %1079 = vst [vmem:[#allocation2 + $0x18] sm:$0x1] %v1078
      %v1080 = vld [vmem:[#allocation2 + $0x20] sm:$0x1]
      %v1081 = vsel %vm468, 0, %v1080
      %1082 = vst [vmem:[#allocation2 + $0x20] sm:$0x1] %v1081
      %v1083 = vld [vmem:[#allocation2 + $0x28] sm:$0x1]
      %v1084 = vsel %vm468, 0, %v1083
      %1085 = vst [vmem:[#allocation2 + $0x28] sm:$0x1] %v1084
      %v1086 = vld [vmem:[#allocation2 + $0x30] sm:$0x1]
      %v1087 = vsel %vm468, 0, %v1086
      %1088 = vst [vmem:[#allocation2 + $0x30] sm:$0x1] %v1087
      %v1089 = vld [vmem:[#allocation2 + $0x38] sm:$0x1]
      %v1090 = vsel %vm468, 0, %v1089
      %1091 = vst [vmem:[#allocation2 + $0x38] sm:$0x1] %v1090
      %v1092 = vld [vmem:[#allocation2 + $0x40] sm:$0x1]
      %v1093 = vsel %vm468, 0, %v1092
      %1094 = vst [vmem:[#allocation2 + $0x40] sm:$0x1] %v1093
      %v1095 = vld [vmem:[%s649 + $0x4] sm:$0x1]
      %v1096 = vsel %vm468, 0, %v1095
      %1097 = vst [vmem:[%s649 + $0x4] sm:$0x1] %v1096
      %v1098 = vld [vmem:[%s649 + $0xc] sm:$0x1]
      %v1099 = vsel %vm468, 0, %v1098
      %1100 = vst [vmem:[%s649 + $0xc] sm:$0x1] %v1099
      %v1101 = vld [vmem:[%s649 + $0x14] sm:$0x1]
      %v1102 = vsel %vm468, 0, %v1101
      %1103 = vst [vmem:[%s649 + $0x14] sm:$0x1] %v1102
      %v1104 = vld [vmem:[%s649 + $0x1c] sm:$0x1]
      %v1105 = vsel %vm468, 0, %v1104
      %1106 = vst [vmem:[%s649 + $0x1c] sm:$0x1] %v1105
      %v1107 = vld [vmem:[%s649 + $0x24] sm:$0x1]
      %v1108 = vsel %vm468, 0, %v1107
      %1109 = vst [vmem:[%s649 + $0x24] sm:$0x1] %v1108
      %v1110 = vld [vmem:[%s649 + $0x2c] sm:$0x1]
      %v1111 = vsel %vm468, 0, %v1110
      %1112 = vst [vmem:[%s649 + $0x2c] sm:$0x1] %v1111
      %v1113 = vld [vmem:[%s649 + $0x34] sm:$0x1]
      %v1114 = vsel %vm468, 0, %v1113
      %1115 = vst [vmem:[%s649 + $0x34] sm:$0x1] %v1114
      %v1116 = vld [vmem:[%s649 + $0x3c] sm:$0x1]
      %v1117 = vsel %vm468, 0, %v1116
      %1118 = vst [vmem:[%s649 + $0x3c] sm:$0x1] %v1117
      %v1119 = vld [vmem:[%s649 + $0x44] sm:$0x1]
      %v1120 = vsel %vm468, 0, %v1119
      %1121 = vst [vmem:[%s649 + $0x44] sm:$0x1] %v1120
      %v1122 = vld [vmem:[%s831] sm:$0x1]
      %v1123 = vsel %vm468, 0, %v1122
      %1124 = vst [vmem:[%s831] sm:$0x1] %v1123
      %v1125 = vld [vmem:[%s831 + $0x8] sm:$0x1]
      %v1126 = vsel %vm468, 0, %v1125
      %1127 = vst [vmem:[%s831 + $0x8] sm:$0x1] %v1126
      %v1128 = vld [vmem:[%s831 + $0x10] sm:$0x1]
      %v1129 = vsel %vm468, 0, %v1128
      %1130 = vst [vmem:[%s831 + $0x10] sm:$0x1] %v1129
      %v1131 = vld [vmem:[%s831 + $0x18] sm:$0x1]
      %v1132 = vsel %vm468, 0, %v1131
      %1133 = vst [vmem:[%s831 + $0x18] sm:$0x1] %v1132
      %v1134 = vld [vmem:[%s831 + $0x20] sm:$0x1]
      %v1135 = vsel %vm468, 0, %v1134
      %1136 = vst [vmem:[%s831 + $0x20] sm:$0x1] %v1135
      %v1137 = vld [vmem:[%s831 + $0x28] sm:$0x1]
      %v1138 = vsel %vm468, 0, %v1137
      %1139 = vst [vmem:[%s831 + $0x28] sm:$0x1] %v1138
      %v1140 = vld [vmem:[%s831 + $0x30] sm:$0x1]
      %v1141 = vsel %vm468, 0, %v1140
      %1142 = vst [vmem:[%s831 + $0x30] sm:$0x1] %v1141
      %v1143 = vld [vmem:[%s831 + $0x38] sm:$0x1]
      %v1144 = vsel %vm468, 0, %v1143
      %1145 = vst [vmem:[%s831 + $0x38] sm:$0x1] %v1144
      %v1146 = vld [vmem:[%s831 + $0x40] sm:$0x1]
      %v1147 = vsel %vm468, 0, %v1146
      %1148 = vst [vmem:[%s831 + $0x40] sm:$0x1] %v1147
      %v1149 = vld [vmem:[%s1013 + $0x4] sm:$0x1]
      %v1150 = vsel %vm468, 0, %v1149
      %1151 = vst [vmem:[%s1013 + $0x4] sm:$0x1] %v1150
      %v1152 = vld [vmem:[%s1013 + $0xc] sm:$0x1]
      %v1153 = vsel %vm468, 0, %v1152
      %1154 = vst [vmem:[%s1013 + $0xc] sm:$0x1] %v1153
      %v1155 = vld [vmem:[%s1013 + $0x14] sm:$0x1]
      %v1156 = vsel %vm468, 0, %v1155
      %1157 = vst [vmem:[%s1013 + $0x14] sm:$0x1] %v1156
      %v1158 = vld [vmem:[%s1013 + $0x1c] sm:$0x1]
      %v1159 = vsel %vm468, 0, %v1158
      %1160 = vst [vmem:[%s1013 + $0x1c] sm:$0x1] %v1159
      %v1161 = vld [vmem:[%s1013 + $0x24] sm:$0x1]
      %v1162 = vsel %vm468, 0, %v1161
      %1163 = vst [vmem:[%s1013 + $0x24] sm:$0x1] %v1162
      %v1164 = vld [vmem:[%s1013 + $0x2c] sm:$0x1]
      %v1165 = vsel %vm468, 0, %v1164
      %1166 = vst [vmem:[%s1013 + $0x2c] sm:$0x1] %v1165
      %v1167 = vld [vmem:[%s1013 + $0x34] sm:$0x1]
      %v1168 = vsel %vm468, 0, %v1167
      %1169 = vst [vmem:[%s1013 + $0x34] sm:$0x1] %v1168
      %v1170 = vld [vmem:[%s1013 + $0x3c] sm:$0x1]
      %v1171 = vsel %vm468, 0, %v1170
      %1172 = vst [vmem:[%s1013 + $0x3c] sm:$0x1] %v1171
      %v1173 = vld [vmem:[%s1013 + $0x44] sm:$0x1]
      %v1174 = vsel %vm468, 0, %v1173
      %1175 = vst [vmem:[%s1013 + $0x44] sm:$0x1] %v1174
      %v1176 = vld [vmem:[#allocation2] sm:$0xf]
      %v1177 = vld [vmem:[#allocation2 + $0x8] sm:$0xf]
      %v1178 = vld [vmem:[#allocation2 + $0x10] sm:$0xf]
      %v1179 = vld [vmem:[#allocation2 + $0x18] sm:$0xf]
      %v1180 = vld [vmem:[#allocation2 + $0x20] sm:$0xf]
      %v1181 = vld [vmem:[#allocation2 + $0x28] sm:$0xf]
      %v1182 = vld [vmem:[#allocation2 + $0x30] sm:$0xf]
      %v1183 = vld [vmem:[#allocation2 + $0x38] sm:$0xf]
      %v1184 = vld [vmem:[%s3] sm:$0xf]
      %v1185 = vld [vmem:[%s3 + $0x4] sm:$0xf]
      %v1186 = vld [vmem:[%s3 + $0x8] sm:$0xf]
      %v1187 = vld [vmem:[%s3 + $0xc] sm:$0xf]
      %v1188 = vld [vmem:[%s3 + $0x10] sm:$0xf]
      %v1189 = vld [vmem:[%s3 + $0x14] sm:$0xf]
      %v1190 = vld [vmem:[%s3 + $0x18] sm:$0xf]
      %v1191 = vld [vmem:[%s3 + $0x1c] sm:$0xf]
      %v1192 = vld [vmem:[%s3 + $0x20] sm:$0xf]
      %v1193 = vld [vmem:[%s3 + $0x24] sm:$0xf]
      %v1194 = vld [vmem:[%s3 + $0x28] sm:$0xf]
      %v1195 = vld [vmem:[%s3 + $0x2c] sm:$0xf]
      %v1196 = vld [vmem:[%s3 + $0x30] sm:$0xf]
      %v1197 = vld [vmem:[%s3 + $0x34] sm:$0xf]
      %v1198 = vld [vmem:[%s3 + $0x38] sm:$0xf]
      %v1199 = vld [vmem:[%s3 + $0x3c] sm:$0xf]
      %v1200 = vld [vmem:[%s649] sm:$0xf]
      %v1201 = vld [vmem:[%s649 + $0x8] sm:$0xf]
      %v1202 = vld [vmem:[%s649 + $0x10] sm:$0xf]
      %v1203 = vld [vmem:[%s649 + $0x18] sm:$0xf]
      %v1204 = vld [vmem:[%s649 + $0x20] sm:$0xf]
      %v1205 = vld [vmem:[%s649 + $0x28] sm:$0xf]
      %v1206 = vld [vmem:[%s649 + $0x30] sm:$0xf]
      %v1207 = vld [vmem:[%s649 + $0x38] sm:$0xf]
      %s1208 = scalar_lea.vmem %s3, 64
      %v1209 = vld [vmem:[%s1208] sm:$0xf]
      %v1210 = vld [vmem:[%s1208 + $0x4] sm:$0xf]
      %v1211 = vld [vmem:[%s1208 + $0x8] sm:$0xf]
      %v1212 = vld [vmem:[%s1208 + $0xc] sm:$0xf]
      %v1213 = vld [vmem:[%s1208 + $0x10] sm:$0xf]
      %v1214 = vld [vmem:[%s1208 + $0x14] sm:$0xf]
      %v1215 = vld [vmem:[%s1208 + $0x18] sm:$0xf]
      %v1216 = vld [vmem:[%s1208 + $0x1c] sm:$0xf]
      %v1217 = vld [vmem:[%s1208 + $0x20] sm:$0xf]
      %v1218 = vld [vmem:[%s1208 + $0x24] sm:$0xf]
      %v1219 = vld [vmem:[%s1208 + $0x28] sm:$0xf]
      %v1220 = vld [vmem:[%s1208 + $0x2c] sm:$0xf]
      %v1221 = vld [vmem:[%s1208 + $0x30] sm:$0xf]
      %v1222 = vld [vmem:[%s1208 + $0x34] sm:$0xf]
      %v1223 = vld [vmem:[%s1208 + $0x38] sm:$0xf]
      %v1224 = vld [vmem:[%s1208 + $0x3c] sm:$0xf]
      %v1233 = vunpack.c.l.b16 %v1200
      %v1234 = vunpack.c.l.b16 %v1201
      %v1235 = vunpack.c.l.b16 %v1202
      %v1236 = vunpack.c.l.b16 %v1203
      %v1237 = vunpack.c.l.b16 %v1204
      %v1238 = vunpack.c.l.b16 %v1205
      %v1239 = vunpack.c.l.b16 %v1206
      %v1240 = vunpack.c.l.b16 %v1207
      %v1241 = vpack.c.b16 %v1234, %v1233
      %v1242 = vpack.c.b16 %v1236, %v1235
      %v1243 = vpack.c.b16 %v1238, %v1237
      %v1244 = vpack.c.b16 %v1240, %v1239
      %v1265 = vunpack.c.l.b16 %v1209
      %v1266 = vunpack.c.l.b16 %v1210
      %v1267 = vunpack.c.l.b16 %v1211
      %v1268 = vunpack.c.l.b16 %v1212
      %v1269 = vunpack.c.l.b16 %v1213
      %v1270 = vunpack.c.l.b16 %v1214
      %v1271 = vunpack.c.l.b16 %v1215
      %v1272 = vunpack.c.l.b16 %v1216
      %v1273 = vunpack.c.l.b16 %v1217
      %v1274 = vunpack.c.l.b16 %v1218
      %v1275 = vunpack.c.l.b16 %v1219
      %v1276 = vunpack.c.l.b16 %v1220
      %v1277 = vunpack.c.l.b16 %v1221
      %v1278 = vunpack.c.l.b16 %v1222
      %v1279 = vunpack.c.l.b16 %v1223
      %v1280 = vunpack.c.l.b16 %v1224
      %v1281 = vpack.c.b16 %v1266, %v1265
      %v1282 = vpack.c.b16 %v1268, %v1267
      %v1283 = vpack.c.b16 %v1270, %v1269
      %v1284 = vpack.c.b16 %v1272, %v1271
      %v1285 = vpack.c.b16 %v1274, %v1273
      %v1286 = vpack.c.b16 %v1276, %v1275
      %v1287 = vpack.c.b16 %v1278, %v1277
      %v1288 = vpack.c.b16 %v1280, %v1279
      %1297 = vmatprep.subr.bf16.mxu0 0
      %1298 = vmatpush1.bf16.msra.mxu0 %v1288
      %1299 = vmatprep.subr.bf16.mxu0 0
      %1300 = vmatpush1.bf16.msra.mxu0 %v1287
      %1301 = vmatprep.subr.bf16.mxu0 0
      %1302 = vmatpush1.bf16.msra.mxu0 %v1286
      %1303 = vmatprep.subr.bf16.mxu0 0
      %1304 = vmatpush1.bf16.msra.mxu0 %v1285
      %1305 = vmatprep.subr.bf16.mxu0 0
      %1306 = vmatpush1.bf16.msra.mxu0 %v1284
      %1307 = vmatprep.subr.bf16.mxu0 0
      %1308 = vmatpush1.bf16.msra.mxu0 %v1283
      %1309 = vmatprep.subr.bf16.mxu0 0
      %1310 = vmatpush1.bf16.msra.mxu0 %v1282
      %1311 = vmatprep.subr.bf16.mxu0 0
      %1312 = vmatpush1.bf16.msra.mxu0 %v1281
      %1313 = vmatprep.subr.bf16.mxu0 0
      %1314 = vmatpush2.bf16.msra.mxu0 0
      %1315 = vmatprep.subr.bf16.mxu0 0
      %1316 = vmatpush2.bf16.msra.mxu0 0
      %1317 = vmatprep.subr.bf16.mxu0 0
      %1318 = vmatpush2.bf16.msra.mxu0 0
      %1319 = vmatprep.subr.bf16.mxu0 0
      %1320 = vmatpush2.bf16.msra.mxu0 0
      %1321 = vmatprep.subr.bf16.mxu0 0
      %1322 = vmatpush2.bf16.msra.mxu0 0
      %1323 = vmatprep.subr.bf16.mxu0 0
      %1324 = vmatpush2.bf16.msra.mxu0 0
      %1325 = vmatprep.subr.bf16.mxu0 0
      %1326 = vmatpush2.bf16.msra.mxu0 0
      %1327 = vmatprep.subr.bf16.mxu0 0
      %1328 = vmatpush2.bf16.msra.mxu0 0
      %1329 = vmatprep.mubr.bf16.mxu0 0
      %1330 = vmatmul.mubr.bf16.gmra.mxu0 %v1241
      %v1331 = vpop.f32.mrf.mxu0
      %v1332 = vadd.f32 0.0, %v1331
      %v1333 = vpop.f32.mrf.mxu0
      %v1334 = vpop.f32.mrf.mxu0
      %v1335 = vadd.f32 0.0, %v1334
      %v1336 = vpop.f32.mrf.mxu0
      %1337 = vmatprep.mubr.bf16.mxu0 0
      %1338 = vmatmul.mubr.bf16.gmra.mxu0 %v1242
      %v1339 = vpop.f32.mrf.mxu0
      %v1340 = vadd.f32 0.0, %v1339
      %v1341 = vpop.f32.mrf.mxu0
      %v1342 = vpop.f32.mrf.mxu0
      %v1343 = vadd.f32 0.0, %v1342
      %v1344 = vpop.f32.mrf.mxu0
      %1345 = vmatprep.mubr.bf16.mxu0 0
      %1346 = vmatmul.mubr.bf16.gmra.mxu0 %v1243
      %v1347 = vpop.f32.mrf.mxu0
      %v1348 = vadd.f32 0.0, %v1347
      %v1349 = vpop.f32.mrf.mxu0
      %v1350 = vpop.f32.mrf.mxu0
      %v1351 = vadd.f32 0.0, %v1350
      %v1352 = vpop.f32.mrf.mxu0
      %1353 = vmatprep.mubr.bf16.mxu0 0
      %1354 = vmatmul.mubr.bf16.gmra.mxu0 %v1244
      %v1355 = vpop.f32.mrf.mxu0
      %v1356 = vadd.f32 0.0, %v1355
      %v1357 = vpop.f32.mrf.mxu0
      %v1358 = vpop.f32.mrf.mxu0
      %v1359 = vadd.f32 0.0, %v1358
      %v1360 = vpop.f32.mrf.mxu0
      %1361 = vdwg.mxu0
      %v1370 = vunpack.c.l.b16 %v1176
      %v1371 = vunpack.c.l.b16 %v1177
      %v1372 = vunpack.c.l.b16 %v1178
      %v1373 = vunpack.c.l.b16 %v1179
      %v1374 = vunpack.c.l.b16 %v1180
      %v1375 = vunpack.c.l.b16 %v1181
      %v1376 = vunpack.c.l.b16 %v1182
      %v1377 = vunpack.c.l.b16 %v1183
      %v1378 = vpack.c.b16 %v1371, %v1370
      %v1379 = vpack.c.b16 %v1373, %v1372
      %v1380 = vpack.c.b16 %v1375, %v1374
      %v1381 = vpack.c.b16 %v1377, %v1376
      %v1402 = vunpack.c.l.b16 %v1184
      %v1403 = vunpack.c.l.b16 %v1185
      %v1404 = vunpack.c.l.b16 %v1186
      %v1405 = vunpack.c.l.b16 %v1187
      %v1406 = vunpack.c.l.b16 %v1188
      %v1407 = vunpack.c.l.b16 %v1189
      %v1408 = vunpack.c.l.b16 %v1190
      %v1409 = vunpack.c.l.b16 %v1191
      %v1410 = vunpack.c.l.b16 %v1192
      %v1411 = vunpack.c.l.b16 %v1193
      %v1412 = vunpack.c.l.b16 %v1194
      %v1413 = vunpack.c.l.b16 %v1195
      %v1414 = vunpack.c.l.b16 %v1196
      %v1415 = vunpack.c.l.b16 %v1197
      %v1416 = vunpack.c.l.b16 %v1198
      %v1417 = vunpack.c.l.b16 %v1199
      %v1418 = vpack.c.b16 %v1403, %v1402
      %v1419 = vpack.c.b16 %v1405, %v1404
      %v1420 = vpack.c.b16 %v1407, %v1406
      %v1421 = vpack.c.b16 %v1409, %v1408
      %v1422 = vpack.c.b16 %v1411, %v1410
      %v1423 = vpack.c.b16 %v1413, %v1412
      %v1424 = vpack.c.b16 %v1415, %v1414
      %v1425 = vpack.c.b16 %v1417, %v1416
      %1434 = vmatprep.subr.bf16.mxu0 0
      %1435 = vmatpush1.bf16.msra.mxu0 %v1425
      %1436 = vmatprep.subr.bf16.mxu0 0
      %1437 = vmatpush1.bf16.msra.mxu0 %v1424
      %1438 = vmatprep.subr.bf16.mxu0 0
      %1439 = vmatpush1.bf16.msra.mxu0 %v1423
      %1440 = vmatprep.subr.bf16.mxu0 0
      %1441 = vmatpush1.bf16.msra.mxu0 %v1422
      %1442 = vmatprep.subr.bf16.mxu0 0
      %1443 = vmatpush1.bf16.msra.mxu0 %v1421
      %1444 = vmatprep.subr.bf16.mxu0 0
      %1445 = vmatpush1.bf16.msra.mxu0 %v1420
      %1446 = vmatprep.subr.bf16.mxu0 0
      %1447 = vmatpush1.bf16.msra.mxu0 %v1419
      %1448 = vmatprep.subr.bf16.mxu0 0
      %1449 = vmatpush1.bf16.msra.mxu0 %v1418
      %1450 = vmatprep.subr.bf16.mxu0 0
      %1451 = vmatpush2.bf16.msra.mxu0 0
      %1452 = vmatprep.subr.bf16.mxu0 0
      %1453 = vmatpush2.bf16.msra.mxu0 0
      %1454 = vmatprep.subr.bf16.mxu0 0
      %1455 = vmatpush2.bf16.msra.mxu0 0
      %1456 = vmatprep.subr.bf16.mxu0 0
      %1457 = vmatpush2.bf16.msra.mxu0 0
      %1458 = vmatprep.subr.bf16.mxu0 0
      %1459 = vmatpush2.bf16.msra.mxu0 0
      %1460 = vmatprep.subr.bf16.mxu0 0
      %1461 = vmatpush2.bf16.msra.mxu0 0
      %1462 = vmatprep.subr.bf16.mxu0 0
      %1463 = vmatpush2.bf16.msra.mxu0 0
      %1464 = vmatprep.subr.bf16.mxu0 0
      %1465 = vmatpush2.bf16.msra.mxu0 0
      %1466 = vmatprep.mubr.bf16.mxu0 0
      %1467 = vmatmul.mubr.bf16.gmra.mxu0 %v1378
      %v1468 = vpop.f32.mrf.mxu0
      %v1469 = vadd.f32 %v1332, %v1468
      %v1470 = vpop.f32.mrf.mxu0
      %v1471 = vpop.f32.mrf.mxu0
      %v1472 = vadd.f32 %v1335, %v1471
      %v1473 = vpop.f32.mrf.mxu0
      %1474 = vmatprep.mubr.bf16.mxu0 0
      %1475 = vmatmul.mubr.bf16.gmra.mxu0 %v1379
      %v1476 = vpop.f32.mrf.mxu0
      %v1477 = vadd.f32 %v1340, %v1476
      %v1478 = vpop.f32.mrf.mxu0
      %v1479 = vpop.f32.mrf.mxu0
      %v1480 = vadd.f32 %v1343, %v1479
      %v1481 = vpop.f32.mrf.mxu0
      %1482 = vmatprep.mubr.bf16.mxu0 0
      %1483 = vmatmul.mubr.bf16.gmra.mxu0 %v1380
      %v1484 = vpop.f32.mrf.mxu0
      %v1485 = vadd.f32 %v1348, %v1484
      %v1486 = vpop.f32.mrf.mxu0
      %v1487 = vpop.f32.mrf.mxu0
      %v1488 = vadd.f32 %v1351, %v1487
      %v1489 = vpop.f32.mrf.mxu0
      %1490 = vmatprep.mubr.bf16.mxu0 0
      %1491 = vmatmul.mubr.bf16.gmra.mxu0 %v1381
      %v1492 = vpop.f32.mrf.mxu0
      %v1493 = vadd.f32 %v1356, %v1492
      %v1494 = vpop.f32.mrf.mxu0
      %v1495 = vpop.f32.mrf.mxu0
      %v1496 = vadd.f32 %v1359, %v1495
      %v1497 = vpop.f32.mrf.mxu0
      %1498 = vdwg.mxu0
      %v1499 = vld [vmem:[#allocation2] sm:$0xf]
      %v1500 = vld [vmem:[#allocation2 + $0x4] sm:$0x1]
      %v1501 = vld [vmem:[#allocation2 + $0x8] sm:$0xf]
      %v1502 = vld [vmem:[#allocation2 + $0xc] sm:$0x1]
      %v1503 = vld [vmem:[#allocation2 + $0x10] sm:$0xf]
      %v1504 = vld [vmem:[#allocation2 + $0x14] sm:$0x1]
      %v1505 = vld [vmem:[#allocation2 + $0x18] sm:$0xf]
      %v1506 = vld [vmem:[#allocation2 + $0x1c] sm:$0x1]
      %v1507 = vld [vmem:[#allocation2 + $0x20] sm:$0xf]
      %v1508 = vld [vmem:[#allocation2 + $0x24] sm:$0x1]
      %v1509 = vld [vmem:[#allocation2 + $0x28] sm:$0xf]
      %v1510 = vld [vmem:[#allocation2 + $0x2c] sm:$0x1]
      %v1511 = vld [vmem:[#allocation2 + $0x30] sm:$0xf]
      %v1512 = vld [vmem:[#allocation2 + $0x34] sm:$0x1]
      %v1513 = vld [vmem:[#allocation2 + $0x38] sm:$0xf]
      %v1514 = vld [vmem:[#allocation2 + $0x3c] sm:$0x1]
      %vm1515 = vsmask.f32 3328
      %vm1516 = vsmask.f32 7440
      %vm1517 = vmor %vm1515, %vm1516
      %v1519 = vshrl.u32 %v1499, 16
      %v1521 = vrot.slane %v1519, 4
      %v1522 = vshll.u32 %v1499, 16
      %v1524 = vrot.slane %v1522, 5
      %v1525 = vor.u32 %v1521, %v1524
      %v1526 = vrot.slane %v1525, 4
      %v1528 = vshll.u32 %v1500, 16
      %v1530 = vrot.slane %v1528, 5
      %v1531 = vsel %vm1517, %v1526, %v1530
      %v1533 = vshrl.u32 %v1501, 16
      %v1535 = vrot.slane %v1533, 4
      %v1536 = vshll.u32 %v1501, 16
      %v1538 = vrot.slane %v1536, 5
      %v1539 = vor.u32 %v1535, %v1538
      %v1540 = vrot.slane %v1539, 4
      %v1542 = vshll.u32 %v1502, 16
      %v1544 = vrot.slane %v1542, 5
      %v1545 = vsel %vm1517, %v1540, %v1544
      %v1547 = vshrl.u32 %v1503, 16
      %v1549 = vrot.slane %v1547, 4
      %v1550 = vshll.u32 %v1503, 16
      %v1552 = vrot.slane %v1550, 5
      %v1553 = vor.u32 %v1549, %v1552
      %v1554 = vrot.slane %v1553, 4
      %v1556 = vshll.u32 %v1504, 16
      %v1558 = vrot.slane %v1556, 5
      %v1559 = vsel %vm1517, %v1554, %v1558
      %v1561 = vshrl.u32 %v1505, 16
      %v1563 = vrot.slane %v1561, 4
      %v1564 = vshll.u32 %v1505, 16
      %v1566 = vrot.slane %v1564, 5
      %v1567 = vor.u32 %v1563, %v1566
      %v1568 = vrot.slane %v1567, 4
      %v1570 = vshll.u32 %v1506, 16
      %v1572 = vrot.slane %v1570, 5
      %v1573 = vsel %vm1517, %v1568, %v1572
      %v1575 = vshrl.u32 %v1507, 16
      %v1577 = vrot.slane %v1575, 4
      %v1578 = vshll.u32 %v1507, 16
      %v1580 = vrot.slane %v1578, 5
      %v1581 = vor.u32 %v1577, %v1580
      %v1582 = vrot.slane %v1581, 4
      %v1584 = vshll.u32 %v1508, 16
      %v1586 = vrot.slane %v1584, 5
      %v1587 = vsel %vm1517, %v1582, %v1586
      %v1589 = vshrl.u32 %v1509, 16
      %v1591 = vrot.slane %v1589, 4
      %v1592 = vshll.u32 %v1509, 16
      %v1594 = vrot.slane %v1592, 5
      %v1595 = vor.u32 %v1591, %v1594
      %v1596 = vrot.slane %v1595, 4
      %v1598 = vshll.u32 %v1510, 16
      %v1600 = vrot.slane %v1598, 5
      %v1601 = vsel %vm1517, %v1596, %v1600
      %v1603 = vshrl.u32 %v1511, 16
      %v1605 = vrot.slane %v1603, 4
      %v1606 = vshll.u32 %v1511, 16
      %v1608 = vrot.slane %v1606, 5
      %v1609 = vor.u32 %v1605, %v1608
      %v1610 = vrot.slane %v1609, 4
      %v1612 = vshll.u32 %v1512, 16
      %v1614 = vrot.slane %v1612, 5
      %v1615 = vsel %vm1517, %v1610, %v1614
      %v1617 = vshrl.u32 %v1513, 16
      %v1619 = vrot.slane %v1617, 4
      %v1620 = vshll.u32 %v1513, 16
      %v1622 = vrot.slane %v1620, 5
      %v1623 = vor.u32 %v1619, %v1622
      %v1624 = vrot.slane %v1623, 4
      %v1626 = vshll.u32 %v1514, 16
      %v1628 = vrot.slane %v1626, 5
      %v1629 = vsel %vm1517, %v1624, %v1628
      %s1630 = scalar_lea.vmem %s3, 128
      %v1631 = vld [vmem:[%s1630] sm:$0xf]
      %v1632 = vld [vmem:[%s1630 + $0x4] sm:$0xf]
      %v1633 = vld [vmem:[%s1630 + $0x8] sm:$0xf]
      %v1634 = vld [vmem:[%s1630 + $0xc] sm:$0xf]
      %v1635 = vld [vmem:[%s1630 + $0x10] sm:$0xf]
      %v1636 = vld [vmem:[%s1630 + $0x14] sm:$0xf]
      %v1637 = vld [vmem:[%s1630 + $0x18] sm:$0xf]
      %v1638 = vld [vmem:[%s1630 + $0x1c] sm:$0xf]
      %v1639 = vld [vmem:[%s1630 + $0x20] sm:$0xf]
      %v1640 = vld [vmem:[%s1630 + $0x24] sm:$0xf]
      %v1641 = vld [vmem:[%s1630 + $0x28] sm:$0xf]
      %v1642 = vld [vmem:[%s1630 + $0x2c] sm:$0xf]
      %v1643 = vld [vmem:[%s1630 + $0x30] sm:$0xf]
      %v1644 = vld [vmem:[%s1630 + $0x34] sm:$0xf]
      %v1645 = vld [vmem:[%s1630 + $0x38] sm:$0xf]
      %v1646 = vld [vmem:[%s1630 + $0x3c] sm:$0xf]
      %v1647 = vunpack.c.l.b16 %v1531
      %v1648 = vunpack.c.l.b16 %v1545
      %v1649 = vunpack.c.l.b16 %v1559
      %v1650 = vunpack.c.l.b16 %v1573
      %v1651 = vunpack.c.l.b16 %v1587
      %v1652 = vunpack.c.l.b16 %v1601
      %v1653 = vunpack.c.l.b16 %v1615
      %v1654 = vunpack.c.l.b16 %v1629
      %v1655 = vpack.c.b16 %v1648, %v1647
      %v1656 = vpack.c.b16 %v1650, %v1649
      %v1657 = vpack.c.b16 %v1652, %v1651
      %v1658 = vpack.c.b16 %v1654, %v1653
      %v1679 = vunpack.c.l.b16 %v1631
      %v1680 = vunpack.c.l.b16 %v1632
      %v1681 = vunpack.c.l.b16 %v1633
      %v1682 = vunpack.c.l.b16 %v1634
      %v1683 = vunpack.c.l.b16 %v1635
      %v1684 = vunpack.c.l.b16 %v1636
      %v1685 = vunpack.c.l.b16 %v1637
      %v1686 = vunpack.c.l.b16 %v1638
      %v1687 = vunpack.c.l.b16 %v1639
      %v1688 = vunpack.c.l.b16 %v1640
      %v1689 = vunpack.c.l.b16 %v1641
      %v1690 = vunpack.c.l.b16 %v1642
      %v1691 = vunpack.c.l.b16 %v1643
      %v1692 = vunpack.c.l.b16 %v1644
      %v1693 = vunpack.c.l.b16 %v1645
      %v1694 = vunpack.c.l.b16 %v1646
      %v1695 = vpack.c.b16 %v1680, %v1679
      %v1696 = vpack.c.b16 %v1682, %v1681
      %v1697 = vpack.c.b16 %v1684, %v1683
      %v1698 = vpack.c.b16 %v1686, %v1685
      %v1699 = vpack.c.b16 %v1688, %v1687
      %v1700 = vpack.c.b16 %v1690, %v1689
      %v1701 = vpack.c.b16 %v1692, %v1691
      %v1702 = vpack.c.b16 %v1694, %v1693
      %1711 = vmatprep.subr.bf16.mxu0 0
      %1712 = vmatpush1.bf16.msra.mxu0 %v1702
      %1713 = vmatprep.subr.bf16.mxu0 0
      %1714 = vmatpush1.bf16.msra.mxu0 %v1701
      %1715 = vmatprep.subr.bf16.mxu0 0
      %1716 = vmatpush1.bf16.msra.mxu0 %v1700
      %1717 = vmatprep.subr.bf16.mxu0 0
      %1718 = vmatpush1.bf16.msra.mxu0 %v1699
      %1719 = vmatprep.subr.bf16.mxu0 0
      %1720 = vmatpush1.bf16.msra.mxu0 %v1698
      %1721 = vmatprep.subr.bf16.mxu0 0
      %1722 = vmatpush1.bf16.msra.mxu0 %v1697
      %1723 = vmatprep.subr.bf16.mxu0 0
      %1724 = vmatpush1.bf16.msra.mxu0 %v1696
      %1725 = vmatprep.subr.bf16.mxu0 0
      %1726 = vmatpush1.bf16.msra.mxu0 %v1695
      %1727 = vmatprep.subr.bf16.mxu0 0
      %1728 = vmatpush2.bf16.msra.mxu0 0
      %1729 = vmatprep.subr.bf16.mxu0 0
      %1730 = vmatpush2.bf16.msra.mxu0 0
      %1731 = vmatprep.subr.bf16.mxu0 0
      %1732 = vmatpush2.bf16.msra.mxu0 0
      %1733 = vmatprep.subr.bf16.mxu0 0
      %1734 = vmatpush2.bf16.msra.mxu0 0
      %1735 = vmatprep.subr.bf16.mxu0 0
      %1736 = vmatpush2.bf16.msra.mxu0 0
      %1737 = vmatprep.subr.bf16.mxu0 0
      %1738 = vmatpush2.bf16.msra.mxu0 0
      %1739 = vmatprep.subr.bf16.mxu0 0
      %1740 = vmatpush2.bf16.msra.mxu0 0
      %1741 = vmatprep.subr.bf16.mxu0 0
      %1742 = vmatpush2.bf16.msra.mxu0 0
      %1743 = vmatprep.mubr.bf16.mxu0 0
      %1744 = vmatmul.mubr.bf16.gmra.mxu0 %v1655
      %v1745 = vpop.f32.mrf.mxu0
      %v1746 = vadd.f32 0.0, %v1745
      %v1747 = vpop.f32.mrf.mxu0
      %v1748 = vpop.f32.mrf.mxu0
      %v1749 = vadd.f32 0.0, %v1748
      %v1750 = vpop.f32.mrf.mxu0
      %1751 = vmatprep.mubr.bf16.mxu0 0
      %1752 = vmatmul.mubr.bf16.gmra.mxu0 %v1656
      %v1753 = vpop.f32.mrf.mxu0
      %v1754 = vadd.f32 0.0, %v1753
      %v1755 = vpop.f32.mrf.mxu0
      %v1756 = vpop.f32.mrf.mxu0
      %v1757 = vadd.f32 0.0, %v1756
      %v1758 = vpop.f32.mrf.mxu0
      %1759 = vmatprep.mubr.bf16.mxu0 0
      %1760 = vmatmul.mubr.bf16.gmra.mxu0 %v1657
      %v1761 = vpop.f32.mrf.mxu0
      %v1762 = vadd.f32 0.0, %v1761
      %v1763 = vpop.f32.mrf.mxu0
      %v1764 = vpop.f32.mrf.mxu0
      %v1765 = vadd.f32 0.0, %v1764
      %v1766 = vpop.f32.mrf.mxu0
      %1767 = vmatprep.mubr.bf16.mxu0 0
      %1768 = vmatmul.mubr.bf16.gmra.mxu0 %v1658
      %v1769 = vpop.f32.mrf.mxu0
      %v1770 = vadd.f32 0.0, %v1769
      %v1771 = vpop.f32.mrf.mxu0
      %v1772 = vpop.f32.mrf.mxu0
      %v1773 = vadd.f32 0.0, %v1772
      %v1774 = vpop.f32.mrf.mxu0
      %1775 = vdwg.mxu0
      %v1776 = vadd.f32 %v1469, %v1746
      %v1777 = vadd.f32 %v1472, %v1749
      %v1778 = vadd.f32 %v1477, %v1754
      %v1779 = vadd.f32 %v1480, %v1757
      %v1780 = vadd.f32 %v1485, %v1762
      %v1781 = vadd.f32 %v1488, %v1765
      %v1782 = vadd.f32 %v1493, %v1770
      %v1783 = vadd.f32 %v1496, %v1773
      %v1784 = vld [vmem:[%s831] sm:$0xf]
      %v1785 = vld [vmem:[%s831 + $0x8] sm:$0xf]
      %v1786 = vld [vmem:[%s831 + $0x10] sm:$0xf]
      %v1787 = vld [vmem:[%s831 + $0x18] sm:$0xf]
      %v1788 = vld [vmem:[%s831 + $0x20] sm:$0xf]
      %v1789 = vld [vmem:[%s831 + $0x28] sm:$0xf]
      %v1790 = vld [vmem:[%s831 + $0x30] sm:$0xf]
      %v1791 = vld [vmem:[%s831 + $0x38] sm:$0xf]
      %s1792 = scalar_lea.vmem %s3, 192
      %v1793 = vld [vmem:[%s1792] sm:$0xf]
      %v1794 = vld [vmem:[%s1792 + $0x4] sm:$0xf]
      %v1795 = vld [vmem:[%s1792 + $0x8] sm:$0xf]
      %v1796 = vld [vmem:[%s1792 + $0xc] sm:$0xf]
      %v1797 = vld [vmem:[%s1792 + $0x10] sm:$0xf]
      %v1798 = vld [vmem:[%s1792 + $0x14] sm:$0xf]
      %v1799 = vld [vmem:[%s1792 + $0x18] sm:$0xf]
      %v1800 = vld [vmem:[%s1792 + $0x1c] sm:$0xf]
      %v1801 = vld [vmem:[%s1792 + $0x20] sm:$0xf]
      %v1802 = vld [vmem:[%s1792 + $0x24] sm:$0xf]
      %v1803 = vld [vmem:[%s1792 + $0x28] sm:$0xf]
      %v1804 = vld [vmem:[%s1792 + $0x2c] sm:$0xf]
      %v1805 = vld [vmem:[%s1792 + $0x30] sm:$0xf]
      %v1806 = vld [vmem:[%s1792 + $0x34] sm:$0xf]
      %v1807 = vld [vmem:[%s1792 + $0x38] sm:$0xf]
      %v1808 = vld [vmem:[%s1792 + $0x3c] sm:$0xf]
      %v1817 = vunpack.c.l.b16 %v1784
      %v1818 = vunpack.c.l.b16 %v1785
      %v1819 = vunpack.c.l.b16 %v1786
      %v1820 = vunpack.c.l.b16 %v1787
      %v1821 = vunpack.c.l.b16 %v1788
      %v1822 = vunpack.c.l.b16 %v1789
      %v1823 = vunpack.c.l.b16 %v1790
      %v1824 = vunpack.c.l.b16 %v1791
      %v1825 = vpack.c.b16 %v1818, %v1817
      %v1826 = vpack.c.b16 %v1820, %v1819
      %v1827 = vpack.c.b16 %v1822, %v1821
      %v1828 = vpack.c.b16 %v1824, %v1823
      %v1849 = vunpack.c.l.b16 %v1793
      %v1850 = vunpack.c.l.b16 %v1794
      %v1851 = vunpack.c.l.b16 %v1795
      %v1852 = vunpack.c.l.b16 %v1796
      %v1853 = vunpack.c.l.b16 %v1797
      %v1854 = vunpack.c.l.b16 %v1798
      %v1855 = vunpack.c.l.b16 %v1799
      %v1856 = vunpack.c.l.b16 %v1800
      %v1857 = vunpack.c.l.b16 %v1801
      %v1858 = vunpack.c.l.b16 %v1802
      %v1859 = vunpack.c.l.b16 %v1803
      %v1860 = vunpack.c.l.b16 %v1804
      %v1861 = vunpack.c.l.b16 %v1805
      %v1862 = vunpack.c.l.b16 %v1806
      %v1863 = vunpack.c.l.b16 %v1807
      %v1864 = vunpack.c.l.b16 %v1808
      %v1865 = vpack.c.b16 %v1850, %v1849
      %v1866 = vpack.c.b16 %v1852, %v1851
      %v1867 = vpack.c.b16 %v1854, %v1853
      %v1868 = vpack.c.b16 %v1856, %v1855
      %v1869 = vpack.c.b16 %v1858, %v1857
      %v1870 = vpack.c.b16 %v1860, %v1859
      %v1871 = vpack.c.b16 %v1862, %v1861
      %v1872 = vpack.c.b16 %v1864, %v1863
      %1881 = vmatprep.subr.bf16.mxu0 0
      %1882 = vmatpush1.bf16.msra.mxu0 %v1872
      %1883 = vmatprep.subr.bf16.mxu0 0
      %1884 = vmatpush1.bf16.msra.mxu0 %v1871
      %1885 = vmatprep.subr.bf16.mxu0 0
      %1886 = vmatpush1.bf16.msra.mxu0 %v1870
      %1887 = vmatprep.subr.bf16.mxu0 0
      %1888 = vmatpush1.bf16.msra.mxu0 %v1869
      %1889 = vmatprep.subr.bf16.mxu0 0
      %1890 = vmatpush1.bf16.msra.mxu0 %v1868
      %1891 = vmatprep.subr.bf16.mxu0 0
      %1892 = vmatpush1.bf16.msra.mxu0 %v1867
      %1893 = vmatprep.subr.bf16.mxu0 0
      %1894 = vmatpush1.bf16.msra.mxu0 %v1866
      %1895 = vmatprep.subr.bf16.mxu0 0
      %1896 = vmatpush1.bf16.msra.mxu0 %v1865
      %1897 = vmatprep.subr.bf16.mxu0 0
      %1898 = vmatpush2.bf16.msra.mxu0 0
      %1899 = vmatprep.subr.bf16.mxu0 0
      %1900 = vmatpush2.bf16.msra.mxu0 0
      %1901 = vmatprep.subr.bf16.mxu0 0
      %1902 = vmatpush2.bf16.msra.mxu0 0
      %1903 = vmatprep.subr.bf16.mxu0 0
      %1904 = vmatpush2.bf16.msra.mxu0 0
      %1905 = vmatprep.subr.bf16.mxu0 0
      %1906 = vmatpush2.bf16.msra.mxu0 0
      %1907 = vmatprep.subr.bf16.mxu0 0
      %1908 = vmatpush2.bf16.msra.mxu0 0
      %1909 = vmatprep.subr.bf16.mxu0 0
      %1910 = vmatpush2.bf16.msra.mxu0 0
      %1911 = vmatprep.subr.bf16.mxu0 0
      %1912 = vmatpush2.bf16.msra.mxu0 0
      %1913 = vmatprep.mubr.bf16.mxu0 0
      %1914 = vmatmul.mubr.bf16.gmra.mxu0 %v1825
      %v1915 = vpop.f32.mrf.mxu0
      %v1916 = vadd.f32 0.0, %v1915
      %v1917 = vpop.f32.mrf.mxu0
      %v1918 = vpop.f32.mrf.mxu0
      %v1919 = vadd.f32 0.0, %v1918
      %v1920 = vpop.f32.mrf.mxu0
      %1921 = vmatprep.mubr.bf16.mxu0 0
      %1922 = vmatmul.mubr.bf16.gmra.mxu0 %v1826
      %v1923 = vpop.f32.mrf.mxu0
      %v1924 = vadd.f32 0.0, %v1923
      %v1925 = vpop.f32.mrf.mxu0
      %v1926 = vpop.f32.mrf.mxu0
      %v1927 = vadd.f32 0.0, %v1926
      %v1928 = vpop.f32.mrf.mxu0
      %1929 = vmatprep.mubr.bf16.mxu0 0
      %1930 = vmatmul.mubr.bf16.gmra.mxu0 %v1827
      %v1931 = vpop.f32.mrf.mxu0
      %v1932 = vadd.f32 0.0, %v1931
      %v1933 = vpop.f32.mrf.mxu0
      %v1934 = vpop.f32.mrf.mxu0
      %v1935 = vadd.f32 0.0, %v1934
      %v1936 = vpop.f32.mrf.mxu0
      %1937 = vmatprep.mubr.bf16.mxu0 0
      %1938 = vmatmul.mubr.bf16.gmra.mxu0 %v1828
      %v1939 = vpop.f32.mrf.mxu0
      %v1940 = vadd.f32 0.0, %v1939
      %v1941 = vpop.f32.mrf.mxu0
      %v1942 = vpop.f32.mrf.mxu0
      %v1943 = vadd.f32 0.0, %v1942
      %v1944 = vpop.f32.mrf.mxu0
      %1945 = vdwg.mxu0
      %v1946 = vadd.f32 %v1776, %v1916
      %v1947 = vadd.f32 %v1777, %v1919
      %v1948 = vadd.f32 %v1778, %v1924
      %v1949 = vadd.f32 %v1779, %v1927
      %v1950 = vadd.f32 %v1780, %v1932
      %v1951 = vadd.f32 %v1781, %v1935
      %v1952 = vadd.f32 %v1782, %v1940
      %v1953 = vadd.f32 %v1783, %v1943
      %v1954 = vld [vmem:[%s1013] sm:$0xf]
      %v1955 = vld [vmem:[%s1013 + $0x8] sm:$0xf]
      %v1956 = vld [vmem:[%s1013 + $0x10] sm:$0xf]
      %v1957 = vld [vmem:[%s1013 + $0x18] sm:$0xf]
      %v1958 = vld [vmem:[%s1013 + $0x20] sm:$0xf]
      %v1959 = vld [vmem:[%s1013 + $0x28] sm:$0xf]
      %v1960 = vld [vmem:[%s1013 + $0x30] sm:$0xf]
      %v1961 = vld [vmem:[%s1013 + $0x38] sm:$0xf]
      %s1962 = scalar_lea.vmem %s3, 256
      %v1963 = vld [vmem:[%s1962] sm:$0xf]
      %v1964 = vld [vmem:[%s1962 + $0x4] sm:$0xf]
      %v1965 = vld [vmem:[%s1962 + $0x8] sm:$0xf]
      %v1966 = vld [vmem:[%s1962 + $0xc] sm:$0xf]
      %v1967 = vld [vmem:[%s1962 + $0x10] sm:$0xf]
      %v1968 = vld [vmem:[%s1962 + $0x14] sm:$0xf]
      %v1969 = vld [vmem:[%s1962 + $0x18] sm:$0xf]
      %v1970 = vld [vmem:[%s1962 + $0x1c] sm:$0xf]
      %v1971 = vld [vmem:[%s1962 + $0x20] sm:$0xf]
      %v1972 = vld [vmem:[%s1962 + $0x24] sm:$0xf]
      %v1973 = vld [vmem:[%s1962 + $0x28] sm:$0xf]
      %v1974 = vld [vmem:[%s1962 + $0x2c] sm:$0xf]
      %v1975 = vld [vmem:[%s1962 + $0x30] sm:$0xf]
      %v1976 = vld [vmem:[%s1962 + $0x34] sm:$0xf]
      %v1977 = vld [vmem:[%s1962 + $0x38] sm:$0xf]
      %v1978 = vld [vmem:[%s1962 + $0x3c] sm:$0xf]
      %v1987 = vunpack.c.l.b16 %v1954
      %v1988 = vunpack.c.l.b16 %v1955
      %v1989 = vunpack.c.l.b16 %v1956
      %v1990 = vunpack.c.l.b16 %v1957
      %v1991 = vunpack.c.l.b16 %v1958
      %v1992 = vunpack.c.l.b16 %v1959
      %v1993 = vunpack.c.l.b16 %v1960
      %v1994 = vunpack.c.l.b16 %v1961
      %v1995 = vpack.c.b16 %v1988, %v1987
      %v1996 = vpack.c.b16 %v1990, %v1989
      %v1997 = vpack.c.b16 %v1992, %v1991
      %v1998 = vpack.c.b16 %v1994, %v1993
      %v2019 = vunpack.c.l.b16 %v1963
      %v2020 = vunpack.c.l.b16 %v1964
      %v2021 = vunpack.c.l.b16 %v1965
      %v2022 = vunpack.c.l.b16 %v1966
      %v2023 = vunpack.c.l.b16 %v1967
      %v2024 = vunpack.c.l.b16 %v1968
      %v2025 = vunpack.c.l.b16 %v1969
      %v2026 = vunpack.c.l.b16 %v1970
      %v2027 = vunpack.c.l.b16 %v1971
      %v2028 = vunpack.c.l.b16 %v1972
      %v2029 = vunpack.c.l.b16 %v1973
      %v2030 = vunpack.c.l.b16 %v1974
      %v2031 = vunpack.c.l.b16 %v1975
      %v2032 = vunpack.c.l.b16 %v1976
      %v2033 = vunpack.c.l.b16 %v1977
      %v2034 = vunpack.c.l.b16 %v1978
      %v2035 = vpack.c.b16 %v2020, %v2019
      %v2036 = vpack.c.b16 %v2022, %v2021
      %v2037 = vpack.c.b16 %v2024, %v2023
      %v2038 = vpack.c.b16 %v2026, %v2025
      %v2039 = vpack.c.b16 %v2028, %v2027
      %v2040 = vpack.c.b16 %v2030, %v2029
      %v2041 = vpack.c.b16 %v2032, %v2031
      %v2042 = vpack.c.b16 %v2034, %v2033
      %2051 = vmatprep.subr.bf16.mxu0 0
      %2052 = vmatpush1.bf16.msra.mxu0 %v2042
      %2053 = vmatprep.subr.bf16.mxu0 0
      %2054 = vmatpush1.bf16.msra.mxu0 %v2041
      %2055 = vmatprep.subr.bf16.mxu0 0
      %2056 = vmatpush1.bf16.msra.mxu0 %v2040
      %2057 = vmatprep.subr.bf16.mxu0 0
      %2058 = vmatpush1.bf16.msra.mxu0 %v2039
      %2059 = vmatprep.subr.bf16.mxu0 0
      %2060 = vmatpush1.bf16.msra.mxu0 %v2038
      %2061 = vmatprep.subr.bf16.mxu0 0
      %2062 = vmatpush1.bf16.msra.mxu0 %v2037
      %2063 = vmatprep.subr.bf16.mxu0 0
      %2064 = vmatpush1.bf16.msra.mxu0 %v2036
      %2065 = vmatprep.subr.bf16.mxu0 0
      %2066 = vmatpush1.bf16.msra.mxu0 %v2035
      %2067 = vmatprep.subr.bf16.mxu0 0
      %2068 = vmatpush2.bf16.msra.mxu0 0
      %2069 = vmatprep.subr.bf16.mxu0 0
      %2070 = vmatpush2.bf16.msra.mxu0 0
      %2071 = vmatprep.subr.bf16.mxu0 0
      %2072 = vmatpush2.bf16.msra.mxu0 0
      %2073 = vmatprep.subr.bf16.mxu0 0
      %2074 = vmatpush2.bf16.msra.mxu0 0
      %2075 = vmatprep.subr.bf16.mxu0 0
      %2076 = vmatpush2.bf16.msra.mxu0 0
      %2077 = vmatprep.subr.bf16.mxu0 0
      %2078 = vmatpush2.bf16.msra.mxu0 0
      %2079 = vmatprep.subr.bf16.mxu0 0
      %2080 = vmatpush2.bf16.msra.mxu0 0
      %2081 = vmatprep.subr.bf16.mxu0 0
      %2082 = vmatpush2.bf16.msra.mxu0 0
      %2083 = vmatprep.mubr.bf16.mxu0 0
      %2084 = vmatmul.mubr.bf16.gmra.mxu0 %v1995
      %v2085 = vpop.f32.mrf.mxu0
      %v2086 = vadd.f32 0.0, %v2085
      %v2087 = vpop.f32.mrf.mxu0
      %v2088 = vpop.f32.mrf.mxu0
      %v2089 = vadd.f32 0.0, %v2088
      %v2090 = vpop.f32.mrf.mxu0
      %2091 = vmatprep.mubr.bf16.mxu0 0
      %2092 = vmatmul.mubr.bf16.gmra.mxu0 %v1996
      %v2093 = vpop.f32.mrf.mxu0
      %v2094 = vadd.f32 0.0, %v2093
      %v2095 = vpop.f32.mrf.mxu0
      %v2096 = vpop.f32.mrf.mxu0
      %v2097 = vadd.f32 0.0, %v2096
      %v2098 = vpop.f32.mrf.mxu0
      %2099 = vmatprep.mubr.bf16.mxu0 0
      %2100 = vmatmul.mubr.bf16.gmra.mxu0 %v1997
      %v2101 = vpop.f32.mrf.mxu0
      %v2102 = vadd.f32 0.0, %v2101
      %v2103 = vpop.f32.mrf.mxu0
      %v2104 = vpop.f32.mrf.mxu0
      %v2105 = vadd.f32 0.0, %v2104
      %v2106 = vpop.f32.mrf.mxu0
      %2107 = vmatprep.mubr.bf16.mxu0 0
      %2108 = vmatmul.mubr.bf16.gmra.mxu0 %v1998
      %v2109 = vpop.f32.mrf.mxu0
      %v2110 = vadd.f32 0.0, %v2109
      %v2111 = vpop.f32.mrf.mxu0
      %v2112 = vpop.f32.mrf.mxu0
      %v2113 = vadd.f32 0.0, %v2112
      %v2114 = vpop.f32.mrf.mxu0
      %2115 = vdwg.mxu0
      %v2116 = vadd.f32 %v1946, %v2086
      %v2117 = vadd.f32 %v1947, %v2089
      %v2118 = vadd.f32 %v1948, %v2094
      %v2119 = vadd.f32 %v1949, %v2097
      %v2120 = vadd.f32 %v1950, %v2102
      %v2121 = vadd.f32 %v1951, %v2105
      %v2122 = vadd.f32 %v1952, %v2110
      %v2123 = vadd.f32 %v1953, %v2113
      %v2124 = vld [vmem:[%s831] sm:$0xf]
      %v2125 = vld [vmem:[%s831 + $0x4] sm:$0x1]
      %v2126 = vld [vmem:[%s831 + $0x8] sm:$0xf]
      %v2127 = vld [vmem:[%s831 + $0xc] sm:$0x1]
      %v2128 = vld [vmem:[%s831 + $0x10] sm:$0xf]
      %v2129 = vld [vmem:[%s831 + $0x14] sm:$0x1]
      %v2130 = vld [vmem:[%s831 + $0x18] sm:$0xf]
      %v2131 = vld [vmem:[%s831 + $0x1c] sm:$0x1]
      %v2132 = vld [vmem:[%s831 + $0x20] sm:$0xf]
      %v2133 = vld [vmem:[%s831 + $0x24] sm:$0x1]
      %v2134 = vld [vmem:[%s831 + $0x28] sm:$0xf]
      %v2135 = vld [vmem:[%s831 + $0x2c] sm:$0x1]
      %v2136 = vld [vmem:[%s831 + $0x30] sm:$0xf]
      %v2137 = vld [vmem:[%s831 + $0x34] sm:$0x1]
      %v2138 = vld [vmem:[%s831 + $0x38] sm:$0xf]
      %v2139 = vld [vmem:[%s831 + $0x3c] sm:$0x1]
      %v2141 = vshrl.u32 %v2124, 16
      %v2143 = vrot.slane %v2141, 4
      %v2144 = vshll.u32 %v2124, 16
      %v2146 = vrot.slane %v2144, 5
      %v2147 = vor.u32 %v2143, %v2146
      %v2148 = vrot.slane %v2147, 4
      %v2150 = vshll.u32 %v2125, 16
      %v2152 = vrot.slane %v2150, 5
      %v2153 = vsel %vm1517, %v2148, %v2152
      %v2155 = vshrl.u32 %v2126, 16
      %v2157 = vrot.slane %v2155, 4
      %v2158 = vshll.u32 %v2126, 16
      %v2160 = vrot.slane %v2158, 5
      %v2161 = vor.u32 %v2157, %v2160
      %v2162 = vrot.slane %v2161, 4
      %v2164 = vshll.u32 %v2127, 16
      %v2166 = vrot.slane %v2164, 5
      %v2167 = vsel %vm1517, %v2162, %v2166
      %v2169 = vshrl.u32 %v2128, 16
      %v2171 = vrot.slane %v2169, 4
      %v2172 = vshll.u32 %v2128, 16
      %v2174 = vrot.slane %v2172, 5
      %v2175 = vor.u32 %v2171, %v2174
      %v2176 = vrot.slane %v2175, 4
      %v2178 = vshll.u32 %v2129, 16
      %v2180 = vrot.slane %v2178, 5
      %v2181 = vsel %vm1517, %v2176, %v2180
      %v2183 = vshrl.u32 %v2130, 16
      %v2185 = vrot.slane %v2183, 4
      %v2186 = vshll.u32 %v2130, 16
      %v2188 = vrot.slane %v2186, 5
      %v2189 = vor.u32 %v2185, %v2188
      %v2190 = vrot.slane %v2189, 4
      %v2192 = vshll.u32 %v2131, 16
      %v2194 = vrot.slane %v2192, 5
      %v2195 = vsel %vm1517, %v2190, %v2194
      %v2197 = vshrl.u32 %v2132, 16
      %v2199 = vrot.slane %v2197, 4
      %v2200 = vshll.u32 %v2132, 16
      %v2202 = vrot.slane %v2200, 5
      %v2203 = vor.u32 %v2199, %v2202
      %v2204 = vrot.slane %v2203, 4
      %v2206 = vshll.u32 %v2133, 16
      %v2208 = vrot.slane %v2206, 5
      %v2209 = vsel %vm1517, %v2204, %v2208
      %v2211 = vshrl.u32 %v2134, 16
      %v2213 = vrot.slane %v2211, 4
      %v2214 = vshll.u32 %v2134, 16
      %v2216 = vrot.slane %v2214, 5
      %v2217 = vor.u32 %v2213, %v2216
      %v2218 = vrot.slane %v2217, 4
      %v2220 = vshll.u32 %v2135, 16
      %v2222 = vrot.slane %v2220, 5
      %v2223 = vsel %vm1517, %v2218, %v2222
      %v2225 = vshrl.u32 %v2136, 16
      %v2227 = vrot.slane %v2225, 4
      %v2228 = vshll.u32 %v2136, 16
      %v2230 = vrot.slane %v2228, 5
      %v2231 = vor.u32 %v2227, %v2230
      %v2232 = vrot.slane %v2231, 4
      %v2234 = vshll.u32 %v2137, 16
      %v2236 = vrot.slane %v2234, 5
      %v2237 = vsel %vm1517, %v2232, %v2236
      %v2239 = vshrl.u32 %v2138, 16
      %v2241 = vrot.slane %v2239, 4
      %v2242 = vshll.u32 %v2138, 16
      %v2244 = vrot.slane %v2242, 5
      %v2245 = vor.u32 %v2241, %v2244
      %v2246 = vrot.slane %v2245, 4
      %v2248 = vshll.u32 %v2139, 16
      %v2250 = vrot.slane %v2248, 5
      %v2251 = vsel %vm1517, %v2246, %v2250
      %s2252 = scalar_lea.vmem %s3, 320
      %v2253 = vld [vmem:[%s2252] sm:$0xf]
      %v2254 = vld [vmem:[%s2252 + $0x4] sm:$0xf]
      %v2255 = vld [vmem:[%s2252 + $0x8] sm:$0xf]
      %v2256 = vld [vmem:[%s2252 + $0xc] sm:$0xf]
      %v2257 = vld [vmem:[%s2252 + $0x10] sm:$0xf]
      %v2258 = vld [vmem:[%s2252 + $0x14] sm:$0xf]
      %v2259 = vld [vmem:[%s2252 + $0x18] sm:$0xf]
      %v2260 = vld [vmem:[%s2252 + $0x1c] sm:$0xf]
      %v2261 = vld [vmem:[%s2252 + $0x20] sm:$0xf]
      %v2262 = vld [vmem:[%s2252 + $0x24] sm:$0xf]
      %v2263 = vld [vmem:[%s2252 + $0x28] sm:$0xf]
      %v2264 = vld [vmem:[%s2252 + $0x2c] sm:$0xf]
      %v2265 = vld [vmem:[%s2252 + $0x30] sm:$0xf]
      %v2266 = vld [vmem:[%s2252 + $0x34] sm:$0xf]
      %v2267 = vld [vmem:[%s2252 + $0x38] sm:$0xf]
      %v2268 = vld [vmem:[%s2252 + $0x3c] sm:$0xf]
      %v2269 = vunpack.c.l.b16 %v2153
      %v2270 = vunpack.c.l.b16 %v2167
      %v2271 = vunpack.c.l.b16 %v2181
      %v2272 = vunpack.c.l.b16 %v2195
      %v2273 = vunpack.c.l.b16 %v2209
      %v2274 = vunpack.c.l.b16 %v2223
      %v2275 = vunpack.c.l.b16 %v2237
      %v2276 = vunpack.c.l.b16 %v2251
      %v2277 = vpack.c.b16 %v2270, %v2269
      %v2278 = vpack.c.b16 %v2272, %v2271
      %v2279 = vpack.c.b16 %v2274, %v2273
      %v2280 = vpack.c.b16 %v2276, %v2275
      %v2301 = vunpack.c.l.b16 %v2253
      %v2302 = vunpack.c.l.b16 %v2254
      %v2303 = vunpack.c.l.b16 %v2255
      %v2304 = vunpack.c.l.b16 %v2256
      %v2305 = vunpack.c.l.b16 %v2257
      %v2306 = vunpack.c.l.b16 %v2258
      %v2307 = vunpack.c.l.b16 %v2259
      %v2308 = vunpack.c.l.b16 %v2260
      %v2309 = vunpack.c.l.b16 %v2261
      %v2310 = vunpack.c.l.b16 %v2262
      %v2311 = vunpack.c.l.b16 %v2263
      %v2312 = vunpack.c.l.b16 %v2264
      %v2313 = vunpack.c.l.b16 %v2265
      %v2314 = vunpack.c.l.b16 %v2266
      %v2315 = vunpack.c.l.b16 %v2267
      %v2316 = vunpack.c.l.b16 %v2268
      %v2317 = vpack.c.b16 %v2302, %v2301
      %v2318 = vpack.c.b16 %v2304, %v2303
      %v2319 = vpack.c.b16 %v2306, %v2305
      %v2320 = vpack.c.b16 %v2308, %v2307
      %v2321 = vpack.c.b16 %v2310, %v2309
      %v2322 = vpack.c.b16 %v2312, %v2311
      %v2323 = vpack.c.b16 %v2314, %v2313
      %v2324 = vpack.c.b16 %v2316, %v2315
      %2333 = vmatprep.subr.bf16.mxu0 0
      %2334 = vmatpush1.bf16.msra.mxu0 %v2324
      %2335 = vmatprep.subr.bf16.mxu0 0
      %2336 = vmatpush1.bf16.msra.mxu0 %v2323
      %2337 = vmatprep.subr.bf16.mxu0 0
      %2338 = vmatpush1.bf16.msra.mxu0 %v2322
      %2339 = vmatprep.subr.bf16.mxu0 0
      %2340 = vmatpush1.bf16.msra.mxu0 %v2321
      %2341 = vmatprep.subr.bf16.mxu0 0
      %2342 = vmatpush1.bf16.msra.mxu0 %v2320
      %2343 = vmatprep.subr.bf16.mxu0 0
      %2344 = vmatpush1.bf16.msra.mxu0 %v2319
      %2345 = vmatprep.subr.bf16.mxu0 0
      %2346 = vmatpush1.bf16.msra.mxu0 %v2318
      %2347 = vmatprep.subr.bf16.mxu0 0
      %2348 = vmatpush1.bf16.msra.mxu0 %v2317
      %2349 = vmatprep.subr.bf16.mxu0 0
      %2350 = vmatpush2.bf16.msra.mxu0 0
      %2351 = vmatprep.subr.bf16.mxu0 0
      %2352 = vmatpush2.bf16.msra.mxu0 0
      %2353 = vmatprep.subr.bf16.mxu0 0
      %2354 = vmatpush2.bf16.msra.mxu0 0
      %2355 = vmatprep.subr.bf16.mxu0 0
      %2356 = vmatpush2.bf16.msra.mxu0 0
      %2357 = vmatprep.subr.bf16.mxu0 0
      %2358 = vmatpush2.bf16.msra.mxu0 0
      %2359 = vmatprep.subr.bf16.mxu0 0
      %2360 = vmatpush2.bf16.msra.mxu0 0
      %2361 = vmatprep.subr.bf16.mxu0 0
      %2362 = vmatpush2.bf16.msra.mxu0 0
      %2363 = vmatprep.subr.bf16.mxu0 0
      %2364 = vmatpush2.bf16.msra.mxu0 0
      %2365 = vmatprep.mubr.bf16.mxu0 0
      %2366 = vmatmul.mubr.bf16.gmra.mxu0 %v2277
      %v2367 = vpop.f32.mrf.mxu0
      %v2368 = vadd.f32 0.0, %v2367
      %v2369 = vpop.f32.mrf.mxu0
      %v2370 = vpop.f32.mrf.mxu0
      %v2371 = vadd.f32 0.0, %v2370
      %v2372 = vpop.f32.mrf.mxu0
      %2373 = vmatprep.mubr.bf16.mxu0 0
      %2374 = vmatmul.mubr.bf16.gmra.mxu0 %v2278
      %v2375 = vpop.f32.mrf.mxu0
      %v2376 = vadd.f32 0.0, %v2375
      %v2377 = vpop.f32.mrf.mxu0
      %v2378 = vpop.f32.mrf.mxu0
      %v2379 = vadd.f32 0.0, %v2378
      %v2380 = vpop.f32.mrf.mxu0
      %2381 = vmatprep.mubr.bf16.mxu0 0
      %2382 = vmatmul.mubr.bf16.gmra.mxu0 %v2279
      %v2383 = vpop.f32.mrf.mxu0
      %v2384 = vadd.f32 0.0, %v2383
      %v2385 = vpop.f32.mrf.mxu0
      %v2386 = vpop.f32.mrf.mxu0
      %v2387 = vadd.f32 0.0, %v2386
      %v2388 = vpop.f32.mrf.mxu0
      %2389 = vmatprep.mubr.bf16.mxu0 0
      %2390 = vmatmul.mubr.bf16.gmra.mxu0 %v2280
      %v2391 = vpop.f32.mrf.mxu0
      %v2392 = vadd.f32 0.0, %v2391
      %v2393 = vpop.f32.mrf.mxu0
      %v2394 = vpop.f32.mrf.mxu0
      %v2395 = vadd.f32 0.0, %v2394
      %v2396 = vpop.f32.mrf.mxu0
      %2397 = vdwg.mxu0
      %v2398 = vadd.f32 %v2116, %v2368
      %v2399 = vadd.f32 %v2117, %v2371
      %v2400 = vadd.f32 %v2118, %v2376
      %v2401 = vadd.f32 %v2119, %v2379
      %v2402 = vadd.f32 %v2120, %v2384
      %v2403 = vadd.f32 %v2121, %v2387
      %v2404 = vadd.f32 %v2122, %v2392
      %v2405 = vadd.f32 %v2123, %v2395
      %s2406 = scalar_lea.vmem [#allocation2], 8
      %v2407 = vld [vmem:[%s2406] sm:$0xf]
      %v2408 = vld [vmem:[%s2406 + $0x8] sm:$0xf]
      %v2409 = vld [vmem:[%s2406 + $0x10] sm:$0xf]
      %v2410 = vld [vmem:[%s2406 + $0x18] sm:$0xf]
      %v2411 = vld [vmem:[%s2406 + $0x20] sm:$0xf]
      %v2412 = vld [vmem:[%s2406 + $0x28] sm:$0xf]
      %v2413 = vld [vmem:[%s2406 + $0x30] sm:$0xf]
      %v2414 = vld [vmem:[%s2406 + $0x38] sm:$0xf]
      %s2415 = scalar_lea.vmem %s3, 384
      %v2416 = vld [vmem:[%s2415] sm:$0xf]
      %v2417 = vld [vmem:[%s2415 + $0x4] sm:$0xf]
      %v2418 = vld [vmem:[%s2415 + $0x8] sm:$0xf]
      %v2419 = vld [vmem:[%s2415 + $0xc] sm:$0xf]
      %v2420 = vld [vmem:[%s2415 + $0x10] sm:$0xf]
      %v2421 = vld [vmem:[%s2415 + $0x14] sm:$0xf]
      %v2422 = vld [vmem:[%s2415 + $0x18] sm:$0xf]
      %v2423 = vld [vmem:[%s2415 + $0x1c] sm:$0xf]
      %v2424 = vld [vmem:[%s2415 + $0x20] sm:$0xf]
      %v2425 = vld [vmem:[%s2415 + $0x24] sm:$0xf]
      %v2426 = vld [vmem:[%s2415 + $0x28] sm:$0xf]
      %v2427 = vld [vmem:[%s2415 + $0x2c] sm:$0xf]
      %v2428 = vld [vmem:[%s2415 + $0x30] sm:$0xf]
      %v2429 = vld [vmem:[%s2415 + $0x34] sm:$0xf]
      %v2430 = vld [vmem:[%s2415 + $0x38] sm:$0xf]
      %v2431 = vld [vmem:[%s2415 + $0x3c] sm:$0xf]
      %v2440 = vunpack.c.l.b16 %v2407
      %v2441 = vunpack.c.l.b16 %v2408
      %v2442 = vunpack.c.l.b16 %v2409
      %v2443 = vunpack.c.l.b16 %v2410
      %v2444 = vunpack.c.l.b16 %v2411
      %v2445 = vunpack.c.l.b16 %v2412
      %v2446 = vunpack.c.l.b16 %v2413
      %v2447 = vunpack.c.l.b16 %v2414
      %v2448 = vpack.c.b16 %v2441, %v2440
      %v2449 = vpack.c.b16 %v2443, %v2442
      %v2450 = vpack.c.b16 %v2445, %v2444
      %v2451 = vpack.c.b16 %v2447, %v2446
      %v2472 = vunpack.c.l.b16 %v2416
      %v2473 = vunpack.c.l.b16 %v2417
      %v2474 = vunpack.c.l.b16 %v2418
      %v2475 = vunpack.c.l.b16 %v2419
      %v2476 = vunpack.c.l.b16 %v2420
      %v2477 = vunpack.c.l.b16 %v2421
      %v2478 = vunpack.c.l.b16 %v2422
      %v2479 = vunpack.c.l.b16 %v2423
      %v2480 = vunpack.c.l.b16 %v2424
      %v2481 = vunpack.c.l.b16 %v2425
      %v2482 = vunpack.c.l.b16 %v2426
      %v2483 = vunpack.c.l.b16 %v2427
      %v2484 = vunpack.c.l.b16 %v2428
      %v2485 = vunpack.c.l.b16 %v2429
      %v2486 = vunpack.c.l.b16 %v2430
      %v2487 = vunpack.c.l.b16 %v2431
      %v2488 = vpack.c.b16 %v2473, %v2472
      %v2489 = vpack.c.b16 %v2475, %v2474
      %v2490 = vpack.c.b16 %v2477, %v2476
      %v2491 = vpack.c.b16 %v2479, %v2478
      %v2492 = vpack.c.b16 %v2481, %v2480
      %v2493 = vpack.c.b16 %v2483, %v2482
      %v2494 = vpack.c.b16 %v2485, %v2484
      %v2495 = vpack.c.b16 %v2487, %v2486
      %2504 = vmatprep.subr.bf16.mxu0 0
      %2505 = vmatpush1.bf16.msra.mxu0 %v2495
      %2506 = vmatprep.subr.bf16.mxu0 0
      %2507 = vmatpush1.bf16.msra.mxu0 %v2494
      %2508 = vmatprep.subr.bf16.mxu0 0
      %2509 = vmatpush1.bf16.msra.mxu0 %v2493
      %2510 = vmatprep.subr.bf16.mxu0 0
      %2511 = vmatpush1.bf16.msra.mxu0 %v2492
      %2512 = vmatprep.subr.bf16.mxu0 0
      %2513 = vmatpush1.bf16.msra.mxu0 %v2491
      %2514 = vmatprep.subr.bf16.mxu0 0
      %2515 = vmatpush1.bf16.msra.mxu0 %v2490
      %2516 = vmatprep.subr.bf16.mxu0 0
      %2517 = vmatpush1.bf16.msra.mxu0 %v2489
      %2518 = vmatprep.subr.bf16.mxu0 0
      %2519 = vmatpush1.bf16.msra.mxu0 %v2488
      %2520 = vmatprep.subr.bf16.mxu0 0
      %2521 = vmatpush2.bf16.msra.mxu0 0
      %2522 = vmatprep.subr.bf16.mxu0 0
      %2523 = vmatpush2.bf16.msra.mxu0 0
      %2524 = vmatprep.subr.bf16.mxu0 0
      %2525 = vmatpush2.bf16.msra.mxu0 0
      %2526 = vmatprep.subr.bf16.mxu0 0
      %2527 = vmatpush2.bf16.msra.mxu0 0
      %2528 = vmatprep.subr.bf16.mxu0 0
      %2529 = vmatpush2.bf16.msra.mxu0 0
      %2530 = vmatprep.subr.bf16.mxu0 0
      %2531 = vmatpush2.bf16.msra.mxu0 0
      %2532 = vmatprep.subr.bf16.mxu0 0
      %2533 = vmatpush2.bf16.msra.mxu0 0
      %2534 = vmatprep.subr.bf16.mxu0 0
      %2535 = vmatpush2.bf16.msra.mxu0 0
      %2536 = vmatprep.mubr.bf16.mxu0 0
      %2537 = vmatmul.mubr.bf16.gmra.mxu0 %v2448
      %v2538 = vpop.f32.mrf.mxu0
      %v2539 = vadd.f32 0.0, %v2538
      %v2540 = vpop.f32.mrf.mxu0
      %v2541 = vpop.f32.mrf.mxu0
      %v2542 = vadd.f32 0.0, %v2541
      %v2543 = vpop.f32.mrf.mxu0
      %2544 = vmatprep.mubr.bf16.mxu0 0
      %2545 = vmatmul.mubr.bf16.gmra.mxu0 %v2449
      %v2546 = vpop.f32.mrf.mxu0
      %v2547 = vadd.f32 0.0, %v2546
      %v2548 = vpop.f32.mrf.mxu0
      %v2549 = vpop.f32.mrf.mxu0
      %v2550 = vadd.f32 0.0, %v2549
      %v2551 = vpop.f32.mrf.mxu0
      %2552 = vmatprep.mubr.bf16.mxu0 0
      %2553 = vmatmul.mubr.bf16.gmra.mxu0 %v2450
      %v2554 = vpop.f32.mrf.mxu0
      %v2555 = vadd.f32 0.0, %v2554
      %v2556 = vpop.f32.mrf.mxu0
      %v2557 = vpop.f32.mrf.mxu0
      %v2558 = vadd.f32 0.0, %v2557
      %v2559 = vpop.f32.mrf.mxu0
      %2560 = vmatprep.mubr.bf16.mxu0 0
      %2561 = vmatmul.mubr.bf16.gmra.mxu0 %v2451
      %v2562 = vpop.f32.mrf.mxu0
      %v2563 = vadd.f32 0.0, %v2562
      %v2564 = vpop.f32.mrf.mxu0
      %v2565 = vpop.f32.mrf.mxu0
      %v2566 = vadd.f32 0.0, %v2565
      %v2567 = vpop.f32.mrf.mxu0
      %2568 = vdwg.mxu0
      %v2569 = vadd.f32 %v2398, %v2539
      %v2570 = vadd.f32 %v2399, %v2542
      %v2571 = vadd.f32 %v2400, %v2547
      %v2572 = vadd.f32 %v2401, %v2550
      %v2573 = vadd.f32 %v2402, %v2555
      %v2574 = vadd.f32 %v2403, %v2558
      %v2575 = vadd.f32 %v2404, %v2563
      %v2576 = vadd.f32 %v2405, %v2566
      %s2577 = scalar_lea.vmem [#allocation2], 80
      %v2578 = vld [vmem:[%s2577] sm:$0xf]
      %v2579 = vld [vmem:[%s2577 + $0x8] sm:$0xf]
      %v2580 = vld [vmem:[%s2577 + $0x10] sm:$0xf]
      %v2581 = vld [vmem:[%s2577 + $0x18] sm:$0xf]
      %v2582 = vld [vmem:[%s2577 + $0x20] sm:$0xf]
      %v2583 = vld [vmem:[%s2577 + $0x28] sm:$0xf]
      %v2584 = vld [vmem:[%s2577 + $0x30] sm:$0xf]
      %v2585 = vld [vmem:[%s2577 + $0x38] sm:$0xf]
      %s2586 = scalar_lea.vmem %s3, 448
      %v2587 = vld [vmem:[%s2586] sm:$0xf]
      %v2588 = vld [vmem:[%s2586 + $0x4] sm:$0xf]
      %v2589 = vld [vmem:[%s2586 + $0x8] sm:$0xf]
      %v2590 = vld [vmem:[%s2586 + $0xc] sm:$0xf]
      %v2591 = vld [vmem:[%s2586 + $0x10] sm:$0xf]
      %v2592 = vld [vmem:[%s2586 + $0x14] sm:$0xf]
      %v2593 = vld [vmem:[%s2586 + $0x18] sm:$0xf]
      %v2594 = vld [vmem:[%s2586 + $0x1c] sm:$0xf]
      %v2595 = vld [vmem:[%s2586 + $0x20] sm:$0xf]
      %v2596 = vld [vmem:[%s2586 + $0x24] sm:$0xf]
      %v2597 = vld [vmem:[%s2586 + $0x28] sm:$0xf]
      %v2598 = vld [vmem:[%s2586 + $0x2c] sm:$0xf]
      %v2599 = vld [vmem:[%s2586 + $0x30] sm:$0xf]
      %v2600 = vld [vmem:[%s2586 + $0x34] sm:$0xf]
      %v2601 = vld [vmem:[%s2586 + $0x38] sm:$0xf]
      %v2602 = vld [vmem:[%s2586 + $0x3c] sm:$0xf]
      %v2611 = vunpack.c.l.b16 %v2578
      %v2612 = vunpack.c.l.b16 %v2579
      %v2613 = vunpack.c.l.b16 %v2580
      %v2614 = vunpack.c.l.b16 %v2581
      %v2615 = vunpack.c.l.b16 %v2582
      %v2616 = vunpack.c.l.b16 %v2583
      %v2617 = vunpack.c.l.b16 %v2584
      %v2618 = vunpack.c.l.b16 %v2585
      %v2619 = vpack.c.b16 %v2612, %v2611
      %v2620 = vpack.c.b16 %v2614, %v2613
      %v2621 = vpack.c.b16 %v2616, %v2615
      %v2622 = vpack.c.b16 %v2618, %v2617
      %v2643 = vunpack.c.l.b16 %v2587
      %v2644 = vunpack.c.l.b16 %v2588
      %v2645 = vunpack.c.l.b16 %v2589
      %v2646 = vunpack.c.l.b16 %v2590
      %v2647 = vunpack.c.l.b16 %v2591
      %v2648 = vunpack.c.l.b16 %v2592
      %v2649 = vunpack.c.l.b16 %v2593
      %v2650 = vunpack.c.l.b16 %v2594
      %v2651 = vunpack.c.l.b16 %v2595
      %v2652 = vunpack.c.l.b16 %v2596
      %v2653 = vunpack.c.l.b16 %v2597
      %v2654 = vunpack.c.l.b16 %v2598
      %v2655 = vunpack.c.l.b16 %v2599
      %v2656 = vunpack.c.l.b16 %v2600
      %v2657 = vunpack.c.l.b16 %v2601
      %v2658 = vunpack.c.l.b16 %v2602
      %v2659 = vpack.c.b16 %v2644, %v2643
      %v2660 = vpack.c.b16 %v2646, %v2645
      %v2661 = vpack.c.b16 %v2648, %v2647
      %v2662 = vpack.c.b16 %v2650, %v2649
      %v2663 = vpack.c.b16 %v2652, %v2651
      %v2664 = vpack.c.b16 %v2654, %v2653
      %v2665 = vpack.c.b16 %v2656, %v2655
      %v2666 = vpack.c.b16 %v2658, %v2657
      %2675 = vmatprep.subr.bf16.mxu0 0
      %2676 = vmatpush1.bf16.msra.mxu0 %v2666
      %2677 = vmatprep.subr.bf16.mxu0 0
      %2678 = vmatpush1.bf16.msra.mxu0 %v2665
      %2679 = vmatprep.subr.bf16.mxu0 0
      %2680 = vmatpush1.bf16.msra.mxu0 %v2664
      %2681 = vmatprep.subr.bf16.mxu0 0
      %2682 = vmatpush1.bf16.msra.mxu0 %v2663
      %2683 = vmatprep.subr.bf16.mxu0 0
      %2684 = vmatpush1.bf16.msra.mxu0 %v2662
      %2685 = vmatprep.subr.bf16.mxu0 0
      %2686 = vmatpush1.bf16.msra.mxu0 %v2661
      %2687 = vmatprep.subr.bf16.mxu0 0
      %2688 = vmatpush1.bf16.msra.mxu0 %v2660
      %2689 = vmatprep.subr.bf16.mxu0 0
      %2690 = vmatpush1.bf16.msra.mxu0 %v2659
      %2691 = vmatprep.subr.bf16.mxu0 0
      %2692 = vmatpush2.bf16.msra.mxu0 0
      %2693 = vmatprep.subr.bf16.mxu0 0
      %2694 = vmatpush2.bf16.msra.mxu0 0
      %2695 = vmatprep.subr.bf16.mxu0 0
      %2696 = vmatpush2.bf16.msra.mxu0 0
      %2697 = vmatprep.subr.bf16.mxu0 0
      %2698 = vmatpush2.bf16.msra.mxu0 0
      %2699 = vmatprep.subr.bf16.mxu0 0
      %2700 = vmatpush2.bf16.msra.mxu0 0
      %2701 = vmatprep.subr.bf16.mxu0 0
      %2702 = vmatpush2.bf16.msra.mxu0 0
      %2703 = vmatprep.subr.bf16.mxu0 0
      %2704 = vmatpush2.bf16.msra.mxu0 0
      %2705 = vmatprep.subr.bf16.mxu0 0
      %2706 = vmatpush2.bf16.msra.mxu0 0
      %2707 = vmatprep.mubr.bf16.mxu0 0
      %2708 = vmatmul.mubr.bf16.gmra.mxu0 %v2619
      %v2709 = vpop.f32.mrf.mxu0
      %v2710 = vadd.f32 0.0, %v2709
      %v2711 = vpop.f32.mrf.mxu0
      %v2712 = vpop.f32.mrf.mxu0
      %v2713 = vadd.f32 0.0, %v2712
      %v2714 = vpop.f32.mrf.mxu0
      %2715 = vmatprep.mubr.bf16.mxu0 0
      %2716 = vmatmul.mubr.bf16.gmra.mxu0 %v2620
      %v2717 = vpop.f32.mrf.mxu0
      %v2718 = vadd.f32 0.0, %v2717
      %v2719 = vpop.f32.mrf.mxu0
      %v2720 = vpop.f32.mrf.mxu0
      %v2721 = vadd.f32 0.0, %v2720
      %v2722 = vpop.f32.mrf.mxu0
      %2723 = vmatprep.mubr.bf16.mxu0 0
      %2724 = vmatmul.mubr.bf16.gmra.mxu0 %v2621
      %v2725 = vpop.f32.mrf.mxu0
      %v2726 = vadd.f32 0.0, %v2725
      %v2727 = vpop.f32.mrf.mxu0
      %v2728 = vpop.f32.mrf.mxu0
      %v2729 = vadd.f32 0.0, %v2728
      %v2730 = vpop.f32.mrf.mxu0
      %2731 = vmatprep.mubr.bf16.mxu0 0
      %2732 = vmatmul.mubr.bf16.gmra.mxu0 %v2622
      %v2733 = vpop.f32.mrf.mxu0
      %v2734 = vadd.f32 0.0, %v2733
      %v2735 = vpop.f32.mrf.mxu0
      %v2736 = vpop.f32.mrf.mxu0
      %v2737 = vadd.f32 0.0, %v2736
      %v2738 = vpop.f32.mrf.mxu0
      %2739 = vdwg.mxu0
      %v2740 = vadd.f32 %v2569, %v2710
      %v2741 = vadd.f32 %v2570, %v2713
      %v2742 = vadd.f32 %v2571, %v2718
      %v2743 = vadd.f32 %v2572, %v2721
      %v2744 = vadd.f32 %v2573, %v2726
      %v2745 = vadd.f32 %v2574, %v2729
      %v2746 = vadd.f32 %v2575, %v2734
      %v2747 = vadd.f32 %v2576, %v2737
      %v2748 = vld [vmem:[%s2406] sm:$0xf]
      %v2749 = vld [vmem:[%s2406 + $0x4] sm:$0x1]
      %v2750 = vld [vmem:[%s2406 + $0x8] sm:$0xf]
      %v2751 = vld [vmem:[%s2406 + $0xc] sm:$0x1]
      %v2752 = vld [vmem:[%s2406 + $0x10] sm:$0xf]
      %v2753 = vld [vmem:[%s2406 + $0x14] sm:$0x1]
      %v2754 = vld [vmem:[%s2406 + $0x18] sm:$0xf]
      %v2755 = vld [vmem:[%s2406 + $0x1c] sm:$0x1]
      %v2756 = vld [vmem:[%s2406 + $0x20] sm:$0xf]
      %v2757 = vld [vmem:[%s2406 + $0x24] sm:$0x1]
      %v2758 = vld [vmem:[%s2406 + $0x28] sm:$0xf]
      %v2759 = vld [vmem:[%s2406 + $0x2c] sm:$0x1]
      %v2760 = vld [vmem:[%s2406 + $0x30] sm:$0xf]
      %v2761 = vld [vmem:[%s2406 + $0x34] sm:$0x1]
      %v2762 = vld [vmem:[%s2406 + $0x38] sm:$0xf]
      %v2763 = vld [vmem:[%s2406 + $0x3c] sm:$0x1]
      %v2765 = vshrl.u32 %v2748, 16
      %v2767 = vrot.slane %v2765, 4
      %v2768 = vshll.u32 %v2748, 16
      %v2770 = vrot.slane %v2768, 5
      %v2771 = vor.u32 %v2767, %v2770
      %v2772 = vrot.slane %v2771, 4
      %v2774 = vshll.u32 %v2749, 16
      %v2776 = vrot.slane %v2774, 5
      %v2777 = vsel %vm1517, %v2772, %v2776
      %v2779 = vshrl.u32 %v2750, 16
      %v2781 = vrot.slane %v2779, 4
      %v2782 = vshll.u32 %v2750, 16
      %v2784 = vrot.slane %v2782, 5
      %v2785 = vor.u32 %v2781, %v2784
      %v2786 = vrot.slane %v2785, 4
      %v2788 = vshll.u32 %v2751, 16
      %v2790 = vrot.slane %v2788, 5
      %v2791 = vsel %vm1517, %v2786, %v2790
      %v2793 = vshrl.u32 %v2752, 16
      %v2795 = vrot.slane %v2793, 4
      %v2796 = vshll.u32 %v2752, 16
      %v2798 = vrot.slane %v2796, 5
      %v2799 = vor.u32 %v2795, %v2798
      %v2800 = vrot.slane %v2799, 4
      %v2802 = vshll.u32 %v2753, 16
      %v2804 = vrot.slane %v2802, 5
      %v2805 = vsel %vm1517, %v2800, %v2804
      %v2807 = vshrl.u32 %v2754, 16
      %v2809 = vrot.slane %v2807, 4
      %v2810 = vshll.u32 %v2754, 16
      %v2812 = vrot.slane %v2810, 5
      %v2813 = vor.u32 %v2809, %v2812
      %v2814 = vrot.slane %v2813, 4
      %v2816 = vshll.u32 %v2755, 16
      %v2818 = vrot.slane %v2816, 5
      %v2819 = vsel %vm1517, %v2814, %v2818
      %v2821 = vshrl.u32 %v2756, 16
      %v2823 = vrot.slane %v2821, 4
      %v2824 = vshll.u32 %v2756, 16
      %v2826 = vrot.slane %v2824, 5
      %v2827 = vor.u32 %v2823, %v2826
      %v2828 = vrot.slane %v2827, 4
      %v2830 = vshll.u32 %v2757, 16
      %v2832 = vrot.slane %v2830, 5
      %v2833 = vsel %vm1517, %v2828, %v2832
      %v2835 = vshrl.u32 %v2758, 16
      %v2837 = vrot.slane %v2835, 4
      %v2838 = vshll.u32 %v2758, 16
      %v2840 = vrot.slane %v2838, 5
      %v2841 = vor.u32 %v2837, %v2840
      %v2842 = vrot.slane %v2841, 4
      %v2844 = vshll.u32 %v2759, 16
      %v2846 = vrot.slane %v2844, 5
      %v2847 = vsel %vm1517, %v2842, %v2846
      %v2849 = vshrl.u32 %v2760, 16
      %v2851 = vrot.slane %v2849, 4
      %v2852 = vshll.u32 %v2760, 16
      %v2854 = vrot.slane %v2852, 5
      %v2855 = vor.u32 %v2851, %v2854
      %v2856 = vrot.slane %v2855, 4
      %v2858 = vshll.u32 %v2761, 16
      %v2860 = vrot.slane %v2858, 5
      %v2861 = vsel %vm1517, %v2856, %v2860
      %v2863 = vshrl.u32 %v2762, 16
      %v2865 = vrot.slane %v2863, 4
      %v2866 = vshll.u32 %v2762, 16
      %v2868 = vrot.slane %v2866, 5
      %v2869 = vor.u32 %v2865, %v2868
      %v2870 = vrot.slane %v2869, 4
      %v2872 = vshll.u32 %v2763, 16
      %v2874 = vrot.slane %v2872, 5
      %v2875 = vsel %vm1517, %v2870, %v2874
      %s2876 = scalar_lea.vmem %s3, 512
      %v2877 = vld [vmem:[%s2876] sm:$0xf]
      %v2878 = vld [vmem:[%s2876 + $0x4] sm:$0xf]
      %v2879 = vld [vmem:[%s2876 + $0x8] sm:$0xf]
      %v2880 = vld [vmem:[%s2876 + $0xc] sm:$0xf]
      %v2881 = vld [vmem:[%s2876 + $0x10] sm:$0xf]
      %v2882 = vld [vmem:[%s2876 + $0x14] sm:$0xf]
      %v2883 = vld [vmem:[%s2876 + $0x18] sm:$0xf]
      %v2884 = vld [vmem:[%s2876 + $0x1c] sm:$0xf]
      %v2885 = vld [vmem:[%s2876 + $0x20] sm:$0xf]
      %v2886 = vld [vmem:[%s2876 + $0x24] sm:$0xf]
      %v2887 = vld [vmem:[%s2876 + $0x28] sm:$0xf]
      %v2888 = vld [vmem:[%s2876 + $0x2c] sm:$0xf]
      %v2889 = vld [vmem:[%s2876 + $0x30] sm:$0xf]
      %v2890 = vld [vmem:[%s2876 + $0x34] sm:$0xf]
      %v2891 = vld [vmem:[%s2876 + $0x38] sm:$0xf]
      %v2892 = vld [vmem:[%s2876 + $0x3c] sm:$0xf]
      %v2893 = vunpack.c.l.b16 %v2777
      %v2894 = vunpack.c.l.b16 %v2791
      %v2895 = vunpack.c.l.b16 %v2805
      %v2896 = vunpack.c.l.b16 %v2819
      %v2897 = vunpack.c.l.b16 %v2833
      %v2898 = vunpack.c.l.b16 %v2847
      %v2899 = vunpack.c.l.b16 %v2861
      %v2900 = vunpack.c.l.b16 %v2875
      %v2901 = vpack.c.b16 %v2894, %v2893
      %v2902 = vpack.c.b16 %v2896, %v2895
      %v2903 = vpack.c.b16 %v2898, %v2897
      %v2904 = vpack.c.b16 %v2900, %v2899
      %v2925 = vunpack.c.l.b16 %v2877
      %v2926 = vunpack.c.l.b16 %v2878
      %v2927 = vunpack.c.l.b16 %v2879
      %v2928 = vunpack.c.l.b16 %v2880
      %v2929 = vunpack.c.l.b16 %v2881
      %v2930 = vunpack.c.l.b16 %v2882
      %v2931 = vunpack.c.l.b16 %v2883
      %v2932 = vunpack.c.l.b16 %v2884
      %v2933 = vunpack.c.l.b16 %v2885
      %v2934 = vunpack.c.l.b16 %v2886
      %v2935 = vunpack.c.l.b16 %v2887
      %v2936 = vunpack.c.l.b16 %v2888
      %v2937 = vunpack.c.l.b16 %v2889
      %v2938 = vunpack.c.l.b16 %v2890
      %v2939 = vunpack.c.l.b16 %v2891
      %v2940 = vunpack.c.l.b16 %v2892
      %v2941 = vpack.c.b16 %v2926, %v2925
      %v2942 = vpack.c.b16 %v2928, %v2927
      %v2943 = vpack.c.b16 %v2930, %v2929
      %v2944 = vpack.c.b16 %v2932, %v2931
      %v2945 = vpack.c.b16 %v2934, %v2933
      %v2946 = vpack.c.b16 %v2936, %v2935
      %v2947 = vpack.c.b16 %v2938, %v2937
      %v2948 = vpack.c.b16 %v2940, %v2939
      %2957 = vmatprep.subr.bf16.mxu0 0
      %2958 = vmatpush1.bf16.msra.mxu0 %v2948
      %2959 = vmatprep.subr.bf16.mxu0 0
      %2960 = vmatpush1.bf16.msra.mxu0 %v2947
      %2961 = vmatprep.subr.bf16.mxu0 0
      %2962 = vmatpush1.bf16.msra.mxu0 %v2946
      %2963 = vmatprep.subr.bf16.mxu0 0
      %2964 = vmatpush1.bf16.msra.mxu0 %v2945
      %2965 = vmatprep.subr.bf16.mxu0 0
      %2966 = vmatpush1.bf16.msra.mxu0 %v2944
      %2967 = vmatprep.subr.bf16.mxu0 0
      %2968 = vmatpush1.bf16.msra.mxu0 %v2943
      %2969 = vmatprep.subr.bf16.mxu0 0
      %2970 = vmatpush1.bf16.msra.mxu0 %v2942
      %2971 = vmatprep.subr.bf16.mxu0 0
      %2972 = vmatpush1.bf16.msra.mxu0 %v2941
      %2973 = vmatprep.subr.bf16.mxu0 0
      %2974 = vmatpush2.bf16.msra.mxu0 0
      %2975 = vmatprep.subr.bf16.mxu0 0
      %2976 = vmatpush2.bf16.msra.mxu0 0
      %2977 = vmatprep.subr.bf16.mxu0 0
      %2978 = vmatpush2.bf16.msra.mxu0 0
      %2979 = vmatprep.subr.bf16.mxu0 0
      %2980 = vmatpush2.bf16.msra.mxu0 0
      %2981 = vmatprep.subr.bf16.mxu0 0
      %2982 = vmatpush2.bf16.msra.mxu0 0
      %2983 = vmatprep.subr.bf16.mxu0 0
      %2984 = vmatpush2.bf16.msra.mxu0 0
      %2985 = vmatprep.subr.bf16.mxu0 0
      %2986 = vmatpush2.bf16.msra.mxu0 0
      %2987 = vmatprep.subr.bf16.mxu0 0
      %2988 = vmatpush2.bf16.msra.mxu0 0
      %2989 = vmatprep.mubr.bf16.mxu0 0
      %2990 = vmatmul.mubr.bf16.gmra.mxu0 %v2901
      %v2991 = vpop.f32.mrf.mxu0
      %v2992 = vadd.f32 0.0, %v2991
      %v2993 = vpop.f32.mrf.mxu0
      %v2994 = vpop.f32.mrf.mxu0
      %v2995 = vadd.f32 0.0, %v2994
      %v2996 = vpop.f32.mrf.mxu0
      %2997 = vmatprep.mubr.bf16.mxu0 0
      %2998 = vmatmul.mubr.bf16.gmra.mxu0 %v2902
      %v2999 = vpop.f32.mrf.mxu0
      %v3000 = vadd.f32 0.0, %v2999
      %v3001 = vpop.f32.mrf.mxu0
      %v3002 = vpop.f32.mrf.mxu0
      %v3003 = vadd.f32 0.0, %v3002
      %v3004 = vpop.f32.mrf.mxu0
      %3005 = vmatprep.mubr.bf16.mxu0 0
      %3006 = vmatmul.mubr.bf16.gmra.mxu0 %v2903
      %v3007 = vpop.f32.mrf.mxu0
      %v3008 = vadd.f32 0.0, %v3007
      %v3009 = vpop.f32.mrf.mxu0
      %v3010 = vpop.f32.mrf.mxu0
      %v3011 = vadd.f32 0.0, %v3010
      %v3012 = vpop.f32.mrf.mxu0
      %3013 = vmatprep.mubr.bf16.mxu0 0
      %3014 = vmatmul.mubr.bf16.gmra.mxu0 %v2904
      %v3015 = vpop.f32.mrf.mxu0
      %v3016 = vadd.f32 0.0, %v3015
      %v3017 = vpop.f32.mrf.mxu0
      %v3018 = vpop.f32.mrf.mxu0
      %v3019 = vadd.f32 0.0, %v3018
      %v3020 = vpop.f32.mrf.mxu0
      %3021 = vdwg.mxu0
      %v3022 = vadd.f32 %v2740, %v2992
      %v3023 = vadd.f32 %v2741, %v2995
      %v3024 = vadd.f32 %v2742, %v3000
      %v3025 = vadd.f32 %v2743, %v3003
      %v3026 = vadd.f32 %v2744, %v3008
      %v3027 = vadd.f32 %v2745, %v3011
      %v3028 = vadd.f32 %v2746, %v3016
      %v3029 = vadd.f32 %v2747, %v3019
      %v3030 = vld [vmem:[%s4] sm:$0x1]
      %v3032 = vlaneseq
      %v3033 = vshrl.u32 %v3032, 7
      %v3034 = vsub.s32 0, %v3033
      %v3035 = vrot.slane %v3030, %v3034
      %v3037 = vmul.f32 %v3022, %v3035
      %v3038 = vmul.f32 %v3023, %v3035
      %v3039 = vmul.f32 %v3024, %v3035
      %v3040 = vmul.f32 %v3025, %v3035
      %v3041 = vmul.f32 %v3026, %v3035
      %v3042 = vmul.f32 %v3027, %v3035
      %v3043 = vmul.f32 %v3028, %v3035
      %v3044 = vmul.f32 %v3029, %v3035
      %v3045 = vld [vmem:[%s5] sm:$0x1]
      %v3047 = vlaneseq
      %v3048 = vshrl.u32 %v3047, 7
      %v3049 = vsub.s32 0, %v3048
      %v3050 = vrot.slane %v3045, %v3049
      %v3052 = vadd.f32 %v3037, %v3050
      %v3053 = vadd.f32 %v3038, %v3050
      %v3054 = vadd.f32 %v3039, %v3050
      %v3055 = vadd.f32 %v3040, %v3050
      %v3056 = vadd.f32 %v3041, %v3050
      %v3057 = vadd.f32 %v3042, %v3050
      %v3058 = vadd.f32 %v3043, %v3050
      %v3059 = vadd.f32 %v3044, %v3050
      %v3060 = vmax.f32 %v3052, 0.0
      %v3061 = vmax.f32 %v3053, 0.0
      %v3062 = vmax.f32 %v3054, 0.0
      %v3063 = vmax.f32 %v3055, 0.0
      %v3064 = vmax.f32 %v3056, 0.0
      %v3065 = vmax.f32 %v3057, 0.0
      %v3066 = vmax.f32 %v3058, 0.0
      %v3067 = vmax.f32 %v3059, 0.0
      %3068 = vst [vmem:[#allocation3] sm:$0xf] 0
      %3069 = vst [vmem:[#allocation3 + $0x4] sm:$0x1] 0
      %s3070 = scalar_lea.vmem [#allocation3], 72
      %3071 = vst [vmem:[%s3070] sm:$0xf] 0
      %3072 = vst [vmem:[%s3070 + $0x4] sm:$0x1] 0
      %v3073 = vld [vmem:[#allocation3] sm:$0x1]
      %v3074 = vsel %vm468, 0, %v3073
      %3075 = vst [vmem:[#allocation3] sm:$0x1] %v3074
      %v3076 = vld [vmem:[#allocation3 + $0x8] sm:$0x1]
      %v3077 = vsel %vm468, 0, %v3076
      %3078 = vst [vmem:[#allocation3 + $0x8] sm:$0x1] %v3077
      %v3079 = vld [vmem:[#allocation3 + $0x10] sm:$0x1]
      %v3080 = vsel %vm468, 0, %v3079
      %3081 = vst [vmem:[#allocation3 + $0x10] sm:$0x1] %v3080
      %v3082 = vld [vmem:[#allocation3 + $0x18] sm:$0x1]
      %v3083 = vsel %vm468, 0, %v3082
      %3084 = vst [vmem:[#allocation3 + $0x18] sm:$0x1] %v3083
      %v3085 = vld [vmem:[#allocation3 + $0x20] sm:$0x1]
      %v3086 = vsel %vm468, 0, %v3085
      %3087 = vst [vmem:[#allocation3 + $0x20] sm:$0x1] %v3086
      %v3088 = vld [vmem:[#allocation3 + $0x28] sm:$0x1]
      %v3089 = vsel %vm468, 0, %v3088
      %3090 = vst [vmem:[#allocation3 + $0x28] sm:$0x1] %v3089
      %v3091 = vld [vmem:[#allocation3 + $0x30] sm:$0x1]
      %v3092 = vsel %vm468, 0, %v3091
      %3093 = vst [vmem:[#allocation3 + $0x30] sm:$0x1] %v3092
      %v3094 = vld [vmem:[#allocation3 + $0x38] sm:$0x1]
      %v3095 = vsel %vm468, 0, %v3094
      %3096 = vst [vmem:[#allocation3 + $0x38] sm:$0x1] %v3095
      %v3097 = vld [vmem:[#allocation3 + $0x40] sm:$0x1]
      %v3098 = vsel %vm468, 0, %v3097
      %3099 = vst [vmem:[#allocation3 + $0x40] sm:$0x1] %v3098
      %v3100 = vld [vmem:[#allocation3 + $0x48] sm:$0x1]
      %v3101 = vsel %vm468, 0, %v3100
      %3102 = vst [vmem:[#allocation3 + $0x48] sm:$0x1] %v3101
      %vm3103 = vsmask.f32 7938
      %vm3104 = vmand %vm466, %vm3103
      %v3105 = vld [vmem:[#allocation3 + $0x4] sm:$0x1]
      %v3106 = vsel %vm3104, 0, %v3105
      %3107 = vst [vmem:[#allocation3 + $0x4] sm:$0x1] %v3106
      %v3108 = vld [vmem:[#allocation3 + $0xc] sm:$0x1]
      %v3109 = vsel %vm3104, 0, %v3108
      %3110 = vst [vmem:[#allocation3 + $0xc] sm:$0x1] %v3109
      %v3111 = vld [vmem:[#allocation3 + $0x14] sm:$0x1]
      %v3112 = vsel %vm3104, 0, %v3111
      %3113 = vst [vmem:[#allocation3 + $0x14] sm:$0x1] %v3112
      %v3114 = vld [vmem:[#allocation3 + $0x1c] sm:$0x1]
      %v3115 = vsel %vm3104, 0, %v3114
      %3116 = vst [vmem:[#allocation3 + $0x1c] sm:$0x1] %v3115
      %v3117 = vld [vmem:[#allocation3 + $0x24] sm:$0x1]
      %v3118 = vsel %vm3104, 0, %v3117
      %3119 = vst [vmem:[#allocation3 + $0x24] sm:$0x1] %v3118
      %v3120 = vld [vmem:[#allocation3 + $0x2c] sm:$0x1]
      %v3121 = vsel %vm3104, 0, %v3120
      %3122 = vst [vmem:[#allocation3 + $0x2c] sm:$0x1] %v3121
      %v3123 = vld [vmem:[#allocation3 + $0x34] sm:$0x1]
      %v3124 = vsel %vm3104, 0, %v3123
      %3125 = vst [vmem:[#allocation3 + $0x34] sm:$0x1] %v3124
      %v3126 = vld [vmem:[#allocation3 + $0x3c] sm:$0x1]
      %v3127 = vsel %vm3104, 0, %v3126
      %3128 = vst [vmem:[#allocation3 + $0x3c] sm:$0x1] %v3127
      %v3129 = vld [vmem:[#allocation3 + $0x44] sm:$0x1]
      %v3130 = vsel %vm3104, 0, %v3129
      %3131 = vst [vmem:[#allocation3 + $0x44] sm:$0x1] %v3130
      %v3132 = vld [vmem:[#allocation3 + $0x4c] sm:$0x1]
      %v3133 = vsel %vm3104, 0, %v3132
      %3134 = vst [vmem:[#allocation3 + $0x4c] sm:$0x1] %v3133
      %v3135 = vpack.c.bf16 %v3060, %v3060
      %v3136 = vpack.c.bf16 %v3061, %v3061
      %v3137 = vpack.c.bf16 %v3062, %v3062
      %v3138 = vpack.c.bf16 %v3063, %v3063
      %v3139 = vpack.c.bf16 %v3064, %v3064
      %v3140 = vpack.c.bf16 %v3065, %v3065
      %v3141 = vpack.c.bf16 %v3066, %v3066
      %v3142 = vpack.c.bf16 %v3067, %v3067
      %v3151 = vunpack.c.l.b16 %v3135
      %v3152 = vunpack.c.l.b16 %v3136
      %v3153 = vunpack.c.l.b16 %v3137
      %v3154 = vunpack.c.l.b16 %v3138
      %v3155 = vunpack.c.l.b16 %v3139
      %v3156 = vunpack.c.l.b16 %v3140
      %v3157 = vunpack.c.l.b16 %v3141
      %v3158 = vunpack.c.l.b16 %v3142
      %v3159 = vpack.c.b16 %v3151, %v3151
      %v3160 = vpack.c.b16 %v3152, %v3152
      %v3161 = vpack.c.b16 %v3153, %v3153
      %v3162 = vpack.c.b16 %v3154, %v3154
      %v3163 = vpack.c.b16 %v3155, %v3155
      %v3164 = vpack.c.b16 %v3156, %v3156
      %v3165 = vpack.c.b16 %v3157, %v3157
      %v3166 = vpack.c.b16 %v3158, %v3158
      %v3168 = vshrl.u32 %v3159, 16
      %v3170 = vrot.slane %v3168, 7
      %v3171 = vshll.u32 %v3159, 16
      %v3173 = vor.u32 %v3170, %v3171
      %v3174 = vrot.slane %v3170, 4
      %v3176 = vshrl.u32 %v3160, 16
      %v3178 = vrot.slane %v3176, 7
      %v3179 = vshll.u32 %v3160, 16
      %v3181 = vor.u32 %v3178, %v3179
      %v3182 = vrot.slane %v3178, 4
      %v3184 = vshrl.u32 %v3161, 16
      %v3186 = vrot.slane %v3184, 7
      %v3187 = vshll.u32 %v3161, 16
      %v3189 = vor.u32 %v3186, %v3187
      %v3190 = vrot.slane %v3186, 4
      %v3192 = vshrl.u32 %v3162, 16
      %v3194 = vrot.slane %v3192, 7
      %v3195 = vshll.u32 %v3162, 16
      %v3197 = vor.u32 %v3194, %v3195
      %v3198 = vrot.slane %v3194, 4
      %v3200 = vshrl.u32 %v3163, 16
      %v3202 = vrot.slane %v3200, 7
      %v3203 = vshll.u32 %v3163, 16
      %v3205 = vor.u32 %v3202, %v3203
      %v3206 = vrot.slane %v3202, 4
      %v3208 = vshrl.u32 %v3164, 16
      %v3210 = vrot.slane %v3208, 7
      %v3211 = vshll.u32 %v3164, 16
      %v3213 = vor.u32 %v3210, %v3211
      %v3214 = vrot.slane %v3210, 4
      %v3216 = vshrl.u32 %v3165, 16
      %v3218 = vrot.slane %v3216, 7
      %v3219 = vshll.u32 %v3165, 16
      %v3221 = vor.u32 %v3218, %v3219
      %v3222 = vrot.slane %v3218, 4
      %v3224 = vshrl.u32 %v3166, 16
      %v3226 = vrot.slane %v3224, 7
      %v3227 = vshll.u32 %v3166, 16
      %v3229 = vor.u32 %v3226, %v3227
      %v3230 = vrot.slane %v3226, 4
      %s3247 = scalar_lea.vmem [#allocation3], 8
      %vm3248 = vcmask 1043456
      %vm3249 = vmand %vm3248, %vm3103
      %v3250 = vld [vmem:[%s3247] sm:$0xf]
      %v3251 = vsel %vm3249, %v3173, %v3250
      %3252 = vst [vmem:[%s3247] sm:$0xf] %v3251
      %v3253 = vld [vmem:[%s3247 + $0x4] sm:$0x1]
      %v3254 = vsel %vm468, %v3174, %v3253
      %3255 = vst [vmem:[%s3247 + $0x4] sm:$0x1] %v3254
      %v3256 = vld [vmem:[%s3247 + $0x8] sm:$0xf]
      %v3257 = vsel %vm3249, %v3181, %v3256
      %3258 = vst [vmem:[%s3247 + $0x8] sm:$0xf] %v3257
      %v3259 = vld [vmem:[%s3247 + $0xc] sm:$0x1]
      %v3260 = vsel %vm468, %v3182, %v3259
      %3261 = vst [vmem:[%s3247 + $0xc] sm:$0x1] %v3260
      %v3262 = vld [vmem:[%s3247 + $0x10] sm:$0xf]
      %v3263 = vsel %vm3249, %v3189, %v3262
      %3264 = vst [vmem:[%s3247 + $0x10] sm:$0xf] %v3263
      %v3265 = vld [vmem:[%s3247 + $0x14] sm:$0x1]
      %v3266 = vsel %vm468, %v3190, %v3265
      %3267 = vst [vmem:[%s3247 + $0x14] sm:$0x1] %v3266
      %v3268 = vld [vmem:[%s3247 + $0x18] sm:$0xf]
      %v3269 = vsel %vm3249, %v3197, %v3268
      %3270 = vst [vmem:[%s3247 + $0x18] sm:$0xf] %v3269
      %v3271 = vld [vmem:[%s3247 + $0x1c] sm:$0x1]
      %v3272 = vsel %vm468, %v3198, %v3271
      %3273 = vst [vmem:[%s3247 + $0x1c] sm:$0x1] %v3272
      %v3274 = vld [vmem:[%s3247 + $0x20] sm:$0xf]
      %v3275 = vsel %vm3249, %v3205, %v3274
      %3276 = vst [vmem:[%s3247 + $0x20] sm:$0xf] %v3275
      %v3277 = vld [vmem:[%s3247 + $0x24] sm:$0x1]
      %v3278 = vsel %vm468, %v3206, %v3277
      %3279 = vst [vmem:[%s3247 + $0x24] sm:$0x1] %v3278
      %v3280 = vld [vmem:[%s3247 + $0x28] sm:$0xf]
      %v3281 = vsel %vm3249, %v3213, %v3280
      %3282 = vst [vmem:[%s3247 + $0x28] sm:$0xf] %v3281
      %v3283 = vld [vmem:[%s3247 + $0x2c] sm:$0x1]
      %v3284 = vsel %vm468, %v3214, %v3283
      %3285 = vst [vmem:[%s3247 + $0x2c] sm:$0x1] %v3284
      %v3286 = vld [vmem:[%s3247 + $0x30] sm:$0xf]
      %v3287 = vsel %vm3249, %v3221, %v3286
      %3288 = vst [vmem:[%s3247 + $0x30] sm:$0xf] %v3287
      %v3289 = vld [vmem:[%s3247 + $0x34] sm:$0x1]
      %v3290 = vsel %vm468, %v3222, %v3289
      %3291 = vst [vmem:[%s3247 + $0x34] sm:$0x1] %v3290
      %v3292 = vld [vmem:[%s3247 + $0x38] sm:$0xf]
      %v3293 = vsel %vm3249, %v3229, %v3292
      %3294 = vst [vmem:[%s3247 + $0x38] sm:$0xf] %v3293
      %v3295 = vld [vmem:[%s3247 + $0x3c] sm:$0x1]
      %v3296 = vsel %vm468, %v3230, %v3295
      %3297 = vst [vmem:[%s3247 + $0x3c] sm:$0x1] %v3296
      %v3298 = vld [vmem:[#allocation3] sm:$0xf]
      %v3299 = vld [vmem:[#allocation3 + $0x8] sm:$0xf]
      %v3300 = vld [vmem:[#allocation3 + $0x10] sm:$0xf]
      %v3301 = vld [vmem:[#allocation3 + $0x18] sm:$0xf]
      %v3302 = vld [vmem:[#allocation3 + $0x20] sm:$0xf]
      %v3303 = vld [vmem:[#allocation3 + $0x28] sm:$0xf]
      %v3304 = vld [vmem:[#allocation3 + $0x30] sm:$0xf]
      %v3305 = vld [vmem:[#allocation3 + $0x38] sm:$0xf]
      %v3306 = vld [vmem:[%s6] sm:$0xf]
      %v3307 = vld [vmem:[%s6 + $0x4] sm:$0xf]
      %v3308 = vld [vmem:[%s6 + $0x8] sm:$0xf]
      %v3309 = vld [vmem:[%s6 + $0xc] sm:$0xf]
      %v3310 = vld [vmem:[%s6 + $0x10] sm:$0xf]
      %v3311 = vld [vmem:[%s6 + $0x14] sm:$0xf]
      %v3312 = vld [vmem:[%s6 + $0x18] sm:$0xf]
      %v3313 = vld [vmem:[%s6 + $0x1c] sm:$0xf]
      %v3314 = vld [vmem:[%s6 + $0x20] sm:$0xf]
      %v3315 = vld [vmem:[%s6 + $0x24] sm:$0xf]
      %v3316 = vld [vmem:[%s6 + $0x28] sm:$0xf]
      %v3317 = vld [vmem:[%s6 + $0x2c] sm:$0xf]
      %v3318 = vld [vmem:[%s6 + $0x30] sm:$0xf]
      %v3319 = vld [vmem:[%s6 + $0x34] sm:$0xf]
      %v3320 = vld [vmem:[%s6 + $0x38] sm:$0xf]
      %v3321 = vld [vmem:[%s6 + $0x3c] sm:$0xf]
      %v3322 = vld [vmem:[#allocation3 + $0x4] sm:$0x1]
      %v3323 = vld [vmem:[#allocation3 + $0xc] sm:$0x1]
      %v3324 = vld [vmem:[#allocation3 + $0x14] sm:$0x1]
      %v3325 = vld [vmem:[#allocation3 + $0x1c] sm:$0x1]
      %v3326 = vld [vmem:[#allocation3 + $0x24] sm:$0x1]
      %v3327 = vld [vmem:[#allocation3 + $0x2c] sm:$0x1]
      %v3328 = vld [vmem:[#allocation3 + $0x34] sm:$0x1]
      %v3329 = vld [vmem:[#allocation3 + $0x3c] sm:$0x1]
      %v3331 = vshrl.u32 %v3298, 16
      %v3333 = vrot.slane %v3331, 4
      %v3334 = vshll.u32 %v3298, 16
      %v3336 = vrot.slane %v3334, 5
      %v3337 = vor.u32 %v3333, %v3336
      %v3338 = vrot.slane %v3337, 4
      %v3340 = vshll.u32 %v3322, 16
      %v3342 = vrot.slane %v3340, 5
      %v3343 = vsel %vm1517, %v3338, %v3342
      %v3345 = vshrl.u32 %v3299, 16
      %v3347 = vrot.slane %v3345, 4
      %v3348 = vshll.u32 %v3299, 16
      %v3350 = vrot.slane %v3348, 5
      %v3351 = vor.u32 %v3347, %v3350
      %v3352 = vrot.slane %v3351, 4
      %v3354 = vshll.u32 %v3323, 16
      %v3356 = vrot.slane %v3354, 5
      %v3357 = vsel %vm1517, %v3352, %v3356
      %v3359 = vshrl.u32 %v3300, 16
      %v3361 = vrot.slane %v3359, 4
      %v3362 = vshll.u32 %v3300, 16
      %v3364 = vrot.slane %v3362, 5
      %v3365 = vor.u32 %v3361, %v3364
      %v3366 = vrot.slane %v3365, 4
      %v3368 = vshll.u32 %v3324, 16
      %v3370 = vrot.slane %v3368, 5
      %v3371 = vsel %vm1517, %v3366, %v3370
      %v3373 = vshrl.u32 %v3301, 16
      %v3375 = vrot.slane %v3373, 4
      %v3376 = vshll.u32 %v3301, 16
      %v3378 = vrot.slane %v3376, 5
      %v3379 = vor.u32 %v3375, %v3378
      %v3380 = vrot.slane %v3379, 4
      %v3382 = vshll.u32 %v3325, 16
      %v3384 = vrot.slane %v3382, 5
      %v3385 = vsel %vm1517, %v3380, %v3384
      %v3387 = vshrl.u32 %v3302, 16
      %v3389 = vrot.slane %v3387, 4
      %v3390 = vshll.u32 %v3302, 16
      %v3392 = vrot.slane %v3390, 5
      %v3393 = vor.u32 %v3389, %v3392
      %v3394 = vrot.slane %v3393, 4
      %v3396 = vshll.u32 %v3326, 16
      %v3398 = vrot.slane %v3396, 5
      %v3399 = vsel %vm1517, %v3394, %v3398
      %v3401 = vshrl.u32 %v3303, 16
      %v3403 = vrot.slane %v3401, 4
      %v3404 = vshll.u32 %v3303, 16
      %v3406 = vrot.slane %v3404, 5
      %v3407 = vor.u32 %v3403, %v3406
      %v3408 = vrot.slane %v3407, 4
      %v3410 = vshll.u32 %v3327, 16
      %v3412 = vrot.slane %v3410, 5
      %v3413 = vsel %vm1517, %v3408, %v3412
      %v3415 = vshrl.u32 %v3304, 16
      %v3417 = vrot.slane %v3415, 4
      %v3418 = vshll.u32 %v3304, 16
      %v3420 = vrot.slane %v3418, 5
      %v3421 = vor.u32 %v3417, %v3420
      %v3422 = vrot.slane %v3421, 4
      %v3424 = vshll.u32 %v3328, 16
      %v3426 = vrot.slane %v3424, 5
      %v3427 = vsel %vm1517, %v3422, %v3426
      %v3429 = vshrl.u32 %v3305, 16
      %v3431 = vrot.slane %v3429, 4
      %v3432 = vshll.u32 %v3305, 16
      %v3434 = vrot.slane %v3432, 5
      %v3435 = vor.u32 %v3431, %v3434
      %v3436 = vrot.slane %v3435, 4
      %v3438 = vshll.u32 %v3329, 16
      %v3440 = vrot.slane %v3438, 5
      %v3441 = vsel %vm1517, %v3436, %v3440
      %s3442 = scalar_lea.vmem %s6, 64
      %v3443 = vld [vmem:[%s3442] sm:$0xf]
      %v3444 = vld [vmem:[%s3442 + $0x4] sm:$0xf]
      %v3445 = vld [vmem:[%s3442 + $0x8] sm:$0xf]
      %v3446 = vld [vmem:[%s3442 + $0xc] sm:$0xf]
      %v3447 = vld [vmem:[%s3442 + $0x10] sm:$0xf]
      %v3448 = vld [vmem:[%s3442 + $0x14] sm:$0xf]
      %v3449 = vld [vmem:[%s3442 + $0x18] sm:$0xf]
      %v3450 = vld [vmem:[%s3442 + $0x1c] sm:$0xf]
      %v3451 = vld [vmem:[%s3442 + $0x20] sm:$0xf]
      %v3452 = vld [vmem:[%s3442 + $0x24] sm:$0xf]
      %v3453 = vld [vmem:[%s3442 + $0x28] sm:$0xf]
      %v3454 = vld [vmem:[%s3442 + $0x2c] sm:$0xf]
      %v3455 = vld [vmem:[%s3442 + $0x30] sm:$0xf]
      %v3456 = vld [vmem:[%s3442 + $0x34] sm:$0xf]
      %v3457 = vld [vmem:[%s3442 + $0x38] sm:$0xf]
      %v3458 = vld [vmem:[%s3442 + $0x3c] sm:$0xf]
      %v3459 = vunpack.c.l.b16 %v3343
      %v3460 = vunpack.c.l.b16 %v3357
      %v3461 = vunpack.c.l.b16 %v3371
      %v3462 = vunpack.c.l.b16 %v3385
      %v3463 = vunpack.c.l.b16 %v3399
      %v3464 = vunpack.c.l.b16 %v3413
      %v3465 = vunpack.c.l.b16 %v3427
      %v3466 = vunpack.c.l.b16 %v3441
      %v3467 = vpack.c.b16 %v3460, %v3459
      %v3468 = vpack.c.b16 %v3462, %v3461
      %v3469 = vpack.c.b16 %v3464, %v3463
      %v3470 = vpack.c.b16 %v3466, %v3465
      %v3491 = vunpack.c.l.b16 %v3443
      %v3492 = vunpack.c.l.b16 %v3444
      %v3493 = vunpack.c.l.b16 %v3445
      %v3494 = vunpack.c.l.b16 %v3446
      %v3495 = vunpack.c.l.b16 %v3447
      %v3496 = vunpack.c.l.b16 %v3448
      %v3497 = vunpack.c.l.b16 %v3449
      %v3498 = vunpack.c.l.b16 %v3450
      %v3499 = vunpack.c.l.b16 %v3451
      %v3500 = vunpack.c.l.b16 %v3452
      %v3501 = vunpack.c.l.b16 %v3453
      %v3502 = vunpack.c.l.b16 %v3454
      %v3503 = vunpack.c.l.b16 %v3455
      %v3504 = vunpack.c.l.b16 %v3456
      %v3505 = vunpack.c.l.b16 %v3457
      %v3506 = vunpack.c.l.b16 %v3458
      %v3507 = vpack.c.b16 %v3492, %v3491
      %v3508 = vpack.c.b16 %v3494, %v3493
      %v3509 = vpack.c.b16 %v3496, %v3495
      %v3510 = vpack.c.b16 %v3498, %v3497
      %v3511 = vpack.c.b16 %v3500, %v3499
      %v3512 = vpack.c.b16 %v3502, %v3501
      %v3513 = vpack.c.b16 %v3504, %v3503
      %v3514 = vpack.c.b16 %v3506, %v3505
      %3523 = vmatprep.subr.bf16.mxu0 0
      %3524 = vmatpush1.bf16.msra.mxu0 %v3514
      %3525 = vmatprep.subr.bf16.mxu0 0
      %3526 = vmatpush1.bf16.msra.mxu0 %v3513
      %3527 = vmatprep.subr.bf16.mxu0 0
      %3528 = vmatpush1.bf16.msra.mxu0 %v3512
      %3529 = vmatprep.subr.bf16.mxu0 0
      %3530 = vmatpush1.bf16.msra.mxu0 %v3511
      %3531 = vmatprep.subr.bf16.mxu0 0
      %3532 = vmatpush1.bf16.msra.mxu0 %v3510
      %3533 = vmatprep.subr.bf16.mxu0 0
      %3534 = vmatpush1.bf16.msra.mxu0 %v3509
      %3535 = vmatprep.subr.bf16.mxu0 0
      %3536 = vmatpush1.bf16.msra.mxu0 %v3508
      %3537 = vmatprep.subr.bf16.mxu0 0
      %3538 = vmatpush1.bf16.msra.mxu0 %v3507
      %3539 = vmatprep.subr.bf16.mxu0 0
      %3540 = vmatpush2.bf16.msra.mxu0 0
      %3541 = vmatprep.subr.bf16.mxu0 0
      %3542 = vmatpush2.bf16.msra.mxu0 0
      %3543 = vmatprep.subr.bf16.mxu0 0
      %3544 = vmatpush2.bf16.msra.mxu0 0
      %3545 = vmatprep.subr.bf16.mxu0 0
      %3546 = vmatpush2.bf16.msra.mxu0 0
      %3547 = vmatprep.subr.bf16.mxu0 0
      %3548 = vmatpush2.bf16.msra.mxu0 0
      %3549 = vmatprep.subr.bf16.mxu0 0
      %3550 = vmatpush2.bf16.msra.mxu0 0
      %3551 = vmatprep.subr.bf16.mxu0 0
      %3552 = vmatpush2.bf16.msra.mxu0 0
      %3553 = vmatprep.subr.bf16.mxu0 0
      %3554 = vmatpush2.bf16.msra.mxu0 0
      %3555 = vmatprep.mubr.bf16.mxu0 0
      %3556 = vmatmul.mubr.bf16.gmra.mxu0 %v3467
      %v3557 = vpop.f32.mrf.mxu0
      %v3558 = vadd.f32 0.0, %v3557
      %v3559 = vpop.f32.mrf.mxu0
      %v3560 = vpop.f32.mrf.mxu0
      %v3561 = vadd.f32 0.0, %v3560
      %v3562 = vpop.f32.mrf.mxu0
      %3563 = vmatprep.mubr.bf16.mxu0 0
      %3564 = vmatmul.mubr.bf16.gmra.mxu0 %v3468
      %v3565 = vpop.f32.mrf.mxu0
      %v3566 = vadd.f32 0.0, %v3565
      %v3567 = vpop.f32.mrf.mxu0
      %v3568 = vpop.f32.mrf.mxu0
      %v3569 = vadd.f32 0.0, %v3568
      %v3570 = vpop.f32.mrf.mxu0
      %3571 = vmatprep.mubr.bf16.mxu0 0
      %3572 = vmatmul.mubr.bf16.gmra.mxu0 %v3469
      %v3573 = vpop.f32.mrf.mxu0
      %v3574 = vadd.f32 0.0, %v3573
      %v3575 = vpop.f32.mrf.mxu0
      %v3576 = vpop.f32.mrf.mxu0
      %v3577 = vadd.f32 0.0, %v3576
      %v3578 = vpop.f32.mrf.mxu0
      %3579 = vmatprep.mubr.bf16.mxu0 0
      %3580 = vmatmul.mubr.bf16.gmra.mxu0 %v3470
      %v3581 = vpop.f32.mrf.mxu0
      %v3582 = vadd.f32 0.0, %v3581
      %v3583 = vpop.f32.mrf.mxu0
      %v3584 = vpop.f32.mrf.mxu0
      %v3585 = vadd.f32 0.0, %v3584
      %v3586 = vpop.f32.mrf.mxu0
      %3587 = vdwg.mxu0
      %v3596 = vunpack.c.l.b16 %v3298
      %v3597 = vunpack.c.l.b16 %v3299
      %v3598 = vunpack.c.l.b16 %v3300
      %v3599 = vunpack.c.l.b16 %v3301
      %v3600 = vunpack.c.l.b16 %v3302
      %v3601 = vunpack.c.l.b16 %v3303
      %v3602 = vunpack.c.l.b16 %v3304
      %v3603 = vunpack.c.l.b16 %v3305
      %v3604 = vpack.c.b16 %v3597, %v3596
      %v3605 = vpack.c.b16 %v3599, %v3598
      %v3606 = vpack.c.b16 %v3601, %v3600
      %v3607 = vpack.c.b16 %v3603, %v3602
      %v3628 = vunpack.c.l.b16 %v3306
      %v3629 = vunpack.c.l.b16 %v3307
      %v3630 = vunpack.c.l.b16 %v3308
      %v3631 = vunpack.c.l.b16 %v3309
      %v3632 = vunpack.c.l.b16 %v3310
      %v3633 = vunpack.c.l.b16 %v3311
      %v3634 = vunpack.c.l.b16 %v3312
      %v3635 = vunpack.c.l.b16 %v3313
      %v3636 = vunpack.c.l.b16 %v3314
      %v3637 = vunpack.c.l.b16 %v3315
      %v3638 = vunpack.c.l.b16 %v3316
      %v3639 = vunpack.c.l.b16 %v3317
      %v3640 = vunpack.c.l.b16 %v3318
      %v3641 = vunpack.c.l.b16 %v3319
      %v3642 = vunpack.c.l.b16 %v3320
      %v3643 = vunpack.c.l.b16 %v3321
      %v3644 = vpack.c.b16 %v3629, %v3628
      %v3645 = vpack.c.b16 %v3631, %v3630
      %v3646 = vpack.c.b16 %v3633, %v3632
      %v3647 = vpack.c.b16 %v3635, %v3634
      %v3648 = vpack.c.b16 %v3637, %v3636
      %v3649 = vpack.c.b16 %v3639, %v3638
      %v3650 = vpack.c.b16 %v3641, %v3640
      %v3651 = vpack.c.b16 %v3643, %v3642
      %3660 = vmatprep.subr.bf16.mxu0 0
      %3661 = vmatpush1.bf16.msra.mxu0 %v3651
      %3662 = vmatprep.subr.bf16.mxu0 0
      %3663 = vmatpush1.bf16.msra.mxu0 %v3650
      %3664 = vmatprep.subr.bf16.mxu0 0
      %3665 = vmatpush1.bf16.msra.mxu0 %v3649
      %3666 = vmatprep.subr.bf16.mxu0 0
      %3667 = vmatpush1.bf16.msra.mxu0 %v3648
      %3668 = vmatprep.subr.bf16.mxu0 0
      %3669 = vmatpush1.bf16.msra.mxu0 %v3647
      %3670 = vmatprep.subr.bf16.mxu0 0
      %3671 = vmatpush1.bf16.msra.mxu0 %v3646
      %3672 = vmatprep.subr.bf16.mxu0 0
      %3673 = vmatpush1.bf16.msra.mxu0 %v3645
      %3674 = vmatprep.subr.bf16.mxu0 0
      %3675 = vmatpush1.bf16.msra.mxu0 %v3644
      %3676 = vmatprep.subr.bf16.mxu0 0
      %3677 = vmatpush2.bf16.msra.mxu0 0
      %3678 = vmatprep.subr.bf16.mxu0 0
      %3679 = vmatpush2.bf16.msra.mxu0 0
      %3680 = vmatprep.subr.bf16.mxu0 0
      %3681 = vmatpush2.bf16.msra.mxu0 0
      %3682 = vmatprep.subr.bf16.mxu0 0
      %3683 = vmatpush2.bf16.msra.mxu0 0
      %3684 = vmatprep.subr.bf16.mxu0 0
      %3685 = vmatpush2.bf16.msra.mxu0 0
      %3686 = vmatprep.subr.bf16.mxu0 0
      %3687 = vmatpush2.bf16.msra.mxu0 0
      %3688 = vmatprep.subr.bf16.mxu0 0
      %3689 = vmatpush2.bf16.msra.mxu0 0
      %3690 = vmatprep.subr.bf16.mxu0 0
      %3691 = vmatpush2.bf16.msra.mxu0 0
      %3692 = vmatprep.mubr.bf16.mxu0 0
      %3693 = vmatmul.mubr.bf16.gmra.mxu0 %v3604
      %v3694 = vpop.f32.mrf.mxu0
      %v3695 = vadd.f32 %v3558, %v3694
      %v3696 = vpop.f32.mrf.mxu0
      %v3697 = vpop.f32.mrf.mxu0
      %v3698 = vadd.f32 %v3561, %v3697
      %v3699 = vpop.f32.mrf.mxu0
      %3700 = vmatprep.mubr.bf16.mxu0 0
      %3701 = vmatmul.mubr.bf16.gmra.mxu0 %v3605
      %v3702 = vpop.f32.mrf.mxu0
      %v3703 = vadd.f32 %v3566, %v3702
      %v3704 = vpop.f32.mrf.mxu0
      %v3705 = vpop.f32.mrf.mxu0
      %v3706 = vadd.f32 %v3569, %v3705
      %v3707 = vpop.f32.mrf.mxu0
      %3708 = vmatprep.mubr.bf16.mxu0 0
      %3709 = vmatmul.mubr.bf16.gmra.mxu0 %v3606
      %v3710 = vpop.f32.mrf.mxu0
      %v3711 = vadd.f32 %v3574, %v3710
      %v3712 = vpop.f32.mrf.mxu0
      %v3713 = vpop.f32.mrf.mxu0
      %v3714 = vadd.f32 %v3577, %v3713
      %v3715 = vpop.f32.mrf.mxu0
      %3716 = vmatprep.mubr.bf16.mxu0 0
      %3717 = vmatmul.mubr.bf16.gmra.mxu0 %v3607
      %v3718 = vpop.f32.mrf.mxu0
      %v3719 = vadd.f32 %v3582, %v3718
      %v3720 = vpop.f32.mrf.mxu0
      %v3721 = vpop.f32.mrf.mxu0
      %v3722 = vadd.f32 %v3585, %v3721
      %v3723 = vpop.f32.mrf.mxu0
      %3724 = vdwg.mxu0
      %v3725 = vld [vmem:[#allocation3] sm:$0xe]
      %v3726 = vld [vmem:[#allocation3 + $0x8] sm:$0xe]
      %v3727 = vld [vmem:[#allocation3 + $0x10] sm:$0xe]
      %v3728 = vld [vmem:[#allocation3 + $0x18] sm:$0xe]
      %v3729 = vld [vmem:[#allocation3 + $0x20] sm:$0xe]
      %v3730 = vld [vmem:[#allocation3 + $0x28] sm:$0xe]
      %v3731 = vld [vmem:[#allocation3 + $0x30] sm:$0xe]
      %v3732 = vld [vmem:[#allocation3 + $0x38] sm:$0xe]
      %vm3749 = vcmask 1042432
      %vm3750 = vcmask 1046532
      %vm3751 = vmor %vm3749, %vm3750
      %v3752 = vrot.slane %v3725, 5
      %v3753 = vrot.slane %v3752, 4
      %v3754 = vrot.slane %v3322, 5
      %v3755 = vsel %vm3751, %v3753, %v3754
      %v3756 = vrot.slane %v3726, 5
      %v3757 = vrot.slane %v3756, 4
      %v3758 = vrot.slane %v3323, 5
      %v3759 = vsel %vm3751, %v3757, %v3758
      %v3760 = vrot.slane %v3727, 5
      %v3761 = vrot.slane %v3760, 4
      %v3762 = vrot.slane %v3324, 5
      %v3763 = vsel %vm3751, %v3761, %v3762
      %v3764 = vrot.slane %v3728, 5
      %v3765 = vrot.slane %v3764, 4
      %v3766 = vrot.slane %v3325, 5
      %v3767 = vsel %vm3751, %v3765, %v3766
      %v3768 = vrot.slane %v3729, 5
      %v3769 = vrot.slane %v3768, 4
      %v3770 = vrot.slane %v3326, 5
      %v3771 = vsel %vm3751, %v3769, %v3770
      %v3772 = vrot.slane %v3730, 5
      %v3773 = vrot.slane %v3772, 4
      %v3774 = vrot.slane %v3327, 5
      %v3775 = vsel %vm3751, %v3773, %v3774
      %v3776 = vrot.slane %v3731, 5
      %v3777 = vrot.slane %v3776, 4
      %v3778 = vrot.slane %v3328, 5
      %v3779 = vsel %vm3751, %v3777, %v3778
      %v3780 = vrot.slane %v3732, 5
      %v3781 = vrot.slane %v3780, 4
      %v3782 = vrot.slane %v3329, 5
      %v3783 = vsel %vm3751, %v3781, %v3782
      %s3784 = scalar_lea.vmem %s6, 128
      %v3785 = vld [vmem:[%s3784] sm:$0xf]
      %v3786 = vld [vmem:[%s3784 + $0x4] sm:$0xf]
      %v3787 = vld [vmem:[%s3784 + $0x8] sm:$0xf]
      %v3788 = vld [vmem:[%s3784 + $0xc] sm:$0xf]
      %v3789 = vld [vmem:[%s3784 + $0x10] sm:$0xf]
      %v3790 = vld [vmem:[%s3784 + $0x14] sm:$0xf]
      %v3791 = vld [vmem:[%s3784 + $0x18] sm:$0xf]
      %v3792 = vld [vmem:[%s3784 + $0x1c] sm:$0xf]
      %v3793 = vld [vmem:[%s3784 + $0x20] sm:$0xf]
      %v3794 = vld [vmem:[%s3784 + $0x24] sm:$0xf]
      %v3795 = vld [vmem:[%s3784 + $0x28] sm:$0xf]
      %v3796 = vld [vmem:[%s3784 + $0x2c] sm:$0xf]
      %v3797 = vld [vmem:[%s3784 + $0x30] sm:$0xf]
      %v3798 = vld [vmem:[%s3784 + $0x34] sm:$0xf]
      %v3799 = vld [vmem:[%s3784 + $0x38] sm:$0xf]
      %v3800 = vld [vmem:[%s3784 + $0x3c] sm:$0xf]
      %v3801 = vunpack.c.l.b16 %v3755
      %v3802 = vunpack.c.l.b16 %v3759
      %v3803 = vunpack.c.l.b16 %v3763
      %v3804 = vunpack.c.l.b16 %v3767
      %v3805 = vunpack.c.l.b16 %v3771
      %v3806 = vunpack.c.l.b16 %v3775
      %v3807 = vunpack.c.l.b16 %v3779
      %v3808 = vunpack.c.l.b16 %v3783
      %v3809 = vpack.c.b16 %v3802, %v3801
      %v3810 = vpack.c.b16 %v3804, %v3803
      %v3811 = vpack.c.b16 %v3806, %v3805
      %v3812 = vpack.c.b16 %v3808, %v3807
      %v3833 = vunpack.c.l.b16 %v3785
      %v3834 = vunpack.c.l.b16 %v3786
      %v3835 = vunpack.c.l.b16 %v3787
      %v3836 = vunpack.c.l.b16 %v3788
      %v3837 = vunpack.c.l.b16 %v3789
      %v3838 = vunpack.c.l.b16 %v3790
      %v3839 = vunpack.c.l.b16 %v3791
      %v3840 = vunpack.c.l.b16 %v3792
      %v3841 = vunpack.c.l.b16 %v3793
      %v3842 = vunpack.c.l.b16 %v3794
      %v3843 = vunpack.c.l.b16 %v3795
      %v3844 = vunpack.c.l.b16 %v3796
      %v3845 = vunpack.c.l.b16 %v3797
      %v3846 = vunpack.c.l.b16 %v3798
      %v3847 = vunpack.c.l.b16 %v3799
      %v3848 = vunpack.c.l.b16 %v3800
      %v3849 = vpack.c.b16 %v3834, %v3833
      %v3850 = vpack.c.b16 %v3836, %v3835
      %v3851 = vpack.c.b16 %v3838, %v3837
      %v3852 = vpack.c.b16 %v3840, %v3839
      %v3853 = vpack.c.b16 %v3842, %v3841
      %v3854 = vpack.c.b16 %v3844, %v3843
      %v3855 = vpack.c.b16 %v3846, %v3845
      %v3856 = vpack.c.b16 %v3848, %v3847
      %3865 = vmatprep.subr.bf16.mxu0 0
      %3866 = vmatpush1.bf16.msra.mxu0 %v3856
      %3867 = vmatprep.subr.bf16.mxu0 0
      %3868 = vmatpush1.bf16.msra.mxu0 %v3855
      %3869 = vmatprep.subr.bf16.mxu0 0
      %3870 = vmatpush1.bf16.msra.mxu0 %v3854
      %3871 = vmatprep.subr.bf16.mxu0 0
      %3872 = vmatpush1.bf16.msra.mxu0 %v3853
      %3873 = vmatprep.subr.bf16.mxu0 0
      %3874 = vmatpush1.bf16.msra.mxu0 %v3852
      %3875 = vmatprep.subr.bf16.mxu0 0
      %3876 = vmatpush1.bf16.msra.mxu0 %v3851
      %3877 = vmatprep.subr.bf16.mxu0 0
      %3878 = vmatpush1.bf16.msra.mxu0 %v3850
      %3879 = vmatprep.subr.bf16.mxu0 0
      %3880 = vmatpush1.bf16.msra.mxu0 %v3849
      %3881 = vmatprep.subr.bf16.mxu0 0
      %3882 = vmatpush2.bf16.msra.mxu0 0
      %3883 = vmatprep.subr.bf16.mxu0 0
      %3884 = vmatpush2.bf16.msra.mxu0 0
      %3885 = vmatprep.subr.bf16.mxu0 0
      %3886 = vmatpush2.bf16.msra.mxu0 0
      %3887 = vmatprep.subr.bf16.mxu0 0
      %3888 = vmatpush2.bf16.msra.mxu0 0
      %3889 = vmatprep.subr.bf16.mxu0 0
      %3890 = vmatpush2.bf16.msra.mxu0 0
      %3891 = vmatprep.subr.bf16.mxu0 0
      %3892 = vmatpush2.bf16.msra.mxu0 0
      %3893 = vmatprep.subr.bf16.mxu0 0
      %3894 = vmatpush2.bf16.msra.mxu0 0
      %3895 = vmatprep.subr.bf16.mxu0 0
      %3896 = vmatpush2.bf16.msra.mxu0 0
      %3897 = vmatprep.mubr.bf16.mxu0 0
      %3898 = vmatmul.mubr.bf16.gmra.mxu0 %v3809
      %v3899 = vpop.f32.mrf.mxu0
      %v3900 = vadd.f32 0.0, %v3899
      %v3901 = vpop.f32.mrf.mxu0
      %v3902 = vpop.f32.mrf.mxu0
      %v3903 = vadd.f32 0.0, %v3902
      %v3904 = vpop.f32.mrf.mxu0
      %3905 = vmatprep.mubr.bf16.mxu0 0
      %3906 = vmatmul.mubr.bf16.gmra.mxu0 %v3810
      %v3907 = vpop.f32.mrf.mxu0
      %v3908 = vadd.f32 0.0, %v3907
      %v3909 = vpop.f32.mrf.mxu0
      %v3910 = vpop.f32.mrf.mxu0
      %v3911 = vadd.f32 0.0, %v3910
      %v3912 = vpop.f32.mrf.mxu0
      %3913 = vmatprep.mubr.bf16.mxu0 0
      %3914 = vmatmul.mubr.bf16.gmra.mxu0 %v3811
      %v3915 = vpop.f32.mrf.mxu0
      %v3916 = vadd.f32 0.0, %v3915
      %v3917 = vpop.f32.mrf.mxu0
      %v3918 = vpop.f32.mrf.mxu0
      %v3919 = vadd.f32 0.0, %v3918
      %v3920 = vpop.f32.mrf.mxu0
      %3921 = vmatprep.mubr.bf16.mxu0 0
      %3922 = vmatmul.mubr.bf16.gmra.mxu0 %v3812
      %v3923 = vpop.f32.mrf.mxu0
      %v3924 = vadd.f32 0.0, %v3923
      %v3925 = vpop.f32.mrf.mxu0
      %v3926 = vpop.f32.mrf.mxu0
      %v3927 = vadd.f32 0.0, %v3926
      %v3928 = vpop.f32.mrf.mxu0
      %3929 = vdwg.mxu0
      %v3930 = vadd.f32 %v3695, %v3900
      %v3931 = vadd.f32 %v3698, %v3903
      %v3932 = vadd.f32 %v3703, %v3908
      %v3933 = vadd.f32 %v3706, %v3911
      %v3934 = vadd.f32 %v3711, %v3916
      %v3935 = vadd.f32 %v3714, %v3919
      %v3936 = vadd.f32 %v3719, %v3924
      %v3937 = vadd.f32 %v3722, %v3927
      %v3938 = vld [vmem:[%s3247] sm:$0xf]
      %v3939 = vld [vmem:[%s3247 + $0x8] sm:$0xf]
      %v3940 = vld [vmem:[%s3247 + $0x10] sm:$0xf]
      %v3941 = vld [vmem:[%s3247 + $0x18] sm:$0xf]
      %v3942 = vld [vmem:[%s3247 + $0x20] sm:$0xf]
      %v3943 = vld [vmem:[%s3247 + $0x28] sm:$0xf]
      %v3944 = vld [vmem:[%s3247 + $0x30] sm:$0xf]
      %v3945 = vld [vmem:[%s3247 + $0x38] sm:$0xf]
      %s3946 = scalar_lea.vmem %s6, 192
      %v3947 = vld [vmem:[%s3946] sm:$0xf]
      %v3948 = vld [vmem:[%s3946 + $0x4] sm:$0xf]
      %v3949 = vld [vmem:[%s3946 + $0x8] sm:$0xf]
      %v3950 = vld [vmem:[%s3946 + $0xc] sm:$0xf]
      %v3951 = vld [vmem:[%s3946 + $0x10] sm:$0xf]
      %v3952 = vld [vmem:[%s3946 + $0x14] sm:$0xf]
      %v3953 = vld [vmem:[%s3946 + $0x18] sm:$0xf]
      %v3954 = vld [vmem:[%s3946 + $0x1c] sm:$0xf]
      %v3955 = vld [vmem:[%s3946 + $0x20] sm:$0xf]
      %v3956 = vld [vmem:[%s3946 + $0x24] sm:$0xf]
      %v3957 = vld [vmem:[%s3946 + $0x28] sm:$0xf]
      %v3958 = vld [vmem:[%s3946 + $0x2c] sm:$0xf]
      %v3959 = vld [vmem:[%s3946 + $0x30] sm:$0xf]
      %v3960 = vld [vmem:[%s3946 + $0x34] sm:$0xf]
      %v3961 = vld [vmem:[%s3946 + $0x38] sm:$0xf]
      %v3962 = vld [vmem:[%s3946 + $0x3c] sm:$0xf]
      %v3971 = vunpack.c.l.b16 %v3938
      %v3972 = vunpack.c.l.b16 %v3939
      %v3973 = vunpack.c.l.b16 %v3940
      %v3974 = vunpack.c.l.b16 %v3941
      %v3975 = vunpack.c.l.b16 %v3942
      %v3976 = vunpack.c.l.b16 %v3943
      %v3977 = vunpack.c.l.b16 %v3944
      %v3978 = vunpack.c.l.b16 %v3945
      %v3979 = vpack.c.b16 %v3972, %v3971
      %v3980 = vpack.c.b16 %v3974, %v3973
      %v3981 = vpack.c.b16 %v3976, %v3975
      %v3982 = vpack.c.b16 %v3978, %v3977
      %v4003 = vunpack.c.l.b16 %v3947
      %v4004 = vunpack.c.l.b16 %v3948
      %v4005 = vunpack.c.l.b16 %v3949
      %v4006 = vunpack.c.l.b16 %v3950
      %v4007 = vunpack.c.l.b16 %v3951
      %v4008 = vunpack.c.l.b16 %v3952
      %v4009 = vunpack.c.l.b16 %v3953
      %v4010 = vunpack.c.l.b16 %v3954
      %v4011 = vunpack.c.l.b16 %v3955
      %v4012 = vunpack.c.l.b16 %v3956
      %v4013 = vunpack.c.l.b16 %v3957
      %v4014 = vunpack.c.l.b16 %v3958
      %v4015 = vunpack.c.l.b16 %v3959
      %v4016 = vunpack.c.l.b16 %v3960
      %v4017 = vunpack.c.l.b16 %v3961
      %v4018 = vunpack.c.l.b16 %v3962
      %v4019 = vpack.c.b16 %v4004, %v4003
      %v4020 = vpack.c.b16 %v4006, %v4005
      %v4021 = vpack.c.b16 %v4008, %v4007
      %v4022 = vpack.c.b16 %v4010, %v4009
      %v4023 = vpack.c.b16 %v4012, %v4011
      %v4024 = vpack.c.b16 %v4014, %v4013
      %v4025 = vpack.c.b16 %v4016, %v4015
      %v4026 = vpack.c.b16 %v4018, %v4017
      %4035 = vmatprep.subr.bf16.mxu0 0
      %4036 = vmatpush1.bf16.msra.mxu0 %v4026
      %4037 = vmatprep.subr.bf16.mxu0 0
      %4038 = vmatpush1.bf16.msra.mxu0 %v4025
      %4039 = vmatprep.subr.bf16.mxu0 0
      %4040 = vmatpush1.bf16.msra.mxu0 %v4024
      %4041 = vmatprep.subr.bf16.mxu0 0
      %4042 = vmatpush1.bf16.msra.mxu0 %v4023
      %4043 = vmatprep.subr.bf16.mxu0 0
      %4044 = vmatpush1.bf16.msra.mxu0 %v4022
      %4045 = vmatprep.subr.bf16.mxu0 0
      %4046 = vmatpush1.bf16.msra.mxu0 %v4021
      %4047 = vmatprep.subr.bf16.mxu0 0
      %4048 = vmatpush1.bf16.msra.mxu0 %v4020
      %4049 = vmatprep.subr.bf16.mxu0 0
      %4050 = vmatpush1.bf16.msra.mxu0 %v4019
      %4051 = vmatprep.subr.bf16.mxu0 0
      %4052 = vmatpush2.bf16.msra.mxu0 0
      %4053 = vmatprep.subr.bf16.mxu0 0
      %4054 = vmatpush2.bf16.msra.mxu0 0
      %4055 = vmatprep.subr.bf16.mxu0 0
      %4056 = vmatpush2.bf16.msra.mxu0 0
      %4057 = vmatprep.subr.bf16.mxu0 0
      %4058 = vmatpush2.bf16.msra.mxu0 0
      %4059 = vmatprep.subr.bf16.mxu0 0
      %4060 = vmatpush2.bf16.msra.mxu0 0
      %4061 = vmatprep.subr.bf16.mxu0 0
      %4062 = vmatpush2.bf16.msra.mxu0 0
      %4063 = vmatprep.subr.bf16.mxu0 0
      %4064 = vmatpush2.bf16.msra.mxu0 0
      %4065 = vmatprep.subr.bf16.mxu0 0
      %4066 = vmatpush2.bf16.msra.mxu0 0
      %4067 = vmatprep.mubr.bf16.mxu0 0
      %4068 = vmatmul.mubr.bf16.gmra.mxu0 %v3979
      %v4069 = vpop.f32.mrf.mxu0
      %v4070 = vadd.f32 0.0, %v4069
      %v4071 = vpop.f32.mrf.mxu0
      %v4072 = vpop.f32.mrf.mxu0
      %v4073 = vadd.f32 0.0, %v4072
      %v4074 = vpop.f32.mrf.mxu0
      %4075 = vmatprep.mubr.bf16.mxu0 0
      %4076 = vmatmul.mubr.bf16.gmra.mxu0 %v3980
      %v4077 = vpop.f32.mrf.mxu0
      %v4078 = vadd.f32 0.0, %v4077
      %v4079 = vpop.f32.mrf.mxu0
      %v4080 = vpop.f32.mrf.mxu0
      %v4081 = vadd.f32 0.0, %v4080
      %v4082 = vpop.f32.mrf.mxu0
      %4083 = vmatprep.mubr.bf16.mxu0 0
      %4084 = vmatmul.mubr.bf16.gmra.mxu0 %v3981
      %v4085 = vpop.f32.mrf.mxu0
      %v4086 = vadd.f32 0.0, %v4085
      %v4087 = vpop.f32.mrf.mxu0
      %v4088 = vpop.f32.mrf.mxu0
      %v4089 = vadd.f32 0.0, %v4088
      %v4090 = vpop.f32.mrf.mxu0
      %4091 = vmatprep.mubr.bf16.mxu0 0
      %4092 = vmatmul.mubr.bf16.gmra.mxu0 %v3982
      %v4093 = vpop.f32.mrf.mxu0
      %v4094 = vadd.f32 0.0, %v4093
      %v4095 = vpop.f32.mrf.mxu0
      %v4096 = vpop.f32.mrf.mxu0
      %v4097 = vadd.f32 0.0, %v4096
      %v4098 = vpop.f32.mrf.mxu0
      %4099 = vdwg.mxu0
      %v4100 = vadd.f32 %v3930, %v4070
      %v4101 = vadd.f32 %v3931, %v4073
      %v4102 = vadd.f32 %v3932, %v4078
      %v4103 = vadd.f32 %v3933, %v4081
      %v4104 = vadd.f32 %v3934, %v4086
      %v4105 = vadd.f32 %v3935, %v4089
      %v4106 = vadd.f32 %v3936, %v4094
      %v4107 = vadd.f32 %v3937, %v4097
      %v4108 = vld [vmem:[%s3247] sm:$0xf]
      %v4109 = vld [vmem:[%s3247 + $0x4] sm:$0x1]
      %v4110 = vld [vmem:[%s3247 + $0x8] sm:$0xf]
      %v4111 = vld [vmem:[%s3247 + $0xc] sm:$0x1]
      %v4112 = vld [vmem:[%s3247 + $0x10] sm:$0xf]
      %v4113 = vld [vmem:[%s3247 + $0x14] sm:$0x1]
      %v4114 = vld [vmem:[%s3247 + $0x18] sm:$0xf]
      %v4115 = vld [vmem:[%s3247 + $0x1c] sm:$0x1]
      %v4116 = vld [vmem:[%s3247 + $0x20] sm:$0xf]
      %v4117 = vld [vmem:[%s3247 + $0x24] sm:$0x1]
      %v4118 = vld [vmem:[%s3247 + $0x28] sm:$0xf]
      %v4119 = vld [vmem:[%s3247 + $0x2c] sm:$0x1]
      %v4120 = vld [vmem:[%s3247 + $0x30] sm:$0xf]
      %v4121 = vld [vmem:[%s3247 + $0x34] sm:$0x1]
      %v4122 = vld [vmem:[%s3247 + $0x38] sm:$0xf]
      %v4123 = vld [vmem:[%s3247 + $0x3c] sm:$0x1]
      %v4125 = vshrl.u32 %v4108, 16
      %v4127 = vrot.slane %v4125, 4
      %v4128 = vshll.u32 %v4108, 16
      %v4130 = vrot.slane %v4128, 5
      %v4131 = vor.u32 %v4127, %v4130
      %v4132 = vrot.slane %v4131, 4
      %v4134 = vshll.u32 %v4109, 16
      %v4136 = vrot.slane %v4134, 5
      %v4137 = vsel %vm1517, %v4132, %v4136
      %v4139 = vshrl.u32 %v4110, 16
      %v4141 = vrot.slane %v4139, 4
      %v4142 = vshll.u32 %v4110, 16
      %v4144 = vrot.slane %v4142, 5
      %v4145 = vor.u32 %v4141, %v4144
      %v4146 = vrot.slane %v4145, 4
      %v4148 = vshll.u32 %v4111, 16
      %v4150 = vrot.slane %v4148, 5
      %v4151 = vsel %vm1517, %v4146, %v4150
      %v4153 = vshrl.u32 %v4112, 16
      %v4155 = vrot.slane %v4153, 4
      %v4156 = vshll.u32 %v4112, 16
      %v4158 = vrot.slane %v4156, 5
      %v4159 = vor.u32 %v4155, %v4158
      %v4160 = vrot.slane %v4159, 4
      %v4162 = vshll.u32 %v4113, 16
      %v4164 = vrot.slane %v4162, 5
      %v4165 = vsel %vm1517, %v4160, %v4164
      %v4167 = vshrl.u32 %v4114, 16
      %v4169 = vrot.slane %v4167, 4
      %v4170 = vshll.u32 %v4114, 16
      %v4172 = vrot.slane %v4170, 5
      %v4173 = vor.u32 %v4169, %v4172
      %v4174 = vrot.slane %v4173, 4
      %v4176 = vshll.u32 %v4115, 16
      %v4178 = vrot.slane %v4176, 5
      %v4179 = vsel %vm1517, %v4174, %v4178
      %v4181 = vshrl.u32 %v4116, 16
      %v4183 = vrot.slane %v4181, 4
      %v4184 = vshll.u32 %v4116, 16
      %v4186 = vrot.slane %v4184, 5
      %v4187 = vor.u32 %v4183, %v4186
      %v4188 = vrot.slane %v4187, 4
      %v4190 = vshll.u32 %v4117, 16
      %v4192 = vrot.slane %v4190, 5
      %v4193 = vsel %vm1517, %v4188, %v4192
      %v4195 = vshrl.u32 %v4118, 16
      %v4197 = vrot.slane %v4195, 4
      %v4198 = vshll.u32 %v4118, 16
      %v4200 = vrot.slane %v4198, 5
      %v4201 = vor.u32 %v4197, %v4200
      %v4202 = vrot.slane %v4201, 4
      %v4204 = vshll.u32 %v4119, 16
      %v4206 = vrot.slane %v4204, 5
      %v4207 = vsel %vm1517, %v4202, %v4206
      %v4209 = vshrl.u32 %v4120, 16
      %v4211 = vrot.slane %v4209, 4
      %v4212 = vshll.u32 %v4120, 16
      %v4214 = vrot.slane %v4212, 5
      %v4215 = vor.u32 %v4211, %v4214
      %v4216 = vrot.slane %v4215, 4
      %v4218 = vshll.u32 %v4121, 16
      %v4220 = vrot.slane %v4218, 5
      %v4221 = vsel %vm1517, %v4216, %v4220
      %v4223 = vshrl.u32 %v4122, 16
      %v4225 = vrot.slane %v4223, 4
      %v4226 = vshll.u32 %v4122, 16
      %v4228 = vrot.slane %v4226, 5
      %v4229 = vor.u32 %v4225, %v4228
      %v4230 = vrot.slane %v4229, 4
      %v4232 = vshll.u32 %v4123, 16
      %v4234 = vrot.slane %v4232, 5
      %v4235 = vsel %vm1517, %v4230, %v4234
      %s4236 = scalar_lea.vmem %s6, 256
      %v4237 = vld [vmem:[%s4236] sm:$0xf]
      %v4238 = vld [vmem:[%s4236 + $0x4] sm:$0xf]
      %v4239 = vld [vmem:[%s4236 + $0x8] sm:$0xf]
      %v4240 = vld [vmem:[%s4236 + $0xc] sm:$0xf]
      %v4241 = vld [vmem:[%s4236 + $0x10] sm:$0xf]
      %v4242 = vld [vmem:[%s4236 + $0x14] sm:$0xf]
      %v4243 = vld [vmem:[%s4236 + $0x18] sm:$0xf]
      %v4244 = vld [vmem:[%s4236 + $0x1c] sm:$0xf]
      %v4245 = vld [vmem:[%s4236 + $0x20] sm:$0xf]
      %v4246 = vld [vmem:[%s4236 + $0x24] sm:$0xf]
      %v4247 = vld [vmem:[%s4236 + $0x28] sm:$0xf]
      %v4248 = vld [vmem:[%s4236 + $0x2c] sm:$0xf]
      %v4249 = vld [vmem:[%s4236 + $0x30] sm:$0xf]
      %v4250 = vld [vmem:[%s4236 + $0x34] sm:$0xf]
      %v4251 = vld [vmem:[%s4236 + $0x38] sm:$0xf]
      %v4252 = vld [vmem:[%s4236 + $0x3c] sm:$0xf]
      %v4253 = vunpack.c.l.b16 %v4137
      %v4254 = vunpack.c.l.b16 %v4151
      %v4255 = vunpack.c.l.b16 %v4165
      %v4256 = vunpack.c.l.b16 %v4179
      %v4257 = vunpack.c.l.b16 %v4193
      %v4258 = vunpack.c.l.b16 %v4207
      %v4259 = vunpack.c.l.b16 %v4221
      %v4260 = vunpack.c.l.b16 %v4235
      %v4261 = vpack.c.b16 %v4254, %v4253
      %v4262 = vpack.c.b16 %v4256, %v4255
      %v4263 = vpack.c.b16 %v4258, %v4257
      %v4264 = vpack.c.b16 %v4260, %v4259
      %v4285 = vunpack.c.l.b16 %v4237
      %v4286 = vunpack.c.l.b16 %v4238
      %v4287 = vunpack.c.l.b16 %v4239
      %v4288 = vunpack.c.l.b16 %v4240
      %v4289 = vunpack.c.l.b16 %v4241
      %v4290 = vunpack.c.l.b16 %v4242
      %v4291 = vunpack.c.l.b16 %v4243
      %v4292 = vunpack.c.l.b16 %v4244
      %v4293 = vunpack.c.l.b16 %v4245
      %v4294 = vunpack.c.l.b16 %v4246
      %v4295 = vunpack.c.l.b16 %v4247
      %v4296 = vunpack.c.l.b16 %v4248
      %v4297 = vunpack.c.l.b16 %v4249
      %v4298 = vunpack.c.l.b16 %v4250
      %v4299 = vunpack.c.l.b16 %v4251
      %v4300 = vunpack.c.l.b16 %v4252
      %v4301 = vpack.c.b16 %v4286, %v4285
      %v4302 = vpack.c.b16 %v4288, %v4287
      %v4303 = vpack.c.b16 %v4290, %v4289
      %v4304 = vpack.c.b16 %v4292, %v4291
      %v4305 = vpack.c.b16 %v4294, %v4293
      %v4306 = vpack.c.b16 %v4296, %v4295
      %v4307 = vpack.c.b16 %v4298, %v4297
      %v4308 = vpack.c.b16 %v4300, %v4299
      %4317 = vmatprep.subr.bf16.mxu0 0
      %4318 = vmatpush1.bf16.msra.mxu0 %v4308
      %4319 = vmatprep.subr.bf16.mxu0 0
      %4320 = vmatpush1.bf16.msra.mxu0 %v4307
      %4321 = vmatprep.subr.bf16.mxu0 0
      %4322 = vmatpush1.bf16.msra.mxu0 %v4306
      %4323 = vmatprep.subr.bf16.mxu0 0
      %4324 = vmatpush1.bf16.msra.mxu0 %v4305
      %4325 = vmatprep.subr.bf16.mxu0 0
      %4326 = vmatpush1.bf16.msra.mxu0 %v4304
      %4327 = vmatprep.subr.bf16.mxu0 0
      %4328 = vmatpush1.bf16.msra.mxu0 %v4303
      %4329 = vmatprep.subr.bf16.mxu0 0
      %4330 = vmatpush1.bf16.msra.mxu0 %v4302
      %4331 = vmatprep.subr.bf16.mxu0 0
      %4332 = vmatpush1.bf16.msra.mxu0 %v4301
      %4333 = vmatprep.subr.bf16.mxu0 0
      %4334 = vmatpush2.bf16.msra.mxu0 0
      %4335 = vmatprep.subr.bf16.mxu0 0
      %4336 = vmatpush2.bf16.msra.mxu0 0
      %4337 = vmatprep.subr.bf16.mxu0 0
      %4338 = vmatpush2.bf16.msra.mxu0 0
      %4339 = vmatprep.subr.bf16.mxu0 0
      %4340 = vmatpush2.bf16.msra.mxu0 0
      %4341 = vmatprep.subr.bf16.mxu0 0
      %4342 = vmatpush2.bf16.msra.mxu0 0
      %4343 = vmatprep.subr.bf16.mxu0 0
      %4344 = vmatpush2.bf16.msra.mxu0 0
      %4345 = vmatprep.subr.bf16.mxu0 0
      %4346 = vmatpush2.bf16.msra.mxu0 0
      %4347 = vmatprep.subr.bf16.mxu0 0
      %4348 = vmatpush2.bf16.msra.mxu0 0
      %4349 = vmatprep.mubr.bf16.mxu0 0
      %4350 = vmatmul.mubr.bf16.gmra.mxu0 %v4261
      %v4351 = vpop.f32.mrf.mxu0
      %v4352 = vadd.f32 0.0, %v4351
      %v4353 = vpop.f32.mrf.mxu0
      %v4354 = vpop.f32.mrf.mxu0
      %v4355 = vadd.f32 0.0, %v4354
      %v4356 = vpop.f32.mrf.mxu0
      %4357 = vmatprep.mubr.bf16.mxu0 0
      %4358 = vmatmul.mubr.bf16.gmra.mxu0 %v4262
      %v4359 = vpop.f32.mrf.mxu0
      %v4360 = vadd.f32 0.0, %v4359
      %v4361 = vpop.f32.mrf.mxu0
      %v4362 = vpop.f32.mrf.mxu0
      %v4363 = vadd.f32 0.0, %v4362
      %v4364 = vpop.f32.mrf.mxu0
      %4365 = vmatprep.mubr.bf16.mxu0 0
      %4366 = vmatmul.mubr.bf16.gmra.mxu0 %v4263
      %v4367 = vpop.f32.mrf.mxu0
      %v4368 = vadd.f32 0.0, %v4367
      %v4369 = vpop.f32.mrf.mxu0
      %v4370 = vpop.f32.mrf.mxu0
      %v4371 = vadd.f32 0.0, %v4370
      %v4372 = vpop.f32.mrf.mxu0
      %4373 = vmatprep.mubr.bf16.mxu0 0
      %4374 = vmatmul.mubr.bf16.gmra.mxu0 %v4264
      %v4375 = vpop.f32.mrf.mxu0
      %v4376 = vadd.f32 0.0, %v4375
      %v4377 = vpop.f32.mrf.mxu0
      %v4378 = vpop.f32.mrf.mxu0
      %v4379 = vadd.f32 0.0, %v4378
      %v4380 = vpop.f32.mrf.mxu0
      %4381 = vdwg.mxu0
      %v4382 = vadd.f32 %v4100, %v4352
      %v4383 = vadd.f32 %v4101, %v4355
      %v4384 = vadd.f32 %v4102, %v4360
      %v4385 = vadd.f32 %v4103, %v4363
      %v4386 = vadd.f32 %v4104, %v4368
      %v4387 = vadd.f32 %v4105, %v4371
      %v4388 = vadd.f32 %v4106, %v4376
      %v4389 = vadd.f32 %v4107, %v4379
      %v4390 = vld [vmem:[%s3247] sm:$0xe]
      %v4391 = vld [vmem:[%s3247 + $0x8] sm:$0xe]
      %v4392 = vld [vmem:[%s3247 + $0x10] sm:$0xe]
      %v4393 = vld [vmem:[%s3247 + $0x18] sm:$0xe]
      %v4394 = vld [vmem:[%s3247 + $0x20] sm:$0xe]
      %v4395 = vld [vmem:[%s3247 + $0x28] sm:$0xe]
      %v4396 = vld [vmem:[%s3247 + $0x30] sm:$0xe]
      %v4397 = vld [vmem:[%s3247 + $0x38] sm:$0xe]
      %v4414 = vrot.slane %v4390, 5
      %v4415 = vrot.slane %v4414, 4
      %v4416 = vrot.slane %v4109, 5
      %v4417 = vsel %vm3751, %v4415, %v4416
      %v4418 = vrot.slane %v4391, 5
      %v4419 = vrot.slane %v4418, 4
      %v4420 = vrot.slane %v4111, 5
      %v4421 = vsel %vm3751, %v4419, %v4420
      %v4422 = vrot.slane %v4392, 5
      %v4423 = vrot.slane %v4422, 4
      %v4424 = vrot.slane %v4113, 5
      %v4425 = vsel %vm3751, %v4423, %v4424
      %v4426 = vrot.slane %v4393, 5
      %v4427 = vrot.slane %v4426, 4
      %v4428 = vrot.slane %v4115, 5
      %v4429 = vsel %vm3751, %v4427, %v4428
      %v4430 = vrot.slane %v4394, 5
      %v4431 = vrot.slane %v4430, 4
      %v4432 = vrot.slane %v4117, 5
      %v4433 = vsel %vm3751, %v4431, %v4432
      %v4434 = vrot.slane %v4395, 5
      %v4435 = vrot.slane %v4434, 4
      %v4436 = vrot.slane %v4119, 5
      %v4437 = vsel %vm3751, %v4435, %v4436
      %v4438 = vrot.slane %v4396, 5
      %v4439 = vrot.slane %v4438, 4
      %v4440 = vrot.slane %v4121, 5
      %v4441 = vsel %vm3751, %v4439, %v4440
      %v4442 = vrot.slane %v4397, 5
      %v4443 = vrot.slane %v4442, 4
      %v4444 = vrot.slane %v4123, 5
      %v4445 = vsel %vm3751, %v4443, %v4444
      %s4446 = scalar_lea.vmem %s6, 320
      %v4447 = vld [vmem:[%s4446] sm:$0xf]
      %v4448 = vld [vmem:[%s4446 + $0x4] sm:$0xf]
      %v4449 = vld [vmem:[%s4446 + $0x8] sm:$0xf]
      %v4450 = vld [vmem:[%s4446 + $0xc] sm:$0xf]
      %v4451 = vld [vmem:[%s4446 + $0x10] sm:$0xf]
      %v4452 = vld [vmem:[%s4446 + $0x14] sm:$0xf]
      %v4453 = vld [vmem:[%s4446 + $0x18] sm:$0xf]
      %v4454 = vld [vmem:[%s4446 + $0x1c] sm:$0xf]
      %v4455 = vld [vmem:[%s4446 + $0x20] sm:$0xf]
      %v4456 = vld [vmem:[%s4446 + $0x24] sm:$0xf]
      %v4457 = vld [vmem:[%s4446 + $0x28] sm:$0xf]
      %v4458 = vld [vmem:[%s4446 + $0x2c] sm:$0xf]
      %v4459 = vld [vmem:[%s4446 + $0x30] sm:$0xf]
      %v4460 = vld [vmem:[%s4446 + $0x34] sm:$0xf]
      %v4461 = vld [vmem:[%s4446 + $0x38] sm:$0xf]
      %v4462 = vld [vmem:[%s4446 + $0x3c] sm:$0xf]
      %v4463 = vunpack.c.l.b16 %v4417
      %v4464 = vunpack.c.l.b16 %v4421
      %v4465 = vunpack.c.l.b16 %v4425
      %v4466 = vunpack.c.l.b16 %v4429
      %v4467 = vunpack.c.l.b16 %v4433
      %v4468 = vunpack.c.l.b16 %v4437
      %v4469 = vunpack.c.l.b16 %v4441
      %v4470 = vunpack.c.l.b16 %v4445
      %v4471 = vpack.c.b16 %v4464, %v4463
      %v4472 = vpack.c.b16 %v4466, %v4465
      %v4473 = vpack.c.b16 %v4468, %v4467
      %v4474 = vpack.c.b16 %v4470, %v4469
      %v4495 = vunpack.c.l.b16 %v4447
      %v4496 = vunpack.c.l.b16 %v4448
      %v4497 = vunpack.c.l.b16 %v4449
      %v4498 = vunpack.c.l.b16 %v4450
      %v4499 = vunpack.c.l.b16 %v4451
      %v4500 = vunpack.c.l.b16 %v4452
      %v4501 = vunpack.c.l.b16 %v4453
      %v4502 = vunpack.c.l.b16 %v4454
      %v4503 = vunpack.c.l.b16 %v4455
      %v4504 = vunpack.c.l.b16 %v4456
      %v4505 = vunpack.c.l.b16 %v4457
      %v4506 = vunpack.c.l.b16 %v4458
      %v4507 = vunpack.c.l.b16 %v4459
      %v4508 = vunpack.c.l.b16 %v4460
      %v4509 = vunpack.c.l.b16 %v4461
      %v4510 = vunpack.c.l.b16 %v4462
      %v4511 = vpack.c.b16 %v4496, %v4495
      %v4512 = vpack.c.b16 %v4498, %v4497
      %v4513 = vpack.c.b16 %v4500, %v4499
      %v4514 = vpack.c.b16 %v4502, %v4501
      %v4515 = vpack.c.b16 %v4504, %v4503
      %v4516 = vpack.c.b16 %v4506, %v4505
      %v4517 = vpack.c.b16 %v4508, %v4507
      %v4518 = vpack.c.b16 %v4510, %v4509
      %4527 = vmatprep.subr.bf16.mxu0 0
      %4528 = vmatpush1.bf16.msra.mxu0 %v4518
      %4529 = vmatprep.subr.bf16.mxu0 0
      %4530 = vmatpush1.bf16.msra.mxu0 %v4517
      %4531 = vmatprep.subr.bf16.mxu0 0
      %4532 = vmatpush1.bf16.msra.mxu0 %v4516
      %4533 = vmatprep.subr.bf16.mxu0 0
      %4534 = vmatpush1.bf16.msra.mxu0 %v4515
      %4535 = vmatprep.subr.bf16.mxu0 0
      %4536 = vmatpush1.bf16.msra.mxu0 %v4514
      %4537 = vmatprep.subr.bf16.mxu0 0
      %4538 = vmatpush1.bf16.msra.mxu0 %v4513
      %4539 = vmatprep.subr.bf16.mxu0 0
      %4540 = vmatpush1.bf16.msra.mxu0 %v4512
      %4541 = vmatprep.subr.bf16.mxu0 0
      %4542 = vmatpush1.bf16.msra.mxu0 %v4511
      %4543 = vmatprep.subr.bf16.mxu0 0
      %4544 = vmatpush2.bf16.msra.mxu0 0
      %4545 = vmatprep.subr.bf16.mxu0 0
      %4546 = vmatpush2.bf16.msra.mxu0 0
      %4547 = vmatprep.subr.bf16.mxu0 0
      %4548 = vmatpush2.bf16.msra.mxu0 0
      %4549 = vmatprep.subr.bf16.mxu0 0
      %4550 = vmatpush2.bf16.msra.mxu0 0
      %4551 = vmatprep.subr.bf16.mxu0 0
      %4552 = vmatpush2.bf16.msra.mxu0 0
      %4553 = vmatprep.subr.bf16.mxu0 0
      %4554 = vmatpush2.bf16.msra.mxu0 0
      %4555 = vmatprep.subr.bf16.mxu0 0
      %4556 = vmatpush2.bf16.msra.mxu0 0
      %4557 = vmatprep.subr.bf16.mxu0 0
      %4558 = vmatpush2.bf16.msra.mxu0 0
      %4559 = vmatprep.mubr.bf16.mxu0 0
      %4560 = vmatmul.mubr.bf16.gmra.mxu0 %v4471
      %v4561 = vpop.f32.mrf.mxu0
      %v4562 = vadd.f32 0.0, %v4561
      %v4563 = vpop.f32.mrf.mxu0
      %v4564 = vpop.f32.mrf.mxu0
      %v4565 = vadd.f32 0.0, %v4564
      %v4566 = vpop.f32.mrf.mxu0
      %4567 = vmatprep.mubr.bf16.mxu0 0
      %4568 = vmatmul.mubr.bf16.gmra.mxu0 %v4472
      %v4569 = vpop.f32.mrf.mxu0
      %v4570 = vadd.f32 0.0, %v4569
      %v4571 = vpop.f32.mrf.mxu0
      %v4572 = vpop.f32.mrf.mxu0
      %v4573 = vadd.f32 0.0, %v4572
      %v4574 = vpop.f32.mrf.mxu0
      %4575 = vmatprep.mubr.bf16.mxu0 0
      %4576 = vmatmul.mubr.bf16.gmra.mxu0 %v4473
      %v4577 = vpop.f32.mrf.mxu0
      %v4578 = vadd.f32 0.0, %v4577
      %v4579 = vpop.f32.mrf.mxu0
      %v4580 = vpop.f32.mrf.mxu0
      %v4581 = vadd.f32 0.0, %v4580
      %v4582 = vpop.f32.mrf.mxu0
      %4583 = vmatprep.mubr.bf16.mxu0 0
      %4584 = vmatmul.mubr.bf16.gmra.mxu0 %v4474
      %v4585 = vpop.f32.mrf.mxu0
      %v4586 = vadd.f32 0.0, %v4585
      %v4587 = vpop.f32.mrf.mxu0
      %v4588 = vpop.f32.mrf.mxu0
      %v4589 = vadd.f32 0.0, %v4588
      %v4590 = vpop.f32.mrf.mxu0
      %4591 = vdwg.mxu0
      %v4592 = vadd.f32 %v4382, %v4562
      %v4593 = vadd.f32 %v4383, %v4565
      %v4594 = vadd.f32 %v4384, %v4570
      %v4595 = vadd.f32 %v4385, %v4573
      %v4596 = vadd.f32 %v4386, %v4578
      %v4597 = vadd.f32 %v4387, %v4581
      %v4598 = vadd.f32 %v4388, %v4586
      %v4599 = vadd.f32 %v4389, %v4589
      %s4600 = scalar_lea.vmem [#allocation3], 16
      %v4601 = vld [vmem:[%s4600] sm:$0xf]
      %v4602 = vld [vmem:[%s4600 + $0x8] sm:$0xf]
      %v4603 = vld [vmem:[%s4600 + $0x10] sm:$0xf]
      %v4604 = vld [vmem:[%s4600 + $0x18] sm:$0xf]
      %v4605 = vld [vmem:[%s4600 + $0x20] sm:$0xf]
      %v4606 = vld [vmem:[%s4600 + $0x28] sm:$0xf]
      %v4607 = vld [vmem:[%s4600 + $0x30] sm:$0xf]
      %v4608 = vld [vmem:[%s4600 + $0x38] sm:$0xf]
      %s4609 = scalar_lea.vmem %s6, 384
      %v4610 = vld [vmem:[%s4609] sm:$0xf]
      %v4611 = vld [vmem:[%s4609 + $0x4] sm:$0xf]
      %v4612 = vld [vmem:[%s4609 + $0x8] sm:$0xf]
      %v4613 = vld [vmem:[%s4609 + $0xc] sm:$0xf]
      %v4614 = vld [vmem:[%s4609 + $0x10] sm:$0xf]
      %v4615 = vld [vmem:[%s4609 + $0x14] sm:$0xf]
      %v4616 = vld [vmem:[%s4609 + $0x18] sm:$0xf]
      %v4617 = vld [vmem:[%s4609 + $0x1c] sm:$0xf]
      %v4618 = vld [vmem:[%s4609 + $0x20] sm:$0xf]
      %v4619 = vld [vmem:[%s4609 + $0x24] sm:$0xf]
      %v4620 = vld [vmem:[%s4609 + $0x28] sm:$0xf]
      %v4621 = vld [vmem:[%s4609 + $0x2c] sm:$0xf]
      %v4622 = vld [vmem:[%s4609 + $0x30] sm:$0xf]
      %v4623 = vld [vmem:[%s4609 + $0x34] sm:$0xf]
      %v4624 = vld [vmem:[%s4609 + $0x38] sm:$0xf]
      %v4625 = vld [vmem:[%s4609 + $0x3c] sm:$0xf]
      %v4634 = vunpack.c.l.b16 %v4601
      %v4635 = vunpack.c.l.b16 %v4602
      %v4636 = vunpack.c.l.b16 %v4603
      %v4637 = vunpack.c.l.b16 %v4604
      %v4638 = vunpack.c.l.b16 %v4605
      %v4639 = vunpack.c.l.b16 %v4606
      %v4640 = vunpack.c.l.b16 %v4607
      %v4641 = vunpack.c.l.b16 %v4608
      %v4642 = vpack.c.b16 %v4635, %v4634
      %v4643 = vpack.c.b16 %v4637, %v4636
      %v4644 = vpack.c.b16 %v4639, %v4638
      %v4645 = vpack.c.b16 %v4641, %v4640
      %v4666 = vunpack.c.l.b16 %v4610
      %v4667 = vunpack.c.l.b16 %v4611
      %v4668 = vunpack.c.l.b16 %v4612
      %v4669 = vunpack.c.l.b16 %v4613
      %v4670 = vunpack.c.l.b16 %v4614
      %v4671 = vunpack.c.l.b16 %v4615
      %v4672 = vunpack.c.l.b16 %v4616
      %v4673 = vunpack.c.l.b16 %v4617
      %v4674 = vunpack.c.l.b16 %v4618
      %v4675 = vunpack.c.l.b16 %v4619
      %v4676 = vunpack.c.l.b16 %v4620
      %v4677 = vunpack.c.l.b16 %v4621
      %v4678 = vunpack.c.l.b16 %v4622
      %v4679 = vunpack.c.l.b16 %v4623
      %v4680 = vunpack.c.l.b16 %v4624
      %v4681 = vunpack.c.l.b16 %v4625
      %v4682 = vpack.c.b16 %v4667, %v4666
      %v4683 = vpack.c.b16 %v4669, %v4668
      %v4684 = vpack.c.b16 %v4671, %v4670
      %v4685 = vpack.c.b16 %v4673, %v4672
      %v4686 = vpack.c.b16 %v4675, %v4674
      %v4687 = vpack.c.b16 %v4677, %v4676
      %v4688 = vpack.c.b16 %v4679, %v4678
      %v4689 = vpack.c.b16 %v4681, %v4680
      %4698 = vmatprep.subr.bf16.mxu0 0
      %4699 = vmatpush1.bf16.msra.mxu0 %v4689
      %4700 = vmatprep.subr.bf16.mxu0 0
      %4701 = vmatpush1.bf16.msra.mxu0 %v4688
      %4702 = vmatprep.subr.bf16.mxu0 0
      %4703 = vmatpush1.bf16.msra.mxu0 %v4687
      %4704 = vmatprep.subr.bf16.mxu0 0
      %4705 = vmatpush1.bf16.msra.mxu0 %v4686
      %4706 = vmatprep.subr.bf16.mxu0 0
      %4707 = vmatpush1.bf16.msra.mxu0 %v4685
      %4708 = vmatprep.subr.bf16.mxu0 0
      %4709 = vmatpush1.bf16.msra.mxu0 %v4684
      %4710 = vmatprep.subr.bf16.mxu0 0
      %4711 = vmatpush1.bf16.msra.mxu0 %v4683
      %4712 = vmatprep.subr.bf16.mxu0 0
      %4713 = vmatpush1.bf16.msra.mxu0 %v4682
      %4714 = vmatprep.subr.bf16.mxu0 0
      %4715 = vmatpush2.bf16.msra.mxu0 0
      %4716 = vmatprep.subr.bf16.mxu0 0
      %4717 = vmatpush2.bf16.msra.mxu0 0
      %4718 = vmatprep.subr.bf16.mxu0 0
      %4719 = vmatpush2.bf16.msra.mxu0 0
      %4720 = vmatprep.subr.bf16.mxu0 0
      %4721 = vmatpush2.bf16.msra.mxu0 0
      %4722 = vmatprep.subr.bf16.mxu0 0
      %4723 = vmatpush2.bf16.msra.mxu0 0
      %4724 = vmatprep.subr.bf16.mxu0 0
      %4725 = vmatpush2.bf16.msra.mxu0 0
      %4726 = vmatprep.subr.bf16.mxu0 0
      %4727 = vmatpush2.bf16.msra.mxu0 0
      %4728 = vmatprep.subr.bf16.mxu0 0
      %4729 = vmatpush2.bf16.msra.mxu0 0
      %4730 = vmatprep.mubr.bf16.mxu0 0
      %4731 = vmatmul.mubr.bf16.gmra.mxu0 %v4642
      %v4732 = vpop.f32.mrf.mxu0
      %v4733 = vadd.f32 0.0, %v4732
      %v4734 = vpop.f32.mrf.mxu0
      %v4735 = vpop.f32.mrf.mxu0
      %v4736 = vadd.f32 0.0, %v4735
      %v4737 = vpop.f32.mrf.mxu0
      %4738 = vmatprep.mubr.bf16.mxu0 0
      %4739 = vmatmul.mubr.bf16.gmra.mxu0 %v4643
      %v4740 = vpop.f32.mrf.mxu0
      %v4741 = vadd.f32 0.0, %v4740
      %v4742 = vpop.f32.mrf.mxu0
      %v4743 = vpop.f32.mrf.mxu0
      %v4744 = vadd.f32 0.0, %v4743
      %v4745 = vpop.f32.mrf.mxu0
      %4746 = vmatprep.mubr.bf16.mxu0 0
      %4747 = vmatmul.mubr.bf16.gmra.mxu0 %v4644
      %v4748 = vpop.f32.mrf.mxu0
      %v4749 = vadd.f32 0.0, %v4748
      %v4750 = vpop.f32.mrf.mxu0
      %v4751 = vpop.f32.mrf.mxu0
      %v4752 = vadd.f32 0.0, %v4751
      %v4753 = vpop.f32.mrf.mxu0
      %4754 = vmatprep.mubr.bf16.mxu0 0
      %4755 = vmatmul.mubr.bf16.gmra.mxu0 %v4645
      %v4756 = vpop.f32.mrf.mxu0
      %v4757 = vadd.f32 0.0, %v4756
      %v4758 = vpop.f32.mrf.mxu0
      %v4759 = vpop.f32.mrf.mxu0
      %v4760 = vadd.f32 0.0, %v4759
      %v4761 = vpop.f32.mrf.mxu0
      %4762 = vdwg.mxu0
      %v4763 = vadd.f32 %v4592, %v4733
      %v4764 = vadd.f32 %v4593, %v4736
      %v4765 = vadd.f32 %v4594, %v4741
      %v4766 = vadd.f32 %v4595, %v4744
      %v4767 = vadd.f32 %v4596, %v4749
      %v4768 = vadd.f32 %v4597, %v4752
      %v4769 = vadd.f32 %v4598, %v4757
      %v4770 = vadd.f32 %v4599, %v4760
      %v4771 = vld [vmem:[%s4600] sm:$0xf]
      %v4772 = vld [vmem:[%s4600 + $0x4] sm:$0x1]
      %v4773 = vld [vmem:[%s4600 + $0x8] sm:$0xf]
      %v4774 = vld [vmem:[%s4600 + $0xc] sm:$0x1]
      %v4775 = vld [vmem:[%s4600 + $0x10] sm:$0xf]
      %v4776 = vld [vmem:[%s4600 + $0x14] sm:$0x1]
      %v4777 = vld [vmem:[%s4600 + $0x18] sm:$0xf]
      %v4778 = vld [vmem:[%s4600 + $0x1c] sm:$0x1]
      %v4779 = vld [vmem:[%s4600 + $0x20] sm:$0xf]
      %v4780 = vld [vmem:[%s4600 + $0x24] sm:$0x1]
      %v4781 = vld [vmem:[%s4600 + $0x28] sm:$0xf]
      %v4782 = vld [vmem:[%s4600 + $0x2c] sm:$0x1]
      %v4783 = vld [vmem:[%s4600 + $0x30] sm:$0xf]
      %v4784 = vld [vmem:[%s4600 + $0x34] sm:$0x1]
      %v4785 = vld [vmem:[%s4600 + $0x38] sm:$0xf]
      %v4786 = vld [vmem:[%s4600 + $0x3c] sm:$0x1]
      %v4788 = vshrl.u32 %v4771, 16
      %v4790 = vrot.slane %v4788, 4
      %v4791 = vshll.u32 %v4771, 16
      %v4793 = vrot.slane %v4791, 5
      %v4794 = vor.u32 %v4790, %v4793
      %v4795 = vrot.slane %v4794, 4
      %v4797 = vshll.u32 %v4772, 16
      %v4799 = vrot.slane %v4797, 5
      %v4800 = vsel %vm1517, %v4795, %v4799
      %v4802 = vshrl.u32 %v4773, 16
      %v4804 = vrot.slane %v4802, 4
      %v4805 = vshll.u32 %v4773, 16
      %v4807 = vrot.slane %v4805, 5
      %v4808 = vor.u32 %v4804, %v4807
      %v4809 = vrot.slane %v4808, 4
      %v4811 = vshll.u32 %v4774, 16
      %v4813 = vrot.slane %v4811, 5
      %v4814 = vsel %vm1517, %v4809, %v4813
      %v4816 = vshrl.u32 %v4775, 16
      %v4818 = vrot.slane %v4816, 4
      %v4819 = vshll.u32 %v4775, 16
      %v4821 = vrot.slane %v4819, 5
      %v4822 = vor.u32 %v4818, %v4821
      %v4823 = vrot.slane %v4822, 4
      %v4825 = vshll.u32 %v4776, 16
      %v4827 = vrot.slane %v4825, 5
      %v4828 = vsel %vm1517, %v4823, %v4827
      %v4830 = vshrl.u32 %v4777, 16
      %v4832 = vrot.slane %v4830, 4
      %v4833 = vshll.u32 %v4777, 16
      %v4835 = vrot.slane %v4833, 5
      %v4836 = vor.u32 %v4832, %v4835
      %v4837 = vrot.slane %v4836, 4
      %v4839 = vshll.u32 %v4778, 16
      %v4841 = vrot.slane %v4839, 5
      %v4842 = vsel %vm1517, %v4837, %v4841
      %v4844 = vshrl.u32 %v4779, 16
      %v4846 = vrot.slane %v4844, 4
      %v4847 = vshll.u32 %v4779, 16
      %v4849 = vrot.slane %v4847, 5
      %v4850 = vor.u32 %v4846, %v4849
      %v4851 = vrot.slane %v4850, 4
      %v4853 = vshll.u32 %v4780, 16
      %v4855 = vrot.slane %v4853, 5
      %v4856 = vsel %vm1517, %v4851, %v4855
      %v4858 = vshrl.u32 %v4781, 16
      %v4860 = vrot.slane %v4858, 4
      %v4861 = vshll.u32 %v4781, 16
      %v4863 = vrot.slane %v4861, 5
      %v4864 = vor.u32 %v4860, %v4863
      %v4865 = vrot.slane %v4864, 4
      %v4867 = vshll.u32 %v4782, 16
      %v4869 = vrot.slane %v4867, 5
      %v4870 = vsel %vm1517, %v4865, %v4869
      %v4872 = vshrl.u32 %v4783, 16
      %v4874 = vrot.slane %v4872, 4
      %v4875 = vshll.u32 %v4783, 16
      %v4877 = vrot.slane %v4875, 5
      %v4878 = vor.u32 %v4874, %v4877
      %v4879 = vrot.slane %v4878, 4
      %v4881 = vshll.u32 %v4784, 16
      %v4883 = vrot.slane %v4881, 5
      %v4884 = vsel %vm1517, %v4879, %v4883
      %v4886 = vshrl.u32 %v4785, 16
      %v4888 = vrot.slane %v4886, 4
      %v4889 = vshll.u32 %v4785, 16
      %v4891 = vrot.slane %v4889, 5
      %v4892 = vor.u32 %v4888, %v4891
      %v4893 = vrot.slane %v4892, 4
      %v4895 = vshll.u32 %v4786, 16
      %v4897 = vrot.slane %v4895, 5
      %v4898 = vsel %vm1517, %v4893, %v4897
      %s4899 = scalar_lea.vmem %s6, 448
      %v4900 = vld [vmem:[%s4899] sm:$0xf]
      %v4901 = vld [vmem:[%s4899 + $0x4] sm:$0xf]
      %v4902 = vld [vmem:[%s4899 + $0x8] sm:$0xf]
      %v4903 = vld [vmem:[%s4899 + $0xc] sm:$0xf]
      %v4904 = vld [vmem:[%s4899 + $0x10] sm:$0xf]
      %v4905 = vld [vmem:[%s4899 + $0x14] sm:$0xf]
      %v4906 = vld [vmem:[%s4899 + $0x18] sm:$0xf]
      %v4907 = vld [vmem:[%s4899 + $0x1c] sm:$0xf]
      %v4908 = vld [vmem:[%s4899 + $0x20] sm:$0xf]
      %v4909 = vld [vmem:[%s4899 + $0x24] sm:$0xf]
      %v4910 = vld [vmem:[%s4899 + $0x28] sm:$0xf]
      %v4911 = vld [vmem:[%s4899 + $0x2c] sm:$0xf]
      %v4912 = vld [vmem:[%s4899 + $0x30] sm:$0xf]
      %v4913 = vld [vmem:[%s4899 + $0x34] sm:$0xf]
      %v4914 = vld [vmem:[%s4899 + $0x38] sm:$0xf]
      %v4915 = vld [vmem:[%s4899 + $0x3c] sm:$0xf]
      %v4916 = vunpack.c.l.b16 %v4800
      %v4917 = vunpack.c.l.b16 %v4814
      %v4918 = vunpack.c.l.b16 %v4828
      %v4919 = vunpack.c.l.b16 %v4842
      %v4920 = vunpack.c.l.b16 %v4856
      %v4921 = vunpack.c.l.b16 %v4870
      %v4922 = vunpack.c.l.b16 %v4884
      %v4923 = vunpack.c.l.b16 %v4898
      %v4924 = vpack.c.b16 %v4917, %v4916
      %v4925 = vpack.c.b16 %v4919, %v4918
      %v4926 = vpack.c.b16 %v4921, %v4920
      %v4927 = vpack.c.b16 %v4923, %v4922
      %v4948 = vunpack.c.l.b16 %v4900
      %v4949 = vunpack.c.l.b16 %v4901
      %v4950 = vunpack.c.l.b16 %v4902
      %v4951 = vunpack.c.l.b16 %v4903
      %v4952 = vunpack.c.l.b16 %v4904
      %v4953 = vunpack.c.l.b16 %v4905
      %v4954 = vunpack.c.l.b16 %v4906
      %v4955 = vunpack.c.l.b16 %v4907
      %v4956 = vunpack.c.l.b16 %v4908
      %v4957 = vunpack.c.l.b16 %v4909
      %v4958 = vunpack.c.l.b16 %v4910
      %v4959 = vunpack.c.l.b16 %v4911
      %v4960 = vunpack.c.l.b16 %v4912
      %v4961 = vunpack.c.l.b16 %v4913
      %v4962 = vunpack.c.l.b16 %v4914
      %v4963 = vunpack.c.l.b16 %v4915
      %v4964 = vpack.c.b16 %v4949, %v4948
      %v4965 = vpack.c.b16 %v4951, %v4950
      %v4966 = vpack.c.b16 %v4953, %v4952
      %v4967 = vpack.c.b16 %v4955, %v4954
      %v4968 = vpack.c.b16 %v4957, %v4956
      %v4969 = vpack.c.b16 %v4959, %v4958
      %v4970 = vpack.c.b16 %v4961, %v4960
      %v4971 = vpack.c.b16 %v4963, %v4962
      %4980 = vmatprep.subr.bf16.mxu0 0
      %4981 = vmatpush1.bf16.msra.mxu0 %v4971
      %4982 = vmatprep.subr.bf16.mxu0 0
      %4983 = vmatpush1.bf16.msra.mxu0 %v4970
      %4984 = vmatprep.subr.bf16.mxu0 0
      %4985 = vmatpush1.bf16.msra.mxu0 %v4969
      %4986 = vmatprep.subr.bf16.mxu0 0
      %4987 = vmatpush1.bf16.msra.mxu0 %v4968
      %4988 = vmatprep.subr.bf16.mxu0 0
      %4989 = vmatpush1.bf16.msra.mxu0 %v4967
      %4990 = vmatprep.subr.bf16.mxu0 0
      %4991 = vmatpush1.bf16.msra.mxu0 %v4966
      %4992 = vmatprep.subr.bf16.mxu0 0
      %4993 = vmatpush1.bf16.msra.mxu0 %v4965
      %4994 = vmatprep.subr.bf16.mxu0 0
      %4995 = vmatpush1.bf16.msra.mxu0 %v4964
      %4996 = vmatprep.subr.bf16.mxu0 0
      %4997 = vmatpush2.bf16.msra.mxu0 0
      %4998 = vmatprep.subr.bf16.mxu0 0
      %4999 = vmatpush2.bf16.msra.mxu0 0
      %5000 = vmatprep.subr.bf16.mxu0 0
      %5001 = vmatpush2.bf16.msra.mxu0 0
      %5002 = vmatprep.subr.bf16.mxu0 0
      %5003 = vmatpush2.bf16.msra.mxu0 0
      %5004 = vmatprep.subr.bf16.mxu0 0
      %5005 = vmatpush2.bf16.msra.mxu0 0
      %5006 = vmatprep.subr.bf16.mxu0 0
      %5007 = vmatpush2.bf16.msra.mxu0 0
      %5008 = vmatprep.subr.bf16.mxu0 0
      %5009 = vmatpush2.bf16.msra.mxu0 0
      %5010 = vmatprep.subr.bf16.mxu0 0
      %5011 = vmatpush2.bf16.msra.mxu0 0
      %5012 = vmatprep.mubr.bf16.mxu0 0
      %5013 = vmatmul.mubr.bf16.gmra.mxu0 %v4924
      %v5014 = vpop.f32.mrf.mxu0
      %v5015 = vadd.f32 0.0, %v5014
      %v5016 = vpop.f32.mrf.mxu0
      %v5017 = vpop.f32.mrf.mxu0
      %v5018 = vadd.f32 0.0, %v5017
      %v5019 = vpop.f32.mrf.mxu0
      %5020 = vmatprep.mubr.bf16.mxu0 0
      %5021 = vmatmul.mubr.bf16.gmra.mxu0 %v4925
      %v5022 = vpop.f32.mrf.mxu0
      %v5023 = vadd.f32 0.0, %v5022
      %v5024 = vpop.f32.mrf.mxu0
      %v5025 = vpop.f32.mrf.mxu0
      %v5026 = vadd.f32 0.0, %v5025
      %v5027 = vpop.f32.mrf.mxu0
      %5028 = vmatprep.mubr.bf16.mxu0 0
      %5029 = vmatmul.mubr.bf16.gmra.mxu0 %v4926
      %v5030 = vpop.f32.mrf.mxu0
      %v5031 = vadd.f32 0.0, %v5030
      %v5032 = vpop.f32.mrf.mxu0
      %v5033 = vpop.f32.mrf.mxu0
      %v5034 = vadd.f32 0.0, %v5033
      %v5035 = vpop.f32.mrf.mxu0
      %5036 = vmatprep.mubr.bf16.mxu0 0
      %5037 = vmatmul.mubr.bf16.gmra.mxu0 %v4927
      %v5038 = vpop.f32.mrf.mxu0
      %v5039 = vadd.f32 0.0, %v5038
      %v5040 = vpop.f32.mrf.mxu0
      %v5041 = vpop.f32.mrf.mxu0
      %v5042 = vadd.f32 0.0, %v5041
      %v5043 = vpop.f32.mrf.mxu0
      %5044 = vdwg.mxu0
      %v5045 = vadd.f32 %v4763, %v5015
      %v5046 = vadd.f32 %v4764, %v5018
      %v5047 = vadd.f32 %v4765, %v5023
      %v5048 = vadd.f32 %v4766, %v5026
      %v5049 = vadd.f32 %v4767, %v5031
      %v5050 = vadd.f32 %v4768, %v5034
      %v5051 = vadd.f32 %v4769, %v5039
      %v5052 = vadd.f32 %v4770, %v5042
      %v5053 = vld [vmem:[%s4600] sm:$0xe]
      %v5054 = vld [vmem:[%s4600 + $0x8] sm:$0xe]
      %v5055 = vld [vmem:[%s4600 + $0x10] sm:$0xe]
      %v5056 = vld [vmem:[%s4600 + $0x18] sm:$0xe]
      %v5057 = vld [vmem:[%s4600 + $0x20] sm:$0xe]
      %v5058 = vld [vmem:[%s4600 + $0x28] sm:$0xe]
      %v5059 = vld [vmem:[%s4600 + $0x30] sm:$0xe]
      %v5060 = vld [vmem:[%s4600 + $0x38] sm:$0xe]
      %v5077 = vrot.slane %v5053, 5
      %v5078 = vrot.slane %v5077, 4
      %v5079 = vrot.slane %v4772, 5
      %v5080 = vsel %vm3751, %v5078, %v5079
      %v5081 = vrot.slane %v5054, 5
      %v5082 = vrot.slane %v5081, 4
      %v5083 = vrot.slane %v4774, 5
      %v5084 = vsel %vm3751, %v5082, %v5083
      %v5085 = vrot.slane %v5055, 5
      %v5086 = vrot.slane %v5085, 4
      %v5087 = vrot.slane %v4776, 5
      %v5088 = vsel %vm3751, %v5086, %v5087
      %v5089 = vrot.slane %v5056, 5
      %v5090 = vrot.slane %v5089, 4
      %v5091 = vrot.slane %v4778, 5
      %v5092 = vsel %vm3751, %v5090, %v5091
      %v5093 = vrot.slane %v5057, 5
      %v5094 = vrot.slane %v5093, 4
      %v5095 = vrot.slane %v4780, 5
      %v5096 = vsel %vm3751, %v5094, %v5095
      %v5097 = vrot.slane %v5058, 5
      %v5098 = vrot.slane %v5097, 4
      %v5099 = vrot.slane %v4782, 5
      %v5100 = vsel %vm3751, %v5098, %v5099
      %v5101 = vrot.slane %v5059, 5
      %v5102 = vrot.slane %v5101, 4
      %v5103 = vrot.slane %v4784, 5
      %v5104 = vsel %vm3751, %v5102, %v5103
      %v5105 = vrot.slane %v5060, 5
      %v5106 = vrot.slane %v5105, 4
      %v5107 = vrot.slane %v4786, 5
      %v5108 = vsel %vm3751, %v5106, %v5107
      %s5109 = scalar_lea.vmem %s6, 512
      %v5110 = vld [vmem:[%s5109] sm:$0xf]
      %v5111 = vld [vmem:[%s5109 + $0x4] sm:$0xf]
      %v5112 = vld [vmem:[%s5109 + $0x8] sm:$0xf]
      %v5113 = vld [vmem:[%s5109 + $0xc] sm:$0xf]
      %v5114 = vld [vmem:[%s5109 + $0x10] sm:$0xf]
      %v5115 = vld [vmem:[%s5109 + $0x14] sm:$0xf]
      %v5116 = vld [vmem:[%s5109 + $0x18] sm:$0xf]
      %v5117 = vld [vmem:[%s5109 + $0x1c] sm:$0xf]
      %v5118 = vld [vmem:[%s5109 + $0x20] sm:$0xf]
      %v5119 = vld [vmem:[%s5109 + $0x24] sm:$0xf]
      %v5120 = vld [vmem:[%s5109 + $0x28] sm:$0xf]
      %v5121 = vld [vmem:[%s5109 + $0x2c] sm:$0xf]
      %v5122 = vld [vmem:[%s5109 + $0x30] sm:$0xf]
      %v5123 = vld [vmem:[%s5109 + $0x34] sm:$0xf]
      %v5124 = vld [vmem:[%s5109 + $0x38] sm:$0xf]
      %v5125 = vld [vmem:[%s5109 + $0x3c] sm:$0xf]
      %v5126 = vunpack.c.l.b16 %v5080
      %v5127 = vunpack.c.l.b16 %v5084
      %v5128 = vunpack.c.l.b16 %v5088
      %v5129 = vunpack.c.l.b16 %v5092
      %v5130 = vunpack.c.l.b16 %v5096
      %v5131 = vunpack.c.l.b16 %v5100
      %v5132 = vunpack.c.l.b16 %v5104
      %v5133 = vunpack.c.l.b16 %v5108
      %v5134 = vpack.c.b16 %v5127, %v5126
      %v5135 = vpack.c.b16 %v5129, %v5128
      %v5136 = vpack.c.b16 %v5131, %v5130
      %v5137 = vpack.c.b16 %v5133, %v5132
      %v5158 = vunpack.c.l.b16 %v5110
      %v5159 = vunpack.c.l.b16 %v5111
      %v5160 = vunpack.c.l.b16 %v5112
      %v5161 = vunpack.c.l.b16 %v5113
      %v5162 = vunpack.c.l.b16 %v5114
      %v5163 = vunpack.c.l.b16 %v5115
      %v5164 = vunpack.c.l.b16 %v5116
      %v5165 = vunpack.c.l.b16 %v5117
      %v5166 = vunpack.c.l.b16 %v5118
      %v5167 = vunpack.c.l.b16 %v5119
      %v5168 = vunpack.c.l.b16 %v5120
      %v5169 = vunpack.c.l.b16 %v5121
      %v5170 = vunpack.c.l.b16 %v5122
      %v5171 = vunpack.c.l.b16 %v5123
      %v5172 = vunpack.c.l.b16 %v5124
      %v5173 = vunpack.c.l.b16 %v5125
      %v5174 = vpack.c.b16 %v5159, %v5158
      %v5175 = vpack.c.b16 %v5161, %v5160
      %v5176 = vpack.c.b16 %v5163, %v5162
      %v5177 = vpack.c.b16 %v5165, %v5164
      %v5178 = vpack.c.b16 %v5167, %v5166
      %v5179 = vpack.c.b16 %v5169, %v5168
      %v5180 = vpack.c.b16 %v5171, %v5170
      %v5181 = vpack.c.b16 %v5173, %v5172
      %5190 = vmatprep.subr.bf16.mxu0 0
      %5191 = vmatpush1.bf16.msra.mxu0 %v5181
      %5192 = vmatprep.subr.bf16.mxu0 0
      %5193 = vmatpush1.bf16.msra.mxu0 %v5180
      %5194 = vmatprep.subr.bf16.mxu0 0
      %5195 = vmatpush1.bf16.msra.mxu0 %v5179
      %5196 = vmatprep.subr.bf16.mxu0 0
      %5197 = vmatpush1.bf16.msra.mxu0 %v5178
      %5198 = vmatprep.subr.bf16.mxu0 0
      %5199 = vmatpush1.bf16.msra.mxu0 %v5177
      %5200 = vmatprep.subr.bf16.mxu0 0
      %5201 = vmatpush1.bf16.msra.mxu0 %v5176
      %5202 = vmatprep.subr.bf16.mxu0 0
      %5203 = vmatpush1.bf16.msra.mxu0 %v5175
      %5204 = vmatprep.subr.bf16.mxu0 0
      %5205 = vmatpush1.bf16.msra.mxu0 %v5174
      %5206 = vmatprep.subr.bf16.mxu0 0
      %5207 = vmatpush2.bf16.msra.mxu0 0
      %5208 = vmatprep.subr.bf16.mxu0 0
      %5209 = vmatpush2.bf16.msra.mxu0 0
      %5210 = vmatprep.subr.bf16.mxu0 0
      %5211 = vmatpush2.bf16.msra.mxu0 0
      %5212 = vmatprep.subr.bf16.mxu0 0
      %5213 = vmatpush2.bf16.msra.mxu0 0
      %5214 = vmatprep.subr.bf16.mxu0 0
      %5215 = vmatpush2.bf16.msra.mxu0 0
      %5216 = vmatprep.subr.bf16.mxu0 0
      %5217 = vmatpush2.bf16.msra.mxu0 0
      %5218 = vmatprep.subr.bf16.mxu0 0
      %5219 = vmatpush2.bf16.msra.mxu0 0
      %5220 = vmatprep.subr.bf16.mxu0 0
      %5221 = vmatpush2.bf16.msra.mxu0 0
      %5222 = vmatprep.mubr.bf16.mxu0 0
      %5223 = vmatmul.mubr.bf16.gmra.mxu0 %v5134
      %v5224 = vpop.f32.mrf.mxu0
      %v5225 = vadd.f32 0.0, %v5224
      %v5226 = vpop.f32.mrf.mxu0
      %v5227 = vpop.f32.mrf.mxu0
      %v5228 = vadd.f32 0.0, %v5227
      %v5229 = vpop.f32.mrf.mxu0
      %5230 = vmatprep.mubr.bf16.mxu0 0
      %5231 = vmatmul.mubr.bf16.gmra.mxu0 %v5135
      %v5232 = vpop.f32.mrf.mxu0
      %v5233 = vadd.f32 0.0, %v5232
      %v5234 = vpop.f32.mrf.mxu0
      %v5235 = vpop.f32.mrf.mxu0
      %v5236 = vadd.f32 0.0, %v5235
      %v5237 = vpop.f32.mrf.mxu0
      %5238 = vmatprep.mubr.bf16.mxu0 0
      %5239 = vmatmul.mubr.bf16.gmra.mxu0 %v5136
      %v5240 = vpop.f32.mrf.mxu0
      %v5241 = vadd.f32 0.0, %v5240
      %v5242 = vpop.f32.mrf.mxu0
      %v5243 = vpop.f32.mrf.mxu0
      %v5244 = vadd.f32 0.0, %v5243
      %v5245 = vpop.f32.mrf.mxu0
      %5246 = vmatprep.mubr.bf16.mxu0 0
      %5247 = vmatmul.mubr.bf16.gmra.mxu0 %v5137
      %v5248 = vpop.f32.mrf.mxu0
      %v5249 = vadd.f32 0.0, %v5248
      %v5250 = vpop.f32.mrf.mxu0
      %v5251 = vpop.f32.mrf.mxu0
      %v5252 = vadd.f32 0.0, %v5251
      %v5253 = vpop.f32.mrf.mxu0
      %5254 = vdwg.mxu0
      %v5255 = vadd.f32 %v5045, %v5225
      %v5256 = vadd.f32 %v5046, %v5228
      %v5257 = vadd.f32 %v5047, %v5233
      %v5258 = vadd.f32 %v5048, %v5236
      %v5259 = vadd.f32 %v5049, %v5241
      %v5260 = vadd.f32 %v5050, %v5244
      %v5261 = vadd.f32 %v5051, %v5249
      %v5262 = vadd.f32 %v5052, %v5252
      %v5263 = vld [vmem:[%s868] sm:$0xff]
      %v5264 = vld [vmem:[%s868 + $0x10] sm:$0xff]
      %v5265 = vld [vmem:[%s868 + $0x20] sm:$0xff]
      %v5266 = vld [vmem:[%s868 + $0x30] sm:$0xff]
      %v5267 = vld [vmem:[%s868 + $0x40] sm:$0xff]
      %v5268 = vld [vmem:[%s868 + $0x50] sm:$0xff]
      %v5269 = vld [vmem:[%s868 + $0x60] sm:$0xff]
      %v5270 = vld [vmem:[%s868 + $0x70] sm:$0xff]
      %v5271 = vpack.c.bf16 %v5264, %v5263
      %v5272 = vpack.c.bf16 %v5266, %v5265
      %v5273 = vpack.c.bf16 %v5268, %v5267
      %v5274 = vpack.c.bf16 %v5270, %v5269
      %v5275 = vld [vmem:[%s7] sm:$0xf]
      %v5276 = vld [vmem:[%s7 + $0x4] sm:$0xf]
      %v5277 = vld [vmem:[%s7 + $0x8] sm:$0xf]
      %v5278 = vld [vmem:[%s7 + $0xc] sm:$0xf]
      %v5279 = vld [vmem:[%s7 + $0x10] sm:$0xf]
      %v5280 = vld [vmem:[%s7 + $0x14] sm:$0xf]
      %v5281 = vld [vmem:[%s7 + $0x18] sm:$0xf]
      %v5282 = vld [vmem:[%s7 + $0x1c] sm:$0xf]
      %v5283 = vld [vmem:[%s7 + $0x20] sm:$0xf]
      %v5284 = vld [vmem:[%s7 + $0x24] sm:$0xf]
      %v5285 = vld [vmem:[%s7 + $0x28] sm:$0xf]
      %v5286 = vld [vmem:[%s7 + $0x2c] sm:$0xf]
      %v5287 = vld [vmem:[%s7 + $0x30] sm:$0xf]
      %v5288 = vld [vmem:[%s7 + $0x34] sm:$0xf]
      %v5289 = vld [vmem:[%s7 + $0x38] sm:$0xf]
      %v5290 = vld [vmem:[%s7 + $0x3c] sm:$0xf]
      %v5307 = vunpack.c.l.b16 %v5275
      %v5308 = vunpack.c.l.b16 %v5276
      %v5309 = vunpack.c.l.b16 %v5277
      %v5310 = vunpack.c.l.b16 %v5278
      %v5311 = vunpack.c.l.b16 %v5279
      %v5312 = vunpack.c.l.b16 %v5280
      %v5313 = vunpack.c.l.b16 %v5281
      %v5314 = vunpack.c.l.b16 %v5282
      %v5315 = vunpack.c.l.b16 %v5283
      %v5316 = vunpack.c.l.b16 %v5284
      %v5317 = vunpack.c.l.b16 %v5285
      %v5318 = vunpack.c.l.b16 %v5286
      %v5319 = vunpack.c.l.b16 %v5287
      %v5320 = vunpack.c.l.b16 %v5288
      %v5321 = vunpack.c.l.b16 %v5289
      %v5322 = vunpack.c.l.b16 %v5290
      %v5323 = vpack.c.b16 %v5308, %v5307
      %v5324 = vpack.c.b16 %v5310, %v5309
      %v5325 = vpack.c.b16 %v5312, %v5311
      %v5326 = vpack.c.b16 %v5314, %v5313
      %v5327 = vpack.c.b16 %v5316, %v5315
      %v5328 = vpack.c.b16 %v5318, %v5317
      %v5329 = vpack.c.b16 %v5320, %v5319
      %v5330 = vpack.c.b16 %v5322, %v5321
      %5339 = vmatprep.subr.bf16.mxu0 0
      %5340 = vmatpush1.bf16.msra.mxu0 %v5330
      %5341 = vmatprep.subr.bf16.mxu0 0
      %5342 = vmatpush1.bf16.msra.mxu0 %v5329
      %5343 = vmatprep.subr.bf16.mxu0 0
      %5344 = vmatpush1.bf16.msra.mxu0 %v5328
      %5345 = vmatprep.subr.bf16.mxu0 0
      %5346 = vmatpush1.bf16.msra.mxu0 %v5327
      %5347 = vmatprep.subr.bf16.mxu0 0
      %5348 = vmatpush1.bf16.msra.mxu0 %v5326
      %5349 = vmatprep.subr.bf16.mxu0 0
      %5350 = vmatpush1.bf16.msra.mxu0 %v5325
      %5351 = vmatprep.subr.bf16.mxu0 0
      %5352 = vmatpush1.bf16.msra.mxu0 %v5324
      %5353 = vmatprep.subr.bf16.mxu0 0
      %5354 = vmatpush1.bf16.msra.mxu0 %v5323
      %5355 = vmatprep.subr.bf16.mxu0 0
      %5356 = vmatpush2.bf16.msra.mxu0 0
      %5357 = vmatprep.subr.bf16.mxu0 0
      %5358 = vmatpush2.bf16.msra.mxu0 0
      %5359 = vmatprep.subr.bf16.mxu0 0
      %5360 = vmatpush2.bf16.msra.mxu0 0
      %5361 = vmatprep.subr.bf16.mxu0 0
      %5362 = vmatpush2.bf16.msra.mxu0 0
      %5363 = vmatprep.subr.bf16.mxu0 0
      %5364 = vmatpush2.bf16.msra.mxu0 0
      %5365 = vmatprep.subr.bf16.mxu0 0
      %5366 = vmatpush2.bf16.msra.mxu0 0
      %5367 = vmatprep.subr.bf16.mxu0 0
      %5368 = vmatpush2.bf16.msra.mxu0 0
      %5369 = vmatprep.subr.bf16.mxu0 0
      %5370 = vmatpush2.bf16.msra.mxu0 0
      %5371 = vmatprep.mubr.bf16.mxu0 0
      %5372 = vmatmul.mubr.bf16.gmra.mxu0 %v5271
      %v5373 = vpop.f32.mrf.mxu0
      %v5374 = vadd.f32 0.0, %v5373
      %v5375 = vpop.f32.mrf.mxu0
      %v5376 = vpop.f32.mrf.mxu0
      %v5377 = vadd.f32 0.0, %v5376
      %v5378 = vpop.f32.mrf.mxu0
      %5379 = vmatprep.mubr.bf16.mxu0 0
      %5380 = vmatmul.mubr.bf16.gmra.mxu0 %v5272
      %v5381 = vpop.f32.mrf.mxu0
      %v5382 = vadd.f32 0.0, %v5381
      %v5383 = vpop.f32.mrf.mxu0
      %v5384 = vpop.f32.mrf.mxu0
      %v5385 = vadd.f32 0.0, %v5384
      %v5386 = vpop.f32.mrf.mxu0
      %5387 = vmatprep.mubr.bf16.mxu0 0
      %5388 = vmatmul.mubr.bf16.gmra.mxu0 %v5273
      %v5389 = vpop.f32.mrf.mxu0
      %v5390 = vadd.f32 0.0, %v5389
      %v5391 = vpop.f32.mrf.mxu0
      %v5392 = vpop.f32.mrf.mxu0
      %v5393 = vadd.f32 0.0, %v5392
      %v5394 = vpop.f32.mrf.mxu0
      %5395 = vmatprep.mubr.bf16.mxu0 0
      %5396 = vmatmul.mubr.bf16.gmra.mxu0 %v5274
      %v5397 = vpop.f32.mrf.mxu0
      %v5398 = vadd.f32 0.0, %v5397
      %v5399 = vpop.f32.mrf.mxu0
      %v5400 = vpop.f32.mrf.mxu0
      %v5401 = vadd.f32 0.0, %v5400
      %v5402 = vpop.f32.mrf.mxu0
      %5403 = vdwg.mxu0
      %v5404 = vadd.f32 %v5255, %v5374
      %v5405 = vadd.f32 %v5256, %v5377
      %v5406 = vadd.f32 %v5257, %v5382
      %v5407 = vadd.f32 %v5258, %v5385
      %v5408 = vadd.f32 %v5259, %v5390
      %v5409 = vadd.f32 %v5260, %v5393
      %v5410 = vadd.f32 %v5261, %v5398
      %v5411 = vadd.f32 %v5262, %v5401
      %5412 = vst [vmem:[%s305] sm:$0xff] %v5404
      %5413 = vst [vmem:[%s305 + $0x8] sm:$0xff] %v5405
      %5414 = vst [vmem:[%s305 + $0x10] sm:$0xff] %v5406
      %5415 = vst [vmem:[%s305 + $0x18] sm:$0xff] %v5407
      %5416 = vst [vmem:[%s305 + $0x20] sm:$0xff] %v5408
      %5417 = vst [vmem:[%s305 + $0x28] sm:$0xff] %v5409
      %5418 = vst [vmem:[%s305 + $0x30] sm:$0xff] %v5410
      %5419 = vst [vmem:[%s305 + $0x38] sm:$0xff] %v5411
      %p5420 = scmp.lt.s32.totalorder %s19, 1
      %s5421 = scalar_select %p5420, %s19, 1
      %s5422 = smul.addr %s5421, 8
      %s5423 = smul.addr %s5422, 8
      %s5424 = scalar_lea.vmem %s8, %s5423
      // Predicated region
      $region53: #{basic_block_forward.1} parent=51 // pred_check
        %p5425 = pneg %p210
      $region54: #{basic_block_forward.1} parent=51 // pred_check_branch
        %5427 = sbr.rel (%p5425) target = $region56
      $region55: #{basic_block_forward.1} parent=51 // pred_region
        _
      $region56: #{basic_block_forward.1} parent=51 // pred_fallthru
        _
    $region52: #{basic_block_forward.1} parent=5 // pred_fallthru
      _
    %p5428 = scmp.le.s32.totalorder 2, %s14
    // Predicated region
    $region57: #{basic_block_forward.1} parent=5 // pred_check
      %p5429 = pneg %p5428
    $region58: #{basic_block_forward.1} parent=5 // pred_check_branch
      %5431 = sbr.rel (%p5429) target = $region60
    $region59: #{basic_block_forward.1} parent=5 // pred_region
      %s5432 = ssub.s32 %s14, 2
      // Predicated region
      $region61: #{basic_block_forward.1} parent=59 // pred_check
        %p5433 = pneg %p216
      $region62: #{basic_block_forward.1} parent=59 // pred_check_branch
        %5435 = sbr.rel (%p5433) target = $region64
      $region63: #{basic_block_forward.1} parent=59 // pred_region
        %p5436 = scmp.lt.s32.totalorder %s20, 1
        %s5437 = scalar_select %p5436, %s20, 1
        %s5438 = smul.addr %s5437, 8
        %s5439 = smul.addr %s5438, 8
        %s5440 = scalar_lea.vmem %s8, %s5439
      $region64: #{basic_block_forward.1} parent=59 // pred_fallthru
        _
    $region60: #{basic_block_forward.1} parent=5 // pred_fallthru
      _
  $region6: #{basic_block_forward.1} parent=0 // loop_footer
    %s18 = sadd.s32 1, %s14
  $region7: #{basic_block_forward.1} parent=0 // loop_footer_branch
    %13 = sbr.rel target = $region3
  $region8: #{basic_block_forward.1} parent=0 // loop_exit
    _

</llo_original>
